<compile_context>
chip_gen: v6e
topology: v6e:2x2x1
jax: 0.10.0
libtpu: 0.0.40
codegen_flags: <defaults>
</compile_context>

<pallas_src>
import jax
import jax.numpy as jnp
import numpy as np
from jax.experimental import pallas as pl
from jax.experimental.pallas import tpu as pltpu

# ----------------------------- config (small) --------------------------------
BATCH = 4
D_FEAT = 6          # d_feat
SEQ = 16            # sequence length T
HID1 = 32           # hidden_size1 (conv1 channels)
HID2 = 32           # hidden_size  (conv2 channels, GRU hidden, attention dim)
BN_EPS = 1e-3
_LANES = 128

# weight-slab row offsets (static; all sections zero-padded to 128 lanes)
_OFF_W1F = 0                          # fused layer-1 gate weight  [2H, 4H]
_OFF_WHH0 = _OFF_W1F + 2 * HID2       # 64   layer-0 recurrent     [H, 3H]
_OFF_WIH0 = _OFF_WHH0 + HID2          # 96   layer-0 input proj    [F, 3H]
_OFF_WKQ = _OFF_WIH0 + 8              # 104  attention [wk | wq]   [H, 2H]
_OFF_WCOL2 = _OFF_WKQ + HID2          # 136  conv2 im2col          [3*H1, H]
_OFF_WCOL1 = _OFF_WCOL2 + 3 * HID1    # 232  conv1 im2col          [3*F, H1]
_WSLAB_ROWS = _OFF_WCOL1 + 24         # 256

_VMEM = pl.BlockSpec(memory_space=pltpu.MemorySpace.VMEM)


# ------------------------------ fused kernel ----------------------------------
def alstm2_fused_kernel(x_ref, w_ref, b_ref, o_ref, gi0_ref, keys_ref):
    T, N, H3 = gi0_ref.shape
    H = H3 // 3
    H1 = HID1
    F = x_ref.shape[1]
    TN = T * N

    # ---- weights: one consolidated slab, sliced once with static offsets -----
    w1f = w_ref[_OFF_W1F:_OFF_W1F + 2 * H, :]                 # [2H, 4H]
    whh0 = w_ref[_OFF_WHH0:_OFF_WHH0 + H, :H3]                # [H, 3H]
    wih0 = w_ref[_OFF_WIH0:_OFF_WIH0 + F, :H3]                # [F, 3H]
    wkq = w_ref[_OFF_WKQ:_OFF_WKQ + H, :2 * H]                # [H, 2H]
    wcol2 = w_ref[_OFF_WCOL2:_OFF_WCOL2 + 3 * H1, :H]         # [3*H1, H]
    wcol1 = w_ref[_OFF_WCOL1:_OFF_WCOL1 + 3 * F, :H1]         # [3*F, H1]

    # ---- biases / small vectors (one [8,128] slab) ---------------------------
    b1f = b_ref[0:1, 0:H1]
    b2f = b_ref[0:1, H1:H1 + H]
    wv = b_ref[0:1, H1 + H:H1 + 2 * H]
    woc = b_ref[0:1, H1 + 2 * H:H1 + 3 * H]
    wox = b_ref[1:2, 0:H]
    bout = b_ref[1:2, H:H + 1]
    bih0 = b_ref[2:3, 0:H3]
    bhh0 = b_ref[3:4, 0:H3]
    b1fv = b_ref[4:5, :]                                      # [1, 4H]

    x_flat = x_ref[...]                # [T*N, F], row = t*N + n (time-major)

    # ---------- conv1 (k=3, p=1) as one im2col matmul + folded BN + ReLU ------
    zf = jnp.zeros((N, F), jnp.float32)
    xcol = jnp.concatenate(
        [jnp.concatenate([zf, x_flat[:TN - N]], axis=0),      # x[t-1] (zero pad)
         x_flat,                                              # x[t]
         jnp.concatenate([x_flat[N:], zf], axis=0)],          # x[t+1] (zero pad)
        axis=1)                                               # [T*N, 3F]
    c1 = jnp.maximum(
        jnp.dot(xcol, wcol1, preferred_element_type=jnp.float32) + b1f, 0.0)

    # ---------- conv2 (k=3, p=1) as one im2col matmul + folded BN + ReLU ------
    zc = jnp.zeros((N, H1), jnp.float32)
    c1col = jnp.concatenate(
        [jnp.concatenate([zc, c1[:TN - N]], axis=0),
         c1,
         jnp.concatenate([c1[N:], zc], axis=0)],
        axis=1)                                               # [T*N, 3*H1]
    c2 = jnp.maximum(
        jnp.dot(c1col, wcol2, preferred_element_type=jnp.float32) + b2f, 0.0)

    pooled = jnp.mean(c2.reshape(T, N, H), axis=0)            # AdaptiveAvgPool1d(1)

    # ---------- GRU layer-0 input projection (hoisted, flattened) -------------
    gi0 = jnp.dot(x_flat, wih0, preferred_element_type=jnp.float32) + bih0
    gi0_ref[...] = gi0.reshape(T, N, H3)   # stream per step (bound live ranges)

    # ---------- software-pipelined 2-layer GRU (PyTorch gate order r, z, n) ---
    # iteration i computes layer-0 step i and layer-1 step i-1; the two chains
    # are independent within an iteration so their matmul/EUP latency overlaps.
    h0 = jnp.zeros((N, H), jnp.float32)
    h1 = jnp.zeros((N, H), jnp.float32)
    for i in range(T + 1):
        h0_in, h1_in = h0, h1
        if i >= 1:
            # layer-1 step i-1: fused input+recurrent matmul (128-wide output)
            xcat = jnp.concatenate([h0_in, h1_in], axis=1)    # [N, 2H]
            g1 = jnp.dot(xcat, w1f, preferred_element_type=jnp.float32) + b1fv
            r1 = jax.nn.sigmoid(g1[:, :H])
            z1 = jax.nn.sigmoid(g1[:, H:2 * H])
            n1 = jnp.tanh(g1[:, 2 * H:3 * H] + r1 * g1[:, 3 * H:])
            h1 = (1.0 - z1) * n1 + z1 * h1_in
            keys_ref[i - 1] = h1
        if i < T:
            # layer-0 step i (input projection already hoisted)
            gh0 = jnp.dot(h0_in, whh0, preferred_element_type=jnp.float32) + bhh0
            gi0_t = gi0_ref[i]
            r0 = jax.nn.sigmoid(gi0_t[:, :H] + gh0[:, :H])
            z0 = jax.nn.sigmoid(gi0_t[:, H:2 * H] + gh0[:, H:2 * H])
            n0 = jnp.tanh(gi0_t[:, 2 * H:] + r0 * gh0[:, 2 * H:])
            h0 = (1.0 - z0) * n0 + z0 * h0_in

    # ---------- additive attention + concat + fc_out --------------------------
    keys = keys_ref[...]                                      # [T, N, H]
    keys_flat = keys.reshape(TN, H)
    kq = jnp.dot(keys_flat, wkq, preferred_element_type=jnp.float32)  # [T*N, 2H]
    k = kq[:, :H].reshape(T, N, H)                            # keys @ wk
    q = kq[TN - N:, H:]                                       # h_last @ wq  [N, H]
    e = jnp.tanh(k + q[None, :, :])                           # [T, N, H]
    energy = jnp.sum(e * wv, axis=-1, keepdims=True)          # VPU mul + lane reduce
    m = jnp.max(energy, axis=0, keepdims=True)
    pexp = jnp.exp(energy - m)
    attn = pexp / jnp.sum(pexp, axis=0, keepdims=True)        # exact softmax over T
    context = jnp.sum(keys * attn, axis=0)                    # [N, H]

    o_ref[...] = (jnp.sum(pooled * woc, axis=-1, keepdims=True)
                  + jnp.sum(context * wox, axis=-1, keepdims=True)
                  + bout)                                     # [N, 1]


# ------------------------------- wrapper --------------------------------------
@jax.jit
def alstm2_forward(x, p):
    N = x.shape[0]
    F, T, H1, H = D_FEAT, SEQ, HID1, HID2

    xi = x.reshape(N, F, T)                       # inputs.view(N, d_feat, -1)
    x_flat = jnp.transpose(xi, (2, 0, 1)).reshape(T * N, F)   # time-major, flattened

    def fold_conv(w, b, g, be, m, v):
        # fold eval-mode BN into conv weight/bias and lay out for im2col
        scale = g / jnp.sqrt(v + BN_EPS)
        wt = jnp.transpose(w * scale[:, None, None], (2, 1, 0))   # [3, Cin, Cout]
        wcol = wt.reshape(3 * w.shape[1], w.shape[0])             # [3*Cin, Cout]
        bf = ((b - m) * scale + be).reshape(1, -1)
        return wcol, bf

    wcol1, b1f = fold_conv(p["w1"], p["b1"], p["g1"], p["be1"], p["m1"], p["v1"])
    wcol2, b2f = fold_conv(p["w2"], p["b2"], p["g2"], p["be2"], p["m2"], p["v2"])

    wih0, whh0 = p["wih0"].T, p["whh0"].T         # [F,3H], [H,3H]
    wih1, whh1 = p["wih1"].T, p["whh1"].T         # [H,3H], [H,3H]

    # fused layer-1 gate weight [2H, 4H]: r/z columns combine gi+gh, the n-gate's
    # gi and gh stay in separate column blocks (needed because n uses gi_n + r*gh_n)
    w1f = jnp.zeros((2 * H, 4 * H), jnp.float32)
    w1f = w1f.at[:H, :2 * H].set(wih1[:, :2 * H])
    w1f = w1f.at[H:, :2 * H].set(whh1[:, :2 * H])
    w1f = w1f.at[:H, 2 * H:3 * H].set(wih1[:, 2 * H:])
    w1f = w1f.at[H:, 3 * H:].set(whh1[:, 2 * H:])
    b1fused = jnp.concatenate([p["bih1"][:2 * H] + p["bhh1"][:2 * H],
                               p["bih1"][2 * H:], p["bhh1"][2 * H:]]).reshape(1, 4 * H)

    wkq = jnp.concatenate([p["wk"].T, p["wq"].T], axis=1)     # [H, 2H]

    def padw(w, rows):
        return jnp.pad(w, ((0, rows - w.shape[0]), (0, _LANES - w.shape[1])))

    # one 128-lane weight slab (3 input DMAs total instead of 19)
    wslab = jnp.concatenate([
        padw(w1f, 2 * H),           # rows   0: 64
        padw(whh0, H),              # rows  64: 96
        padw(wih0, 8),              # rows  96:104
        padw(wkq, H),               # rows 104:136
        padw(wcol2, 3 * H1),        # rows 136:232
        padw(wcol1, 24),            # rows 232:256
    ], axis=0)                                                # [_WSLAB_ROWS, 128]

    # one bias/vector slab [8, 128] (row0 packing relies on H1 + 3*H == 128)
    row0 = jnp.concatenate([b1f, b2f, p["wv"], p["wout"][:, :H]], axis=1)
    row1 = jnp.concatenate([p["wout"][:, H:], p["bout"].reshape(1, 1),
                            jnp.zeros((1, _LANES - H - 1), jnp.float32)], axis=1)
    row2 = jnp.pad(p["bih0"].reshape(1, -1), ((0, 0), (0, _LANES - 3 * H)))
    row3 = jnp.pad(p["bhh0"].reshape(1, -1), ((0, 0), (0, _LANES - 3 * H)))
    bslab = jnp.concatenate([row0, row1, row2, row3, b1fused,
                             jnp.zeros((3, _LANES), jnp.float32)], axis=0)

    return pl.pallas_call(
        alstm2_fused_kernel,
        out_shape=jax.ShapeDtypeStruct((N, 1), jnp.float32),
        in_specs=[_VMEM, _VMEM, _VMEM],
        out_specs=_VMEM,
        scratch_shapes=[
            pltpu.VMEM((T, N, 3 * H), jnp.float32),   # gi0: streamed per GRU step
            pltpu.VMEM((T, N, H), jnp.float32),       # layer-1 hidden sequence (keys)
        ],
    )(x_flat, wslab, bslab)


# --------------------------- deterministic params ----------------------------
def init_params(key):
    keys = iter(jax.random.split(key, 64))

    def nrm(shape, s=0.1):
        return jax.random.normal(next(keys), shape, jnp.float32) * s

    def pos(shape):
        return 0.5 + jax.random.uniform(next(keys), shape, jnp.float32)

    H3 = 3 * HID2
    p = {
        # conv block 1
        "w1": nrm((HID1, D_FEAT, 3)), "b1": nrm((HID1,)),
        "g1": 1.0 + nrm((HID1,)), "be1": nrm((HID1,)), "m1": nrm((HID1,)), "v1": pos((HID1,)),
        # conv block 2
        "w2": nrm((HID2, HID1, 3)), "b2": nrm((HID2,)),
        "g2": 1.0 + nrm((HID2,)), "be2": nrm((HID2,)), "m2": nrm((HID2,)), "v2": pos((HID2,)),
        # GRU layer 0 / 1 (PyTorch shapes)
        "wih0": nrm((H3, D_FEAT)), "whh0": nrm((H3, HID2)), "bih0": nrm((H3,)), "bhh0": nrm((H3,)),
        "wih1": nrm((H3, HID2)),   "whh1": nrm((H3, HID2)), "bih1": nrm((H3,)), "bhh1": nrm((H3,)),
        # attention
        "wq": nrm((HID2, HID2)), "wk": nrm((HID2, HID2)), "wv": nrm((1, HID2)),
        # fc_out
        "wout": nrm((1, 2 * HID2)), "bout": nrm((1,)),
    }
    return p


# ------------------------------ pure-JAX reference ---------------------------
def ref_forward(x, p):
    N = x.shape[0]
    xi = x.reshape(N, D_FEAT, SEQ)

    def conv(x_nct, w, b):
        y = jax.lax.conv_general_dilated(
            x_nct, w, window_strides=(1,), padding=((1, 1),),
            dimension_numbers=("NCH", "OIH", "NCH"))
        return y + b[None, :, None]

    def bn(x_nct, g, be, m, v):
        return (x_nct - m[None, :, None]) * (g / jnp.sqrt(v + BN_EPS))[None, :, None] + be[None, :, None]

    c = jax.nn.relu(bn(conv(xi, p["w1"], p["b1"]), p["g1"], p["be1"], p["m1"], p["v1"]))
    c = jax.nn.relu(bn(conv(c, p["w2"], p["b2"]), p["g2"], p["be2"], p["m2"], p["v2"]))
    conv_out = jnp.mean(c, axis=2)                                   # AdaptiveAvgPool1d(1)

    xs = jnp.transpose(xi, (0, 2, 1))                                # [N, T, F]
    xt = jnp.transpose(xs, (1, 0, 2))                                # [T, N, F]

    def gru_layer(seq_tnf, wih, whh, bih, bhh):
        H = whh.shape[1]

        def step(h, x_t):
            gi = x_t @ wih.T + bih
            gh = h @ whh.T + bhh
            r = jax.nn.sigmoid(gi[:, :H] + gh[:, :H])
            z = jax.nn.sigmoid(gi[:, H:2 * H] + gh[:, H:2 * H])
            n = jnp.tanh(gi[:, 2 * H:] + r * gh[:, 2 * H:])
            hn = (1.0 - z) * n + z * h
            return hn, hn

        h0 = jnp.zeros((seq_tnf.shape[1], H), jnp.float32)
        h_last, ys = jax.lax.scan(step, h0, seq_tnf)
        return ys, h_last

    y0, _ = gru_layer(xt, p["wih0"], p["whh0"], p["bih0"], p["bhh0"])
    y1, h_last = gru_layer(y0, p["wih1"], p["whh1"], p["bih1"], p["bhh1"])
    rnn_out = jnp.transpose(y1, (1, 0, 2))                           # [N, T, H]

    q = h_last @ p["wq"].T                                           # [N, H]
    k = rnn_out @ p["wk"].T                                          # [N, T, H]
    e = jnp.tanh(q[:, None, :] + k) @ p["wv"].T                      # [N, T, 1]
    attn = jax.nn.softmax(e[:, :, 0], axis=1)
    ctx = jnp.sum(rnn_out * attn[:, :, None], axis=1)                # [N, H]
    feat = jnp.concatenate([conv_out, ctx], axis=-1)                 # [N, 2H]
    return feat @ p["wout"].T + p["bout"]


# ----------------------------------- main -------------------------------------
if __name__ == "__main__":
    key = jax.random.PRNGKey(0)
    params = init_params(key)
    x = jax.random.normal(jax.random.fold_in(key, 999), (BATCH, D_FEAT * SEQ), jnp.float32)

    out = jax.block_until_ready(alstm2_forward(x, params))
    assert out.shape == (BATCH, 1)

    with jax.default_matmul_precision("float32"):
        ref = jax.block_until_ready(ref_forward(x, params))

    np.testing.assert_allclose(np.asarray(out), np.asarray(ref), rtol=1e-3, atol=1e-3)
    print("KERNEL_OK")
</pallas_src>

<mosaic_0001>
module attributes {stable_mosaic.version = 11 : i64} {
  func.func @alstm2_fused_kernel(%arg0: memref<64x6xf32, #tpu.memory_space<vmem>>, %arg1: memref<256x128xf32, #tpu.memory_space<vmem>>, %arg2: memref<8x128xf32, #tpu.memory_space<vmem>>, %arg3: memref<4x1xf32, #tpu.memory_space<vmem>>, %arg4: memref<16x4x96xf32, #tpu.memory_space<vmem>>, %arg5: memref<16x4x32xf32, #tpu.memory_space<vmem>>) attributes {dimension_semantics = [], scalar_prefetch = 0 : i64, scratch_operands = 2 : i64, tpu.core_type = #tpu.core_type<tc>} {
    %c0 = arith.constant 0 : index
    %c0_0 = arith.constant 0 : index
    %0 = vector.load %arg1[%c0, %c0_0] : memref<256x128xf32, #tpu.memory_space<vmem>>, vector<64x128xf32>
    %c64 = arith.constant 64 : index
    %c0_1 = arith.constant 0 : index
    %1 = vector.load %arg1[%c64, %c0_1] : memref<256x128xf32, #tpu.memory_space<vmem>>, vector<32x96xf32>
    %c96 = arith.constant 96 : index
    %c0_2 = arith.constant 0 : index
    %2 = vector.load %arg1[%c96, %c0_2] : memref<256x128xf32, #tpu.memory_space<vmem>>, vector<6x96xf32>
    %c104 = arith.constant 104 : index
    %c0_3 = arith.constant 0 : index
    %3 = vector.load %arg1[%c104, %c0_3] : memref<256x128xf32, #tpu.memory_space<vmem>>, vector<32x64xf32>
    %c136 = arith.constant 136 : index
    %c0_4 = arith.constant 0 : index
    %4 = vector.load %arg1[%c136, %c0_4] : memref<256x128xf32, #tpu.memory_space<vmem>>, vector<96x32xf32>
    %c232 = arith.constant 232 : index
    %c0_5 = arith.constant 0 : index
    %5 = vector.load %arg1[%c232, %c0_5] : memref<256x128xf32, #tpu.memory_space<vmem>>, vector<18x32xf32>
    %c0_6 = arith.constant 0 : index
    %c0_7 = arith.constant 0 : index
    %6 = vector.load %arg2[%c0_6, %c0_7] : memref<8x128xf32, #tpu.memory_space<vmem>>, vector<1x32xf32>
    %c0_8 = arith.constant 0 : index
    %c32 = arith.constant 32 : index
    %7 = vector.load %arg2[%c0_8, %c32] : memref<8x128xf32, #tpu.memory_space<vmem>>, vector<1x32xf32>
    %c0_9 = arith.constant 0 : index
    %c64_10 = arith.constant 64 : index
    %8 = vector.load %arg2[%c0_9, %c64_10] : memref<8x128xf32, #tpu.memory_space<vmem>>, vector<1x32xf32>
    %c0_11 = arith.constant 0 : index
    %c96_12 = arith.constant 96 : index
    %9 = vector.load %arg2[%c0_11, %c96_12] : memref<8x128xf32, #tpu.memory_space<vmem>>, vector<1x32xf32>
    %c1 = arith.constant 1 : index
    %c0_13 = arith.constant 0 : index
    %10 = vector.load %arg2[%c1, %c0_13] : memref<8x128xf32, #tpu.memory_space<vmem>>, vector<1x32xf32>
    %c1_14 = arith.constant 1 : index
    %c32_15 = arith.constant 32 : index
    %11 = vector.load %arg2[%c1_14, %c32_15] : memref<8x128xf32, #tpu.memory_space<vmem>>, vector<1x1xf32>
    %c2 = arith.constant 2 : index
    %c0_16 = arith.constant 0 : index
    %12 = vector.load %arg2[%c2, %c0_16] : memref<8x128xf32, #tpu.memory_space<vmem>>, vector<1x96xf32>
    %c3 = arith.constant 3 : index
    %c0_17 = arith.constant 0 : index
    %13 = vector.load %arg2[%c3, %c0_17] : memref<8x128xf32, #tpu.memory_space<vmem>>, vector<1x96xf32>
    %c4 = arith.constant 4 : index
    %c0_18 = arith.constant 0 : index
    %14 = vector.load %arg2[%c4, %c0_18] : memref<8x128xf32, #tpu.memory_space<vmem>>, vector<1x128xf32>
    %c0_19 = arith.constant 0 : index
    %c0_20 = arith.constant 0 : index
    %15 = vector.load %arg0[%c0_19, %c0_20] : memref<64x6xf32, #tpu.memory_space<vmem>>, vector<64x6xf32>
    %cst = arith.constant 0.000000e+00 : f32
    %16 = vector.broadcast %cst : f32 to vector<4x6xf32>
    %17 = vector.extract_strided_slice %15 {offsets = [0, 0], sizes = [60, 6], strides = [1, 1]} : vector<64x6xf32> to vector<60x6xf32>
    %18 = tpu.concatenate %16, %17 in 0 : vector<4x6xf32>, vector<60x6xf32> -> vector<64x6xf32>
    %19 = vector.extract_strided_slice %15 {offsets = [4, 0], sizes = [60, 6], strides = [1, 1]} : vector<64x6xf32> to vector<60x6xf32>
    %20 = tpu.concatenate %19, %16 in 0 : vector<60x6xf32>, vector<4x6xf32> -> vector<64x6xf32>
    %21 = tpu.concatenate %18, %15, %20 in 1 : vector<64x6xf32>, vector<64x6xf32>, vector<64x6xf32> -> vector<64x18xf32>
    %cst_21 = arith.constant dense<0.000000e+00> : vector<64x32xf32>
    %22 = tpu.matmul %21, %5, %cst_21 {dimension_numbers = #tpu.dot_dimension_numbers<[1], [0], [0], [1], [0, 0, 1, 1], [], []>} : vector<64x18xf32>, vector<18x32xf32>, vector<64x32xf32> -> vector<64x32xf32>
    %23 = vector.broadcast %6 : vector<1x32xf32> to vector<64x32xf32>
    %24 = arith.addf %22, %23 : vector<64x32xf32>
    %cst_22 = arith.constant 0.000000e+00 : f32
    %25 = vector.broadcast %cst_22 : f32 to vector<64x32xf32>
    %26 = arith.maximumf %24, %25 : vector<64x32xf32>
    %cst_23 = arith.constant 0.000000e+00 : f32
    %27 = vector.broadcast %cst_23 : f32 to vector<4x32xf32>
    %28 = vector.extract_strided_slice %26 {offsets = [0, 0], sizes = [60, 32], strides = [1, 1]} : vector<64x32xf32> to vector<60x32xf32>
    %29 = tpu.concatenate %27, %28 in 0 : vector<4x32xf32>, vector<60x32xf32> -> vector<64x32xf32>
    %30 = vector.extract_strided_slice %26 {offsets = [4, 0], sizes = [60, 32], strides = [1, 1]} : vector<64x32xf32> to vector<60x32xf32>
    %31 = tpu.concatenate %30, %27 in 0 : vector<60x32xf32>, vector<4x32xf32> -> vector<64x32xf32>
    %32 = tpu.concatenate %29, %26, %31 in 1 : vector<64x32xf32>, vector<64x32xf32>, vector<64x32xf32> -> vector<64x96xf32>
    %cst_24 = arith.constant dense<0.000000e+00> : vector<64x32xf32>
    %33 = tpu.matmul %32, %4, %cst_24 {dimension_numbers = #tpu.dot_dimension_numbers<[1], [0], [0], [1], [0, 0, 1, 1], [], []>} : vector<64x96xf32>, vector<96x32xf32>, vector<64x32xf32> -> vector<64x32xf32>
    %34 = vector.broadcast %7 : vector<1x32xf32> to vector<64x32xf32>
    %35 = arith.addf %33, %34 : vector<64x32xf32>
    %cst_25 = arith.constant 0.000000e+00 : f32
    %36 = vector.broadcast %cst_25 : f32 to vector<64x32xf32>
    %37 = arith.maximumf %35, %36 : vector<64x32xf32>
    %38 = vector.shape_cast %37 : vector<64x32xf32> to vector<16x4x32xf32>
    %cst_26 = arith.constant dense<0.000000e+00> : vector<4x32xf32>
    %39 = vector.multi_reduction <add>, %38, %cst_26 [0] : vector<16x4x32xf32> to vector<4x32xf32>
    %cst_27 = arith.constant 1.600000e+01 : f32
    %40 = vector.broadcast %cst_27 : f32 to vector<4x32xf32>
    %41 = arith.divf %39, %40 : vector<4x32xf32>
    %cst_28 = arith.constant dense<0.000000e+00> : vector<64x96xf32>
    %42 = tpu.matmul %15, %2, %cst_28 {dimension_numbers = #tpu.dot_dimension_numbers<[1], [0], [0], [1], [0, 0, 1, 1], [], []>} : vector<64x6xf32>, vector<6x96xf32>, vector<64x96xf32> -> vector<64x96xf32>
    %43 = vector.broadcast %12 : vector<1x96xf32> to vector<64x96xf32>
    %44 = arith.addf %42, %43 : vector<64x96xf32>
    %45 = vector.shape_cast %44 : vector<64x96xf32> to vector<16x4x96xf32>
    %c0_29 = arith.constant 0 : index
    %c0_30 = arith.constant 0 : index
    %c0_31 = arith.constant 0 : index
    %46 = vector.load %arg4[%c0_29, %c0_30, %c0_31] : memref<16x4x96xf32, #tpu.memory_space<vmem>>, vector<16x4x96xf32>
    tpu.vector_store %arg4[%c0_29, %c0_30, %c0_31], %45 {strides = array<i32>} : memref<16x4x96xf32, #tpu.memory_space<vmem>>, vector<16x4x96xf32>,
    %cst_32 = arith.constant 0.000000e+00 : f32
    %47 = vector.broadcast %cst_32 : f32 to vector<4x32xf32>
    %cst_33 = arith.constant 0.000000e+00 : f32
    %48 = vector.broadcast %cst_33 : f32 to vector<4x32xf32>
    %cst_34 = arith.constant dense<0.000000e+00> : vector<4x96xf32>
    %49 = tpu.matmul %47, %1, %cst_34 {dimension_numbers = #tpu.dot_dimension_numbers<[1], [0], [0], [1], [0, 0, 1, 1], [], []>} : vector<4x32xf32>, vector<32x96xf32>, vector<4x96xf32> -> vector<4x96xf32>
    %50 = vector.broadcast %13 : vector<1x96xf32> to vector<4x96xf32>
    %51 = arith.addf %49, %50 : vector<4x96xf32>
    %c0_35 = arith.constant 0 : index
    %c0_36 = arith.constant 0 : index
    %c0_37 = arith.constant 0 : index
    %52 = vector.load %arg4[%c0_35, %c0_36, %c0_37] : memref<16x4x96xf32, #tpu.memory_space<vmem>>, vector<1x4x96xf32>
    %53 = vector.shape_cast %52 : vector<1x4x96xf32> to vector<4x96xf32>
    %54 = vector.extract_strided_slice %53 {offsets = [0, 0], sizes = [4, 32], strides = [1, 1]} : vector<4x96xf32> to vector<4x32xf32>
    %55 = vector.extract_strided_slice %51 {offsets = [0, 0], sizes = [4, 32], strides = [1, 1]} : vector<4x96xf32> to vector<4x32xf32>
    %56 = arith.addf %54, %55 : vector<4x32xf32>
    %57 = arith.negf %56 : vector<4x32xf32>
    %58 = math.exp %57 : vector<4x32xf32>
    %cst_38 = arith.constant 1.000000e+00 : f32
    %59 = vector.broadcast %cst_38 : f32 to vector<4x32xf32>
    %60 = arith.addf %59, %58 : vector<4x32xf32>
    %61 = arith.divf %59, %60 : vector<4x32xf32>
    %62 = vector.extract_strided_slice %53 {offsets = [0, 32], sizes = [4, 32], strides = [1, 1]} : vector<4x96xf32> to vector<4x32xf32>
    %63 = vector.extract_strided_slice %51 {offsets = [0, 32], sizes = [4, 32], strides = [1, 1]} : vector<4x96xf32> to vector<4x32xf32>
    %64 = arith.addf %62, %63 : vector<4x32xf32>
    %65 = arith.negf %64 : vector<4x32xf32>
    %66 = math.exp %65 : vector<4x32xf32>
    %cst_39 = arith.constant 1.000000e+00 : f32
    %67 = vector.broadcast %cst_39 : f32 to vector<4x32xf32>
    %68 = arith.addf %67, %66 : vector<4x32xf32>
    %69 = arith.divf %67, %68 : vector<4x32xf32>
    %70 = vector.extract_strided_slice %53 {offsets = [0, 64], sizes = [4, 32], strides = [1, 1]} : vector<4x96xf32> to vector<4x32xf32>
    %71 = vector.extract_strided_slice %51 {offsets = [0, 64], sizes = [4, 32], strides = [1, 1]} : vector<4x96xf32> to vector<4x32xf32>
    %72 = arith.mulf %61, %71 : vector<4x32xf32>
    %73 = arith.addf %70, %72 : vector<4x32xf32>
    %74 = math.tanh %73 : vector<4x32xf32>
    %cst_40 = arith.constant 1.000000e+00 : f32
    %75 = vector.broadcast %cst_40 : f32 to vector<4x32xf32>
    %76 = arith.subf %75, %69 : vector<4x32xf32>
    %77 = arith.mulf %76, %74 : vector<4x32xf32>
    %78 = arith.mulf %69, %47 : vector<4x32xf32>
    %79 = arith.addf %77, %78 : vector<4x32xf32>
    %80 = tpu.concatenate %79, %48 in 1 : vector<4x32xf32>, vector<4x32xf32> -> vector<4x64xf32>
    %cst_41 = arith.constant dense<0.000000e+00> : vector<4x128xf32>
    %81 = tpu.matmul %80, %0, %cst_41 {dimension_numbers = #tpu.dot_dimension_numbers<[1], [0], [0], [1], [0, 0, 1, 1], [], []>} : vector<4x64xf32>, vector<64x128xf32>, vector<4x128xf32> -> vector<4x128xf32>
    %82 = vector.broadcast %14 : vector<1x128xf32> to vector<4x128xf32>
    %83 = arith.addf %81, %82 : vector<4x128xf32>
    %84 = vector.extract_strided_slice %83 {offsets = [0, 0], sizes = [4, 32], strides = [1, 1]} : vector<4x128xf32> to vector<4x32xf32>
    %85 = arith.negf %84 : vector<4x32xf32>
    %86 = math.exp %85 : vector<4x32xf32>
    %cst_42 = arith.constant 1.000000e+00 : f32
    %87 = vector.broadcast %cst_42 : f32 to vector<4x32xf32>
    %88 = arith.addf %87, %86 : vector<4x32xf32>
    %89 = arith.divf %87, %88 : vector<4x32xf32>
    %90 = vector.extract_strided_slice %83 {offsets = [0, 32], sizes = [4, 32], strides = [1, 1]} : vector<4x128xf32> to vector<4x32xf32>
    %91 = arith.negf %90 : vector<4x32xf32>
    %92 = math.exp %91 : vector<4x32xf32>
    %cst_43 = arith.constant 1.000000e+00 : f32
    %93 = vector.broadcast %cst_43 : f32 to vector<4x32xf32>
    %94 = arith.addf %93, %92 : vector<4x32xf32>
    %95 = arith.divf %93, %94 : vector<4x32xf32>
    %96 = vector.extract_strided_slice %83 {offsets = [0, 64], sizes = [4, 32], strides = [1, 1]} : vector<4x128xf32> to vector<4x32xf32>
    %97 = vector.extract_strided_slice %83 {offsets = [0, 96], sizes = [4, 32], strides = [1, 1]} : vector<4x128xf32> to vector<4x32xf32>
    %98 = arith.mulf %89, %97 : vector<4x32xf32>
    %99 = arith.addf %96, %98 : vector<4x32xf32>
    %100 = math.tanh %99 : vector<4x32xf32>
    %cst_44 = arith.constant 1.000000e+00 : f32
    %101 = vector.broadcast %cst_44 : f32 to vector<4x32xf32>
    %102 = arith.subf %101, %95 : vector<4x32xf32>
    %103 = arith.mulf %102, %100 : vector<4x32xf32>
    %104 = arith.mulf %95, %48 : vector<4x32xf32>
    %105 = arith.addf %103, %104 : vector<4x32xf32>
    %c0_45 = arith.constant 0 : index
    %c0_46 = arith.constant 0 : index
    %c0_47 = arith.constant 0 : index
    %106 = vector.load %arg5[%c0_45, %c0_46, %c0_47] : memref<16x4x32xf32, #tpu.memory_space<vmem>>, vector<1x4x32xf32>
    %107 = vector.shape_cast %106 : vector<1x4x32xf32> to vector<4x32xf32>
    %108 = vector.shape_cast %105 : vector<4x32xf32> to vector<1x4x32xf32>
    tpu.vector_store %arg5[%c0_45, %c0_46, %c0_47], %108 {strides = array<i32>} : memref<16x4x32xf32, #tpu.memory_space<vmem>>, vector<1x4x32xf32>,
    %cst_48 = arith.constant dense<0.000000e+00> : vector<4x96xf32>
    %109 = tpu.matmul %79, %1, %cst_48 {dimension_numbers = #tpu.dot_dimension_numbers<[1], [0], [0], [1], [0, 0, 1, 1], [], []>} : vector<4x32xf32>, vector<32x96xf32>, vector<4x96xf32> -> vector<4x96xf32>
    %110 = vector.broadcast %13 : vector<1x96xf32> to vector<4x96xf32>
    %111 = arith.addf %109, %110 : vector<4x96xf32>
    %c1_49 = arith.constant 1 : index
    %c0_50 = arith.constant 0 : index
    %c0_51 = arith.constant 0 : index
    %112 = vector.load %arg4[%c1_49, %c0_50, %c0_51] : memref<16x4x96xf32, #tpu.memory_space<vmem>>, vector<1x4x96xf32>
    %113 = vector.shape_cast %112 : vector<1x4x96xf32> to vector<4x96xf32>
    %114 = vector.extract_strided_slice %113 {offsets = [0, 0], sizes = [4, 32], strides = [1, 1]} : vector<4x96xf32> to vector<4x32xf32>
    %115 = vector.extract_strided_slice %111 {offsets = [0, 0], sizes = [4, 32], strides = [1, 1]} : vector<4x96xf32> to vector<4x32xf32>
    %116 = arith.addf %114, %115 : vector<4x32xf32>
    %117 = arith.negf %116 : vector<4x32xf32>
    %118 = math.exp %117 : vector<4x32xf32>
    %cst_52 = arith.constant 1.000000e+00 : f32
    %119 = vector.broadcast %cst_52 : f32 to vector<4x32xf32>
    %120 = arith.addf %119, %118 : vector<4x32xf32>
    %121 = arith.divf %119, %120 : vector<4x32xf32>
    %122 = vector.extract_strided_slice %113 {offsets = [0, 32], sizes = [4, 32], strides = [1, 1]} : vector<4x96xf32> to vector<4x32xf32>
    %123 = vector.extract_strided_slice %111 {offsets = [0, 32], sizes = [4, 32], strides = [1, 1]} : vector<4x96xf32> to vector<4x32xf32>
    %124 = arith.addf %122, %123 : vector<4x32xf32>
    %125 = arith.negf %124 : vector<4x32xf32>
    %126 = math.exp %125 : vector<4x32xf32>
    %cst_53 = arith.constant 1.000000e+00 : f32
    %127 = vector.broadcast %cst_53 : f32 to vector<4x32xf32>
    %128 = arith.addf %127, %126 : vector<4x32xf32>
    %129 = arith.divf %127, %128 : vector<4x32xf32>
    %130 = vector.extract_strided_slice %113 {offsets = [0, 64], sizes = [4, 32], strides = [1, 1]} : vector<4x96xf32> to vector<4x32xf32>
    %131 = vector.extract_strided_slice %111 {offsets = [0, 64], sizes = [4, 32], strides = [1, 1]} : vector<4x96xf32> to vector<4x32xf32>
    %132 = arith.mulf %121, %131 : vector<4x32xf32>
    %133 = arith.addf %130, %132 : vector<4x32xf32>
    %134 = math.tanh %133 : vector<4x32xf32>
    %cst_54 = arith.constant 1.000000e+00 : f32
    %135 = vector.broadcast %cst_54 : f32 to vector<4x32xf32>
    %136 = arith.subf %135, %129 : vector<4x32xf32>
    %137 = arith.mulf %136, %134 : vector<4x32xf32>
    %138 = arith.mulf %129, %79 : vector<4x32xf32>
    %139 = arith.addf %137, %138 : vector<4x32xf32>
    %140 = tpu.concatenate %139, %105 in 1 : vector<4x32xf32>, vector<4x32xf32> -> vector<4x64xf32>
    %cst_55 = arith.constant dense<0.000000e+00> : vector<4x128xf32>
    %141 = tpu.matmul %140, %0, %cst_55 {dimension_numbers = #tpu.dot_dimension_numbers<[1], [0], [0], [1], [0, 0, 1, 1], [], []>} : vector<4x64xf32>, vector<64x128xf32>, vector<4x128xf32> -> vector<4x128xf32>
    %142 = vector.broadcast %14 : vector<1x128xf32> to vector<4x128xf32>
    %143 = arith.addf %141, %142 : vector<4x128xf32>
    %144 = vector.extract_strided_slice %143 {offsets = [0, 0], sizes = [4, 32], strides = [1, 1]} : vector<4x128xf32> to vector<4x32xf32>
    %145 = arith.negf %144 : vector<4x32xf32>
    %146 = math.exp %145 : vector<4x32xf32>
    %cst_56 = arith.constant 1.000000e+00 : f32
    %147 = vector.broadcast %cst_56 : f32 to vector<4x32xf32>
    %148 = arith.addf %147, %146 : vector<4x32xf32>
    %149 = arith.divf %147, %148 : vector<4x32xf32>
    %150 = vector.extract_strided_slice %143 {offsets = [0, 32], sizes = [4, 32], strides = [1, 1]} : vector<4x128xf32> to vector<4x32xf32>
    %151 = arith.negf %150 : vector<4x32xf32>
    %152 = math.exp %151 : vector<4x32xf32>
    %cst_57 = arith.constant 1.000000e+00 : f32
    %153 = vector.broadcast %cst_57 : f32 to vector<4x32xf32>
    %154 = arith.addf %153, %152 : vector<4x32xf32>
    %155 = arith.divf %153, %154 : vector<4x32xf32>
    %156 = vector.extract_strided_slice %143 {offsets = [0, 64], sizes = [4, 32], strides = [1, 1]} : vector<4x128xf32> to vector<4x32xf32>
    %157 = vector.extract_strided_slice %143 {offsets = [0, 96], sizes = [4, 32], strides = [1, 1]} : vector<4x128xf32> to vector<4x32xf32>
    %158 = arith.mulf %149, %157 : vector<4x32xf32>
    %159 = arith.addf %156, %158 : vector<4x32xf32>
    %160 = math.tanh %159 : vector<4x32xf32>
    %cst_58 = arith.constant 1.000000e+00 : f32
    %161 = vector.broadcast %cst_58 : f32 to vector<4x32xf32>
    %162 = arith.subf %161, %155 : vector<4x32xf32>
    %163 = arith.mulf %162, %160 : vector<4x32xf32>
    %164 = arith.mulf %155, %105 : vector<4x32xf32>
    %165 = arith.addf %163, %164 : vector<4x32xf32>
    %c1_59 = arith.constant 1 : index
    %c0_60 = arith.constant 0 : index
    %c0_61 = arith.constant 0 : index
    %166 = vector.load %arg5[%c1_59, %c0_60, %c0_61] : memref<16x4x32xf32, #tpu.memory_space<vmem>>, vector<1x4x32xf32>
    %167 = vector.shape_cast %166 : vector<1x4x32xf32> to vector<4x32xf32>
    %168 = vector.shape_cast %165 : vector<4x32xf32> to vector<1x4x32xf32>
    tpu.vector_store %arg5[%c1_59, %c0_60, %c0_61], %168 {strides = array<i32>} : memref<16x4x32xf32, #tpu.memory_space<vmem>>, vector<1x4x32xf32>,
    %cst_62 = arith.constant dense<0.000000e+00> : vector<4x96xf32>
    %169 = tpu.matmul %139, %1, %cst_62 {dimension_numbers = #tpu.dot_dimension_numbers<[1], [0], [0], [1], [0, 0, 1, 1], [], []>} : vector<4x32xf32>, vector<32x96xf32>, vector<4x96xf32> -> vector<4x96xf32>
    %170 = vector.broadcast %13 : vector<1x96xf32> to vector<4x96xf32>
    %171 = arith.addf %169, %170 : vector<4x96xf32>
    %c2_63 = arith.constant 2 : index
    %c0_64 = arith.constant 0 : index
    %c0_65 = arith.constant 0 : index
    %172 = vector.load %arg4[%c2_63, %c0_64, %c0_65] : memref<16x4x96xf32, #tpu.memory_space<vmem>>, vector<1x4x96xf32>
    %173 = vector.shape_cast %172 : vector<1x4x96xf32> to vector<4x96xf32>
    %174 = vector.extract_strided_slice %173 {offsets = [0, 0], sizes = [4, 32], strides = [1, 1]} : vector<4x96xf32> to vector<4x32xf32>
    %175 = vector.extract_strided_slice %171 {offsets = [0, 0], sizes = [4, 32], strides = [1, 1]} : vector<4x96xf32> to vector<4x32xf32>
    %176 = arith.addf %174, %175 : vector<4x32xf32>
    %177 = arith.negf %176 : vector<4x32xf32>
    %178 = math.exp %177 : vector<4x32xf32>
    %cst_66 = arith.constant 1.000000e+00 : f32
    %179 = vector.broadcast %cst_66 : f32 to vector<4x32xf32>
    %180 = arith.addf %179, %178 : vector<4x32xf32>
    %181 = arith.divf %179, %180 : vector<4x32xf32>
    %182 = vector.extract_strided_slice %173 {offsets = [0, 32], sizes = [4, 32], strides = [1, 1]} : vector<4x96xf32> to vector<4x32xf32>
    %183 = vector.extract_strided_slice %171 {offsets = [0, 32], sizes = [4, 32], strides = [1, 1]} : vector<4x96xf32> to vector<4x32xf32>
    %184 = arith.addf %182, %183 : vector<4x32xf32>
    %185 = arith.negf %184 : vector<4x32xf32>
    %186 = math.exp %185 : vector<4x32xf32>
    %cst_67 = arith.constant 1.000000e+00 : f32
    %187 = vector.broadcast %cst_67 : f32 to vector<4x32xf32>
    %188 = arith.addf %187, %186 : vector<4x32xf32>
    %189 = arith.divf %187, %188 : vector<4x32xf32>
    %190 = vector.extract_strided_slice %173 {offsets = [0, 64], sizes = [4, 32], strides = [1, 1]} : vector<4x96xf32> to vector<4x32xf32>
    %191 = vector.extract_strided_slice %171 {offsets = [0, 64], sizes = [4, 32], strides = [1, 1]} : vector<4x96xf32> to vector<4x32xf32>
    %192 = arith.mulf %181, %191 : vector<4x32xf32>
    %193 = arith.addf %190, %192 : vector<4x32xf32>
    %194 = math.tanh %193 : vector<4x32xf32>
    %cst_68 = arith.constant 1.000000e+00 : f32
    %195 = vector.broadcast %cst_68 : f32 to vector<4x32xf32>
    %196 = arith.subf %195, %189 : vector<4x32xf32>
    %197 = arith.mulf %196, %194 : vector<4x32xf32>
    %198 = arith.mulf %189, %139 : vector<4x32xf32>
    %199 = arith.addf %197, %198 : vector<4x32xf32>
    %200 = tpu.concatenate %199, %165 in 1 : vector<4x32xf32>, vector<4x32xf32> -> vector<4x64xf32>
    %cst_69 = arith.constant dense<0.000000e+00> : vector<4x128xf32>
    %201 = tpu.matmul %200, %0, %cst_69 {dimension_numbers = #tpu.dot_dimension_numbers<[1], [0], [0], [1], [0, 0, 1, 1], [], []>} : vector<4x64xf32>, vector<64x128xf32>, vector<4x128xf32> -> vector<4x128xf32>
    %202 = vector.broadcast %14 : vector<1x128xf32> to vector<4x128xf32>
    %203 = arith.addf %201, %202 : vector<4x128xf32>
    %204 = vector.extract_strided_slice %203 {offsets = [0, 0], sizes = [4, 32], strides = [1, 1]} : vector<4x128xf32> to vector<4x32xf32>
    %205 = arith.negf %204 : vector<4x32xf32>
    %206 = math.exp %205 : vector<4x32xf32>
    %cst_70 = arith.constant 1.000000e+00 : f32
    %207 = vector.broadcast %cst_70 : f32 to vector<4x32xf32>
    %208 = arith.addf %207, %206 : vector<4x32xf32>
    %209 = arith.divf %207, %208 : vector<4x32xf32>
    %210 = vector.extract_strided_slice %203 {offsets = [0, 32], sizes = [4, 32], strides = [1, 1]} : vector<4x128xf32> to vector<4x32xf32>
    %211 = arith.negf %210 : vector<4x32xf32>
    %212 = math.exp %211 : vector<4x32xf32>
    %cst_71 = arith.constant 1.000000e+00 : f32
    %213 = vector.broadcast %cst_71 : f32 to vector<4x32xf32>
    %214 = arith.addf %213, %212 : vector<4x32xf32>
    %215 = arith.divf %213, %214 : vector<4x32xf32>
    %216 = vector.extract_strided_slice %203 {offsets = [0, 64], sizes = [4, 32], strides = [1, 1]} : vector<4x128xf32> to vector<4x32xf32>
    %217 = vector.extract_strided_slice %203 {offsets = [0, 96], sizes = [4, 32], strides = [1, 1]} : vector<4x128xf32> to vector<4x32xf32>
    %218 = arith.mulf %209, %217 : vector<4x32xf32>
    %219 = arith.addf %216, %218 : vector<4x32xf32>
    %220 = math.tanh %219 : vector<4x32xf32>
    %cst_72 = arith.constant 1.000000e+00 : f32
    %221 = vector.broadcast %cst_72 : f32 to vector<4x32xf32>
    %222 = arith.subf %221, %215 : vector<4x32xf32>
    %223 = arith.mulf %222, %220 : vector<4x32xf32>
    %224 = arith.mulf %215, %165 : vector<4x32xf32>
    %225 = arith.addf %223, %224 : vector<4x32xf32>
    %c2_73 = arith.constant 2 : index
    %c0_74 = arith.constant 0 : index
    %c0_75 = arith.constant 0 : index
    %226 = vector.load %arg5[%c2_73, %c0_74, %c0_75] : memref<16x4x32xf32, #tpu.memory_space<vmem>>, vector<1x4x32xf32>
    %227 = vector.shape_cast %226 : vector<1x4x32xf32> to vector<4x32xf32>
    %228 = vector.shape_cast %225 : vector<4x32xf32> to vector<1x4x32xf32>
    tpu.vector_store %arg5[%c2_73, %c0_74, %c0_75], %228 {strides = array<i32>} : memref<16x4x32xf32, #tpu.memory_space<vmem>>, vector<1x4x32xf32>,
    %cst_76 = arith.constant dense<0.000000e+00> : vector<4x96xf32>
    %229 = tpu.matmul %199, %1, %cst_76 {dimension_numbers = #tpu.dot_dimension_numbers<[1], [0], [0], [1], [0, 0, 1, 1], [], []>} : vector<4x32xf32>, vector<32x96xf32>, vector<4x96xf32> -> vector<4x96xf32>
    %230 = vector.broadcast %13 : vector<1x96xf32> to vector<4x96xf32>
    %231 = arith.addf %229, %230 : vector<4x96xf32>
    %c3_77 = arith.constant 3 : index
    %c0_78 = arith.constant 0 : index
    %c0_79 = arith.constant 0 : index
    %232 = vector.load %arg4[%c3_77, %c0_78, %c0_79] : memref<16x4x96xf32, #tpu.memory_space<vmem>>, vector<1x4x96xf32>
    %233 = vector.shape_cast %232 : vector<1x4x96xf32> to vector<4x96xf32>
    %234 = vector.extract_strided_slice %233 {offsets = [0, 0], sizes = [4, 32], strides = [1, 1]} : vector<4x96xf32> to vector<4x32xf32>
    %235 = vector.extract_strided_slice %231 {offsets = [0, 0], sizes = [4, 32], strides = [1, 1]} : vector<4x96xf32> to vector<4x32xf32>
    %236 = arith.addf %234, %235 : vector<4x32xf32>
    %237 = arith.negf %236 : vector<4x32xf32>
    %238 = math.exp %237 : vector<4x32xf32>
    %cst_80 = arith.constant 1.000000e+00 : f32
    %239 = vector.broadcast %cst_80 : f32 to vector<4x32xf32>
    %240 = arith.addf %239, %238 : vector<4x32xf32>
    %241 = arith.divf %239, %240 : vector<4x32xf32>
    %242 = vector.extract_strided_slice %233 {offsets = [0, 32], sizes = [4, 32], strides = [1, 1]} : vector<4x96xf32> to vector<4x32xf32>
    %243 = vector.extract_strided_slice %231 {offsets = [0, 32], sizes = [4, 32], strides = [1, 1]} : vector<4x96xf32> to vector<4x32xf32>
    %244 = arith.addf %242, %243 : vector<4x32xf32>
    %245 = arith.negf %244 : vector<4x32xf32>
    %246 = math.exp %245 : vector<4x32xf32>
    %cst_81 = arith.constant 1.000000e+00 : f32
    %247 = vector.broadcast %cst_81 : f32 to vector<4x32xf32>
    %248 = arith.addf %247, %246 : vector<4x32xf32>
    %249 = arith.divf %247, %248 : vector<4x32xf32>
    %250 = vector.extract_strided_slice %233 {offsets = [0, 64], sizes = [4, 32], strides = [1, 1]} : vector<4x96xf32> to vector<4x32xf32>
    %251 = vector.extract_strided_slice %231 {offsets = [0, 64], sizes = [4, 32], strides = [1, 1]} : vector<4x96xf32> to vector<4x32xf32>
    %252 = arith.mulf %241, %251 : vector<4x32xf32>
    %253 = arith.addf %250, %252 : vector<4x32xf32>
    %254 = math.tanh %253 : vector<4x32xf32>
    %cst_82 = arith.constant 1.000000e+00 : f32
    %255 = vector.broadcast %cst_82 : f32 to vector<4x32xf32>
    %256 = arith.subf %255, %249 : vector<4x32xf32>
    %257 = arith.mulf %256, %254 : vector<4x32xf32>
    %258 = arith.mulf %249, %199 : vector<4x32xf32>
    %259 = arith.addf %257, %258 : vector<4x32xf32>
    %260 = tpu.concatenate %259, %225 in 1 : vector<4x32xf32>, vector<4x32xf32> -> vector<4x64xf32>
    %cst_83 = arith.constant dense<0.000000e+00> : vector<4x128xf32>
    %261 = tpu.matmul %260, %0, %cst_83 {dimension_numbers = #tpu.dot_dimension_numbers<[1], [0], [0], [1], [0, 0, 1, 1], [], []>} : vector<4x64xf32>, vector<64x128xf32>, vector<4x128xf32> -> vector<4x128xf32>
    %262 = vector.broadcast %14 : vector<1x128xf32> to vector<4x128xf32>
    %263 = arith.addf %261, %262 : vector<4x128xf32>
    %264 = vector.extract_strided_slice %263 {offsets = [0, 0], sizes = [4, 32], strides = [1, 1]} : vector<4x128xf32> to vector<4x32xf32>
    %265 = arith.negf %264 : vector<4x32xf32>
    %266 = math.exp %265 : vector<4x32xf32>
    %cst_84 = arith.constant 1.000000e+00 : f32
    %267 = vector.broadcast %cst_84 : f32 to vector<4x32xf32>
    %268 = arith.addf %267, %266 : vector<4x32xf32>
    %269 = arith.divf %267, %268 : vector<4x32xf32>
    %270 = vector.extract_strided_slice %263 {offsets = [0, 32], sizes = [4, 32], strides = [1, 1]} : vector<4x128xf32> to vector<4x32xf32>
    %271 = arith.negf %270 : vector<4x32xf32>
    %272 = math.exp %271 : vector<4x32xf32>
    %cst_85 = arith.constant 1.000000e+00 : f32
    %273 = vector.broadcast %cst_85 : f32 to vector<4x32xf32>
    %274 = arith.addf %273, %272 : vector<4x32xf32>
    %275 = arith.divf %273, %274 : vector<4x32xf32>
    %276 = vector.extract_strided_slice %263 {offsets = [0, 64], sizes = [4, 32], strides = [1, 1]} : vector<4x128xf32> to vector<4x32xf32>
    %277 = vector.extract_strided_slice %263 {offsets = [0, 96], sizes = [4, 32], strides = [1, 1]} : vector<4x128xf32> to vector<4x32xf32>
    %278 = arith.mulf %269, %277 : vector<4x32xf32>
    %279 = arith.addf %276, %278 : vector<4x32xf32>
    %280 = math.tanh %279 : vector<4x32xf32>
    %cst_86 = arith.constant 1.000000e+00 : f32
    %281 = vector.broadcast %cst_86 : f32 to vector<4x32xf32>
    %282 = arith.subf %281, %275 : vector<4x32xf32>
    %283 = arith.mulf %282, %280 : vector<4x32xf32>
    %284 = arith.mulf %275, %225 : vector<4x32xf32>
    %285 = arith.addf %283, %284 : vector<4x32xf32>
    %c3_87 = arith.constant 3 : index
    %c0_88 = arith.constant 0 : index
    %c0_89 = arith.constant 0 : index
    %286 = vector.load %arg5[%c3_87, %c0_88, %c0_89] : memref<16x4x32xf32, #tpu.memory_space<vmem>>, vector<1x4x32xf32>
    %287 = vector.shape_cast %286 : vector<1x4x32xf32> to vector<4x32xf32>
    %288 = vector.shape_cast %285 : vector<4x32xf32> to vector<1x4x32xf32>
    tpu.vector_store %arg5[%c3_87, %c0_88, %c0_89], %288 {strides = array<i32>} : memref<16x4x32xf32, #tpu.memory_space<vmem>>, vector<1x4x32xf32>,
    %cst_90 = arith.constant dense<0.000000e+00> : vector<4x96xf32>
    %289 = tpu.matmul %259, %1, %cst_90 {dimension_numbers = #tpu.dot_dimension_numbers<[1], [0], [0], [1], [0, 0, 1, 1], [], []>} : vector<4x32xf32>, vector<32x96xf32>, vector<4x96xf32> -> vector<4x96xf32>
    %290 = vector.broadcast %13 : vector<1x96xf32> to vector<4x96xf32>
    %291 = arith.addf %289, %290 : vector<4x96xf32>
    %c4_91 = arith.constant 4 : index
    %c0_92 = arith.constant 0 : index
    %c0_93 = arith.constant 0 : index
    %292 = vector.load %arg4[%c4_91, %c0_92, %c0_93] : memref<16x4x96xf32, #tpu.memory_space<vmem>>, vector<1x4x96xf32>
    %293 = vector.shape_cast %292 : vector<1x4x96xf32> to vector<4x96xf32>
    %294 = vector.extract_strided_slice %293 {offsets = [0, 0], sizes = [4, 32], strides = [1, 1]} : vector<4x96xf32> to vector<4x32xf32>
    %295 = vector.extract_strided_slice %291 {offsets = [0, 0], sizes = [4, 32], strides = [1, 1]} : vector<4x96xf32> to vector<4x32xf32>
    %296 = arith.addf %294, %295 : vector<4x32xf32>
    %297 = arith.negf %296 : vector<4x32xf32>
    %298 = math.exp %297 : vector<4x32xf32>
    %cst_94 = arith.constant 1.000000e+00 : f32
    %299 = vector.broadcast %cst_94 : f32 to vector<4x32xf32>
    %300 = arith.addf %299, %298 : vector<4x32xf32>
    %301 = arith.divf %299, %300 : vector<4x32xf32>
    %302 = vector.extract_strided_slice %293 {offsets = [0, 32], sizes = [4, 32], strides = [1, 1]} : vector<4x96xf32> to vector<4x32xf32>
    %303 = vector.extract_strided_slice %291 {offsets = [0, 32], sizes = [4, 32], strides = [1, 1]} : vector<4x96xf32> to vector<4x32xf32>
    %304 = arith.addf %302, %303 : vector<4x32xf32>
    %305 = arith.negf %304 : vector<4x32xf32>
    %306 = math.exp %305 : vector<4x32xf32>
    %cst_95 = arith.constant 1.000000e+00 : f32
    %307 = vector.broadcast %cst_95 : f32 to vector<4x32xf32>
    %308 = arith.addf %307, %306 : vector<4x32xf32>
    %309 = arith.divf %307, %308 : vector<4x32xf32>
    %310 = vector.extract_strided_slice %293 {offsets = [0, 64], sizes = [4, 32], strides = [1, 1]} : vector<4x96xf32> to vector<4x32xf32>
    %311 = vector.extract_strided_slice %291 {offsets = [0, 64], sizes = [4, 32], strides = [1, 1]} : vector<4x96xf32> to vector<4x32xf32>
    %312 = arith.mulf %301, %311 : vector<4x32xf32>
    %313 = arith.addf %310, %312 : vector<4x32xf32>
    %314 = math.tanh %313 : vector<4x32xf32>
    %cst_96 = arith.constant 1.000000e+00 : f32
    %315 = vector.broadcast %cst_96 : f32 to vector<4x32xf32>
    %316 = arith.subf %315, %309 : vector<4x32xf32>
    %317 = arith.mulf %316, %314 : vector<4x32xf32>
    %318 = arith.mulf %309, %259 : vector<4x32xf32>
    %319 = arith.addf %317, %318 : vector<4x32xf32>
    %320 = tpu.concatenate %319, %285 in 1 : vector<4x32xf32>, vector<4x32xf32> -> vector<4x64xf32>
    %cst_97 = arith.constant dense<0.000000e+00> : vector<4x128xf32>
    %321 = tpu.matmul %320, %0, %cst_97 {dimension_numbers = #tpu.dot_dimension_numbers<[1], [0], [0], [1], [0, 0, 1, 1], [], []>} : vector<4x64xf32>, vector<64x128xf32>, vector<4x128xf32> -> vector<4x128xf32>
    %322 = vector.broadcast %14 : vector<1x128xf32> to vector<4x128xf32>
    %323 = arith.addf %321, %322 : vector<4x128xf32>
    %324 = vector.extract_strided_slice %323 {offsets = [0, 0], sizes = [4, 32], strides = [1, 1]} : vector<4x128xf32> to vector<4x32xf32>
    %325 = arith.negf %324 : vector<4x32xf32>
    %326 = math.exp %325 : vector<4x32xf32>
    %cst_98 = arith.constant 1.000000e+00 : f32
    %327 = vector.broadcast %cst_98 : f32 to vector<4x32xf32>
    %328 = arith.addf %327, %326 : vector<4x32xf32>
    %329 = arith.divf %327, %328 : vector<4x32xf32>
    %330 = vector.extract_strided_slice %323 {offsets = [0, 32], sizes = [4, 32], strides = [1, 1]} : vector<4x128xf32> to vector<4x32xf32>
    %331 = arith.negf %330 : vector<4x32xf32>
    %332 = math.exp %331 : vector<4x32xf32>
    %cst_99 = arith.constant 1.000000e+00 : f32
    %333 = vector.broadcast %cst_99 : f32 to vector<4x32xf32>
    %334 = arith.addf %333, %332 : vector<4x32xf32>
    %335 = arith.divf %333, %334 : vector<4x32xf32>
    %336 = vector.extract_strided_slice %323 {offsets = [0, 64], sizes = [4, 32], strides = [1, 1]} : vector<4x128xf32> to vector<4x32xf32>
    %337 = vector.extract_strided_slice %323 {offsets = [0, 96], sizes = [4, 32], strides = [1, 1]} : vector<4x128xf32> to vector<4x32xf32>
    %338 = arith.mulf %329, %337 : vector<4x32xf32>
    %339 = arith.addf %336, %338 : vector<4x32xf32>
    %340 = math.tanh %339 : vector<4x32xf32>
    %cst_100 = arith.constant 1.000000e+00 : f32
    %341 = vector.broadcast %cst_100 : f32 to vector<4x32xf32>
    %342 = arith.subf %341, %335 : vector<4x32xf32>
    %343 = arith.mulf %342, %340 : vector<4x32xf32>
    %344 = arith.mulf %335, %285 : vector<4x32xf32>
    %345 = arith.addf %343, %344 : vector<4x32xf32>
    %c4_101 = arith.constant 4 : index
    %c0_102 = arith.constant 0 : index
    %c0_103 = arith.constant 0 : index
    %346 = vector.load %arg5[%c4_101, %c0_102, %c0_103] : memref<16x4x32xf32, #tpu.memory_space<vmem>>, vector<1x4x32xf32>
    %347 = vector.shape_cast %346 : vector<1x4x32xf32> to vector<4x32xf32>
    %348 = vector.shape_cast %345 : vector<4x32xf32> to vector<1x4x32xf32>
    tpu.vector_store %arg5[%c4_101, %c0_102, %c0_103], %348 {strides = array<i32>} : memref<16x4x32xf32, #tpu.memory_space<vmem>>, vector<1x4x32xf32>,
    %cst_104 = arith.constant dense<0.000000e+00> : vector<4x96xf32>
    %349 = tpu.matmul %319, %1, %cst_104 {dimension_numbers = #tpu.dot_dimension_numbers<[1], [0], [0], [1], [0, 0, 1, 1], [], []>} : vector<4x32xf32>, vector<32x96xf32>, vector<4x96xf32> -> vector<4x96xf32>
    %350 = vector.broadcast %13 : vector<1x96xf32> to vector<4x96xf32>
    %351 = arith.addf %349, %350 : vector<4x96xf32>
    %c5 = arith.constant 5 : index
    %c0_105 = arith.constant 0 : index
    %c0_106 = arith.constant 0 : index
    %352 = vector.load %arg4[%c5, %c0_105, %c0_106] : memref<16x4x96xf32, #tpu.memory_space<vmem>>, vector<1x4x96xf32>
    %353 = vector.shape_cast %352 : vector<1x4x96xf32> to vector<4x96xf32>
    %354 = vector.extract_strided_slice %353 {offsets = [0, 0], sizes = [4, 32], strides = [1, 1]} : vector<4x96xf32> to vector<4x32xf32>
    %355 = vector.extract_strided_slice %351 {offsets = [0, 0], sizes = [4, 32], strides = [1, 1]} : vector<4x96xf32> to vector<4x32xf32>
    %356 = arith.addf %354, %355 : vector<4x32xf32>
    %357 = arith.negf %356 : vector<4x32xf32>
    %358 = math.exp %357 : vector<4x32xf32>
    %cst_107 = arith.constant 1.000000e+00 : f32
    %359 = vector.broadcast %cst_107 : f32 to vector<4x32xf32>
    %360 = arith.addf %359, %358 : vector<4x32xf32>
    %361 = arith.divf %359, %360 : vector<4x32xf32>
    %362 = vector.extract_strided_slice %353 {offsets = [0, 32], sizes = [4, 32], strides = [1, 1]} : vector<4x96xf32> to vector<4x32xf32>
    %363 = vector.extract_strided_slice %351 {offsets = [0, 32], sizes = [4, 32], strides = [1, 1]} : vector<4x96xf32> to vector<4x32xf32>
    %364 = arith.addf %362, %363 : vector<4x32xf32>
    %365 = arith.negf %364 : vector<4x32xf32>
    %366 = math.exp %365 : vector<4x32xf32>
    %cst_108 = arith.constant 1.000000e+00 : f32
    %367 = vector.broadcast %cst_108 : f32 to vector<4x32xf32>
    %368 = arith.addf %367, %366 : vector<4x32xf32>
    %369 = arith.divf %367, %368 : vector<4x32xf32>
    %370 = vector.extract_strided_slice %353 {offsets = [0, 64], sizes = [4, 32], strides = [1, 1]} : vector<4x96xf32> to vector<4x32xf32>
    %371 = vector.extract_strided_slice %351 {offsets = [0, 64], sizes = [4, 32], strides = [1, 1]} : vector<4x96xf32> to vector<4x32xf32>
    %372 = arith.mulf %361, %371 : vector<4x32xf32>
    %373 = arith.addf %370, %372 : vector<4x32xf32>
    %374 = math.tanh %373 : vector<4x32xf32>
    %cst_109 = arith.constant 1.000000e+00 : f32
    %375 = vector.broadcast %cst_109 : f32 to vector<4x32xf32>
    %376 = arith.subf %375, %369 : vector<4x32xf32>
    %377 = arith.mulf %376, %374 : vector<4x32xf32>
    %378 = arith.mulf %369, %319 : vector<4x32xf32>
    %379 = arith.addf %377, %378 : vector<4x32xf32>
    %380 = tpu.concatenate %379, %345 in 1 : vector<4x32xf32>, vector<4x32xf32> -> vector<4x64xf32>
    %cst_110 = arith.constant dense<0.000000e+00> : vector<4x128xf32>
    %381 = tpu.matmul %380, %0, %cst_110 {dimension_numbers = #tpu.dot_dimension_numbers<[1], [0], [0], [1], [0, 0, 1, 1], [], []>} : vector<4x64xf32>, vector<64x128xf32>, vector<4x128xf32> -> vector<4x128xf32>
    %382 = vector.broadcast %14 : vector<1x128xf32> to vector<4x128xf32>
    %383 = arith.addf %381, %382 : vector<4x128xf32>
    %384 = vector.extract_strided_slice %383 {offsets = [0, 0], sizes = [4, 32], strides = [1, 1]} : vector<4x128xf32> to vector<4x32xf32>
    %385 = arith.negf %384 : vector<4x32xf32>
    %386 = math.exp %385 : vector<4x32xf32>
    %cst_111 = arith.constant 1.000000e+00 : f32
    %387 = vector.broadcast %cst_111 : f32 to vector<4x32xf32>
    %388 = arith.addf %387, %386 : vector<4x32xf32>
    %389 = arith.divf %387, %388 : vector<4x32xf32>
    %390 = vector.extract_strided_slice %383 {offsets = [0, 32], sizes = [4, 32], strides = [1, 1]} : vector<4x128xf32> to vector<4x32xf32>
    %391 = arith.negf %390 : vector<4x32xf32>
    %392 = math.exp %391 : vector<4x32xf32>
    %cst_112 = arith.constant 1.000000e+00 : f32
    %393 = vector.broadcast %cst_112 : f32 to vector<4x32xf32>
    %394 = arith.addf %393, %392 : vector<4x32xf32>
    %395 = arith.divf %393, %394 : vector<4x32xf32>
    %396 = vector.extract_strided_slice %383 {offsets = [0, 64], sizes = [4, 32], strides = [1, 1]} : vector<4x128xf32> to vector<4x32xf32>
    %397 = vector.extract_strided_slice %383 {offsets = [0, 96], sizes = [4, 32], strides = [1, 1]} : vector<4x128xf32> to vector<4x32xf32>
    %398 = arith.mulf %389, %397 : vector<4x32xf32>
    %399 = arith.addf %396, %398 : vector<4x32xf32>
    %400 = math.tanh %399 : vector<4x32xf32>
    %cst_113 = arith.constant 1.000000e+00 : f32
    %401 = vector.broadcast %cst_113 : f32 to vector<4x32xf32>
    %402 = arith.subf %401, %395 : vector<4x32xf32>
    %403 = arith.mulf %402, %400 : vector<4x32xf32>
    %404 = arith.mulf %395, %345 : vector<4x32xf32>
    %405 = arith.addf %403, %404 : vector<4x32xf32>
    %c5_114 = arith.constant 5 : index
    %c0_115 = arith.constant 0 : index
    %c0_116 = arith.constant 0 : index
    %406 = vector.load %arg5[%c5_114, %c0_115, %c0_116] : memref<16x4x32xf32, #tpu.memory_space<vmem>>, vector<1x4x32xf32>
    %407 = vector.shape_cast %406 : vector<1x4x32xf32> to vector<4x32xf32>
    %408 = vector.shape_cast %405 : vector<4x32xf32> to vector<1x4x32xf32>
    tpu.vector_store %arg5[%c5_114, %c0_115, %c0_116], %408 {strides = array<i32>} : memref<16x4x32xf32, #tpu.memory_space<vmem>>, vector<1x4x32xf32>,
    %cst_117 = arith.constant dense<0.000000e+00> : vector<4x96xf32>
    %409 = tpu.matmul %379, %1, %cst_117 {dimension_numbers = #tpu.dot_dimension_numbers<[1], [0], [0], [1], [0, 0, 1, 1], [], []>} : vector<4x32xf32>, vector<32x96xf32>, vector<4x96xf32> -> vector<4x96xf32>
    %410 = vector.broadcast %13 : vector<1x96xf32> to vector<4x96xf32>
    %411 = arith.addf %409, %410 : vector<4x96xf32>
    %c6 = arith.constant 6 : index
    %c0_118 = arith.constant 0 : index
    %c0_119 = arith.constant 0 : index
    %412 = vector.load %arg4[%c6, %c0_118, %c0_119] : memref<16x4x96xf32, #tpu.memory_space<vmem>>, vector<1x4x96xf32>
    %413 = vector.shape_cast %412 : vector<1x4x96xf32> to vector<4x96xf32>
    %414 = vector.extract_strided_slice %413 {offsets = [0, 0], sizes = [4, 32], strides = [1, 1]} : vector<4x96xf32> to vector<4x32xf32>
    %415 = vector.extract_strided_slice %411 {offsets = [0, 0], sizes = [4, 32], strides = [1, 1]} : vector<4x96xf32> to vector<4x32xf32>
    %416 = arith.addf %414, %415 : vector<4x32xf32>
    %417 = arith.negf %416 : vector<4x32xf32>
    %418 = math.exp %417 : vector<4x32xf32>
    %cst_120 = arith.constant 1.000000e+00 : f32
    %419 = vector.broadcast %cst_120 : f32 to vector<4x32xf32>
    %420 = arith.addf %419, %418 : vector<4x32xf32>
    %421 = arith.divf %419, %420 : vector<4x32xf32>
    %422 = vector.extract_strided_slice %413 {offsets = [0, 32], sizes = [4, 32], strides = [1, 1]} : vector<4x96xf32> to vector<4x32xf32>
    %423 = vector.extract_strided_slice %411 {offsets = [0, 32], sizes = [4, 32], strides = [1, 1]} : vector<4x96xf32> to vector<4x32xf32>
    %424 = arith.addf %422, %423 : vector<4x32xf32>
    %425 = arith.negf %424 : vector<4x32xf32>
    %426 = math.exp %425 : vector<4x32xf32>
    %cst_121 = arith.constant 1.000000e+00 : f32
    %427 = vector.broadcast %cst_121 : f32 to vector<4x32xf32>
    %428 = arith.addf %427, %426 : vector<4x32xf32>
    %429 = arith.divf %427, %428 : vector<4x32xf32>
    %430 = vector.extract_strided_slice %413 {offsets = [0, 64], sizes = [4, 32], strides = [1, 1]} : vector<4x96xf32> to vector<4x32xf32>
    %431 = vector.extract_strided_slice %411 {offsets = [0, 64], sizes = [4, 32], strides = [1, 1]} : vector<4x96xf32> to vector<4x32xf32>
    %432 = arith.mulf %421, %431 : vector<4x32xf32>
    %433 = arith.addf %430, %432 : vector<4x32xf32>
    %434 = math.tanh %433 : vector<4x32xf32>
    %cst_122 = arith.constant 1.000000e+00 : f32
    %435 = vector.broadcast %cst_122 : f32 to vector<4x32xf32>
    %436 = arith.subf %435, %429 : vector<4x32xf32>
    %437 = arith.mulf %436, %434 : vector<4x32xf32>
    %438 = arith.mulf %429, %379 : vector<4x32xf32>
    %439 = arith.addf %437, %438 : vector<4x32xf32>
    %440 = tpu.concatenate %439, %405 in 1 : vector<4x32xf32>, vector<4x32xf32> -> vector<4x64xf32>
    %cst_123 = arith.constant dense<0.000000e+00> : vector<4x128xf32>
    %441 = tpu.matmul %440, %0, %cst_123 {dimension_numbers = #tpu.dot_dimension_numbers<[1], [0], [0], [1], [0, 0, 1, 1], [], []>} : vector<4x64xf32>, vector<64x128xf32>, vector<4x128xf32> -> vector<4x128xf32>
    %442 = vector.broadcast %14 : vector<1x128xf32> to vector<4x128xf32>
    %443 = arith.addf %441, %442 : vector<4x128xf32>
    %444 = vector.extract_strided_slice %443 {offsets = [0, 0], sizes = [4, 32], strides = [1, 1]} : vector<4x128xf32> to vector<4x32xf32>
    %445 = arith.negf %444 : vector<4x32xf32>
    %446 = math.exp %445 : vector<4x32xf32>
    %cst_124 = arith.constant 1.000000e+00 : f32
    %447 = vector.broadcast %cst_124 : f32 to vector<4x32xf32>
    %448 = arith.addf %447, %446 : vector<4x32xf32>
    %449 = arith.divf %447, %448 : vector<4x32xf32>
    %450 = vector.extract_strided_slice %443 {offsets = [0, 32], sizes = [4, 32], strides = [1, 1]} : vector<4x128xf32> to vector<4x32xf32>
    %451 = arith.negf %450 : vector<4x32xf32>
    %452 = math.exp %451 : vector<4x32xf32>
    %cst_125 = arith.constant 1.000000e+00 : f32
    %453 = vector.broadcast %cst_125 : f32 to vector<4x32xf32>
    %454 = arith.addf %453, %452 : vector<4x32xf32>
    %455 = arith.divf %453, %454 : vector<4x32xf32>
    %456 = vector.extract_strided_slice %443 {offsets = [0, 64], sizes = [4, 32], strides = [1, 1]} : vector<4x128xf32> to vector<4x32xf32>
    %457 = vector.extract_strided_slice %443 {offsets = [0, 96], sizes = [4, 32], strides = [1, 1]} : vector<4x128xf32> to vector<4x32xf32>
    %458 = arith.mulf %449, %457 : vector<4x32xf32>
    %459 = arith.addf %456, %458 : vector<4x32xf32>
    %460 = math.tanh %459 : vector<4x32xf32>
    %cst_126 = arith.constant 1.000000e+00 : f32
    %461 = vector.broadcast %cst_126 : f32 to vector<4x32xf32>
    %462 = arith.subf %461, %455 : vector<4x32xf32>
    %463 = arith.mulf %462, %460 : vector<4x32xf32>
    %464 = arith.mulf %455, %405 : vector<4x32xf32>
    %465 = arith.addf %463, %464 : vector<4x32xf32>
    %c6_127 = arith.constant 6 : index
    %c0_128 = arith.constant 0 : index
    %c0_129 = arith.constant 0 : index
    %466 = vector.load %arg5[%c6_127, %c0_128, %c0_129] : memref<16x4x32xf32, #tpu.memory_space<vmem>>, vector<1x4x32xf32>
    %467 = vector.shape_cast %466 : vector<1x4x32xf32> to vector<4x32xf32>
    %468 = vector.shape_cast %465 : vector<4x32xf32> to vector<1x4x32xf32>
    tpu.vector_store %arg5[%c6_127, %c0_128, %c0_129], %468 {strides = array<i32>} : memref<16x4x32xf32, #tpu.memory_space<vmem>>, vector<1x4x32xf32>,
    %cst_130 = arith.constant dense<0.000000e+00> : vector<4x96xf32>
    %469 = tpu.matmul %439, %1, %cst_130 {dimension_numbers = #tpu.dot_dimension_numbers<[1], [0], [0], [1], [0, 0, 1, 1], [], []>} : vector<4x32xf32>, vector<32x96xf32>, vector<4x96xf32> -> vector<4x96xf32>
    %470 = vector.broadcast %13 : vector<1x96xf32> to vector<4x96xf32>
    %471 = arith.addf %469, %470 : vector<4x96xf32>
    %c7 = arith.constant 7 : index
    %c0_131 = arith.constant 0 : index
    %c0_132 = arith.constant 0 : index
    %472 = vector.load %arg4[%c7, %c0_131, %c0_132] : memref<16x4x96xf32, #tpu.memory_space<vmem>>, vector<1x4x96xf32>
    %473 = vector.shape_cast %472 : vector<1x4x96xf32> to vector<4x96xf32>
    %474 = vector.extract_strided_slice %473 {offsets = [0, 0], sizes = [4, 32], strides = [1, 1]} : vector<4x96xf32> to vector<4x32xf32>
    %475 = vector.extract_strided_slice %471 {offsets = [0, 0], sizes = [4, 32], strides = [1, 1]} : vector<4x96xf32> to vector<4x32xf32>
    %476 = arith.addf %474, %475 : vector<4x32xf32>
    %477 = arith.negf %476 : vector<4x32xf32>
    %478 = math.exp %477 : vector<4x32xf32>
    %cst_133 = arith.constant 1.000000e+00 : f32
    %479 = vector.broadcast %cst_133 : f32 to vector<4x32xf32>
    %480 = arith.addf %479, %478 : vector<4x32xf32>
    %481 = arith.divf %479, %480 : vector<4x32xf32>
    %482 = vector.extract_strided_slice %473 {offsets = [0, 32], sizes = [4, 32], strides = [1, 1]} : vector<4x96xf32> to vector<4x32xf32>
    %483 = vector.extract_strided_slice %471 {offsets = [0, 32], sizes = [4, 32], strides = [1, 1]} : vector<4x96xf32> to vector<4x32xf32>
    %484 = arith.addf %482, %483 : vector<4x32xf32>
    %485 = arith.negf %484 : vector<4x32xf32>
    %486 = math.exp %485 : vector<4x32xf32>
    %cst_134 = arith.constant 1.000000e+00 : f32
    %487 = vector.broadcast %cst_134 : f32 to vector<4x32xf32>
    %488 = arith.addf %487, %486 : vector<4x32xf32>
    %489 = arith.divf %487, %488 : vector<4x32xf32>
    %490 = vector.extract_strided_slice %473 {offsets = [0, 64], sizes = [4, 32], strides = [1, 1]} : vector<4x96xf32> to vector<4x32xf32>
    %491 = vector.extract_strided_slice %471 {offsets = [0, 64], sizes = [4, 32], strides = [1, 1]} : vector<4x96xf32> to vector<4x32xf32>
    %492 = arith.mulf %481, %491 : vector<4x32xf32>
    %493 = arith.addf %490, %492 : vector<4x32xf32>
    %494 = math.tanh %493 : vector<4x32xf32>
    %cst_135 = arith.constant 1.000000e+00 : f32
    %495 = vector.broadcast %cst_135 : f32 to vector<4x32xf32>
    %496 = arith.subf %495, %489 : vector<4x32xf32>
    %497 = arith.mulf %496, %494 : vector<4x32xf32>
    %498 = arith.mulf %489, %439 : vector<4x32xf32>
    %499 = arith.addf %497, %498 : vector<4x32xf32>
    %500 = tpu.concatenate %499, %465 in 1 : vector<4x32xf32>, vector<4x32xf32> -> vector<4x64xf32>
    %cst_136 = arith.constant dense<0.000000e+00> : vector<4x128xf32>
    %501 = tpu.matmul %500, %0, %cst_136 {dimension_numbers = #tpu.dot_dimension_numbers<[1], [0], [0], [1], [0, 0, 1, 1], [], []>} : vector<4x64xf32>, vector<64x128xf32>, vector<4x128xf32> -> vector<4x128xf32>
    %502 = vector.broadcast %14 : vector<1x128xf32> to vector<4x128xf32>
    %503 = arith.addf %501, %502 : vector<4x128xf32>
    %504 = vector.extract_strided_slice %503 {offsets = [0, 0], sizes = [4, 32], strides = [1, 1]} : vector<4x128xf32> to vector<4x32xf32>
    %505 = arith.negf %504 : vector<4x32xf32>
    %506 = math.exp %505 : vector<4x32xf32>
    %cst_137 = arith.constant 1.000000e+00 : f32
    %507 = vector.broadcast %cst_137 : f32 to vector<4x32xf32>
    %508 = arith.addf %507, %506 : vector<4x32xf32>
    %509 = arith.divf %507, %508 : vector<4x32xf32>
    %510 = vector.extract_strided_slice %503 {offsets = [0, 32], sizes = [4, 32], strides = [1, 1]} : vector<4x128xf32> to vector<4x32xf32>
    %511 = arith.negf %510 : vector<4x32xf32>
    %512 = math.exp %511 : vector<4x32xf32>
    %cst_138 = arith.constant 1.000000e+00 : f32
    %513 = vector.broadcast %cst_138 : f32 to vector<4x32xf32>
    %514 = arith.addf %513, %512 : vector<4x32xf32>
    %515 = arith.divf %513, %514 : vector<4x32xf32>
    %516 = vector.extract_strided_slice %503 {offsets = [0, 64], sizes = [4, 32], strides = [1, 1]} : vector<4x128xf32> to vector<4x32xf32>
    %517 = vector.extract_strided_slice %503 {offsets = [0, 96], sizes = [4, 32], strides = [1, 1]} : vector<4x128xf32> to vector<4x32xf32>
    %518 = arith.mulf %509, %517 : vector<4x32xf32>
    %519 = arith.addf %516, %518 : vector<4x32xf32>
    %520 = math.tanh %519 : vector<4x32xf32>
    %cst_139 = arith.constant 1.000000e+00 : f32
    %521 = vector.broadcast %cst_139 : f32 to vector<4x32xf32>
    %522 = arith.subf %521, %515 : vector<4x32xf32>
    %523 = arith.mulf %522, %520 : vector<4x32xf32>
    %524 = arith.mulf %515, %465 : vector<4x32xf32>
    %525 = arith.addf %523, %524 : vector<4x32xf32>
    %c7_140 = arith.constant 7 : index
    %c0_141 = arith.constant 0 : index
    %c0_142 = arith.constant 0 : index
    %526 = vector.load %arg5[%c7_140, %c0_141, %c0_142] : memref<16x4x32xf32, #tpu.memory_space<vmem>>, vector<1x4x32xf32>
    %527 = vector.shape_cast %526 : vector<1x4x32xf32> to vector<4x32xf32>
    %528 = vector.shape_cast %525 : vector<4x32xf32> to vector<1x4x32xf32>
    tpu.vector_store %arg5[%c7_140, %c0_141, %c0_142], %528 {strides = array<i32>} : memref<16x4x32xf32, #tpu.memory_space<vmem>>, vector<1x4x32xf32>,
    %cst_143 = arith.constant dense<0.000000e+00> : vector<4x96xf32>
    %529 = tpu.matmul %499, %1, %cst_143 {dimension_numbers = #tpu.dot_dimension_numbers<[1], [0], [0], [1], [0, 0, 1, 1], [], []>} : vector<4x32xf32>, vector<32x96xf32>, vector<4x96xf32> -> vector<4x96xf32>
    %530 = vector.broadcast %13 : vector<1x96xf32> to vector<4x96xf32>
    %531 = arith.addf %529, %530 : vector<4x96xf32>
    %c8 = arith.constant 8 : index
    %c0_144 = arith.constant 0 : index
    %c0_145 = arith.constant 0 : index
    %532 = vector.load %arg4[%c8, %c0_144, %c0_145] : memref<16x4x96xf32, #tpu.memory_space<vmem>>, vector<1x4x96xf32>
    %533 = vector.shape_cast %532 : vector<1x4x96xf32> to vector<4x96xf32>
    %534 = vector.extract_strided_slice %533 {offsets = [0, 0], sizes = [4, 32], strides = [1, 1]} : vector<4x96xf32> to vector<4x32xf32>
    %535 = vector.extract_strided_slice %531 {offsets = [0, 0], sizes = [4, 32], strides = [1, 1]} : vector<4x96xf32> to vector<4x32xf32>
    %536 = arith.addf %534, %535 : vector<4x32xf32>
    %537 = arith.negf %536 : vector<4x32xf32>
    %538 = math.exp %537 : vector<4x32xf32>
    %cst_146 = arith.constant 1.000000e+00 : f32
    %539 = vector.broadcast %cst_146 : f32 to vector<4x32xf32>
    %540 = arith.addf %539, %538 : vector<4x32xf32>
    %541 = arith.divf %539, %540 : vector<4x32xf32>
    %542 = vector.extract_strided_slice %533 {offsets = [0, 32], sizes = [4, 32], strides = [1, 1]} : vector<4x96xf32> to vector<4x32xf32>
    %543 = vector.extract_strided_slice %531 {offsets = [0, 32], sizes = [4, 32], strides = [1, 1]} : vector<4x96xf32> to vector<4x32xf32>
    %544 = arith.addf %542, %543 : vector<4x32xf32>
    %545 = arith.negf %544 : vector<4x32xf32>
    %546 = math.exp %545 : vector<4x32xf32>
    %cst_147 = arith.constant 1.000000e+00 : f32
    %547 = vector.broadcast %cst_147 : f32 to vector<4x32xf32>
    %548 = arith.addf %547, %546 : vector<4x32xf32>
    %549 = arith.divf %547, %548 : vector<4x32xf32>
    %550 = vector.extract_strided_slice %533 {offsets = [0, 64], sizes = [4, 32], strides = [1, 1]} : vector<4x96xf32> to vector<4x32xf32>
    %551 = vector.extract_strided_slice %531 {offsets = [0, 64], sizes = [4, 32], strides = [1, 1]} : vector<4x96xf32> to vector<4x32xf32>
    %552 = arith.mulf %541, %551 : vector<4x32xf32>
    %553 = arith.addf %550, %552 : vector<4x32xf32>
    %554 = math.tanh %553 : vector<4x32xf32>
    %cst_148 = arith.constant 1.000000e+00 : f32
    %555 = vector.broadcast %cst_148 : f32 to vector<4x32xf32>
    %556 = arith.subf %555, %549 : vector<4x32xf32>
    %557 = arith.mulf %556, %554 : vector<4x32xf32>
    %558 = arith.mulf %549, %499 : vector<4x32xf32>
    %559 = arith.addf %557, %558 : vector<4x32xf32>
    %560 = tpu.concatenate %559, %525 in 1 : vector<4x32xf32>, vector<4x32xf32> -> vector<4x64xf32>
    %cst_149 = arith.constant dense<0.000000e+00> : vector<4x128xf32>
    %561 = tpu.matmul %560, %0, %cst_149 {dimension_numbers = #tpu.dot_dimension_numbers<[1], [0], [0], [1], [0, 0, 1, 1], [], []>} : vector<4x64xf32>, vector<64x128xf32>, vector<4x128xf32> -> vector<4x128xf32>
    %562 = vector.broadcast %14 : vector<1x128xf32> to vector<4x128xf32>
    %563 = arith.addf %561, %562 : vector<4x128xf32>
    %564 = vector.extract_strided_slice %563 {offsets = [0, 0], sizes = [4, 32], strides = [1, 1]} : vector<4x128xf32> to vector<4x32xf32>
    %565 = arith.negf %564 : vector<4x32xf32>
    %566 = math.exp %565 : vector<4x32xf32>
    %cst_150 = arith.constant 1.000000e+00 : f32
    %567 = vector.broadcast %cst_150 : f32 to vector<4x32xf32>
    %568 = arith.addf %567, %566 : vector<4x32xf32>
    %569 = arith.divf %567, %568 : vector<4x32xf32>
    %570 = vector.extract_strided_slice %563 {offsets = [0, 32], sizes = [4, 32], strides = [1, 1]} : vector<4x128xf32> to vector<4x32xf32>
    %571 = arith.negf %570 : vector<4x32xf32>
    %572 = math.exp %571 : vector<4x32xf32>
    %cst_151 = arith.constant 1.000000e+00 : f32
    %573 = vector.broadcast %cst_151 : f32 to vector<4x32xf32>
    %574 = arith.addf %573, %572 : vector<4x32xf32>
    %575 = arith.divf %573, %574 : vector<4x32xf32>
    %576 = vector.extract_strided_slice %563 {offsets = [0, 64], sizes = [4, 32], strides = [1, 1]} : vector<4x128xf32> to vector<4x32xf32>
    %577 = vector.extract_strided_slice %563 {offsets = [0, 96], sizes = [4, 32], strides = [1, 1]} : vector<4x128xf32> to vector<4x32xf32>
    %578 = arith.mulf %569, %577 : vector<4x32xf32>
    %579 = arith.addf %576, %578 : vector<4x32xf32>
    %580 = math.tanh %579 : vector<4x32xf32>
    %cst_152 = arith.constant 1.000000e+00 : f32
    %581 = vector.broadcast %cst_152 : f32 to vector<4x32xf32>
    %582 = arith.subf %581, %575 : vector<4x32xf32>
    %583 = arith.mulf %582, %580 : vector<4x32xf32>
    %584 = arith.mulf %575, %525 : vector<4x32xf32>
    %585 = arith.addf %583, %584 : vector<4x32xf32>
    %c8_153 = arith.constant 8 : index
    %c0_154 = arith.constant 0 : index
    %c0_155 = arith.constant 0 : index
    %586 = vector.load %arg5[%c8_153, %c0_154, %c0_155] : memref<16x4x32xf32, #tpu.memory_space<vmem>>, vector<1x4x32xf32>
    %587 = vector.shape_cast %586 : vector<1x4x32xf32> to vector<4x32xf32>
    %588 = vector.shape_cast %585 : vector<4x32xf32> to vector<1x4x32xf32>
    tpu.vector_store %arg5[%c8_153, %c0_154, %c0_155], %588 {strides = array<i32>} : memref<16x4x32xf32, #tpu.memory_space<vmem>>, vector<1x4x32xf32>,
    %cst_156 = arith.constant dense<0.000000e+00> : vector<4x96xf32>
    %589 = tpu.matmul %559, %1, %cst_156 {dimension_numbers = #tpu.dot_dimension_numbers<[1], [0], [0], [1], [0, 0, 1, 1], [], []>} : vector<4x32xf32>, vector<32x96xf32>, vector<4x96xf32> -> vector<4x96xf32>
    %590 = vector.broadcast %13 : vector<1x96xf32> to vector<4x96xf32>
    %591 = arith.addf %589, %590 : vector<4x96xf32>
    %c9 = arith.constant 9 : index
    %c0_157 = arith.constant 0 : index
    %c0_158 = arith.constant 0 : index
    %592 = vector.load %arg4[%c9, %c0_157, %c0_158] : memref<16x4x96xf32, #tpu.memory_space<vmem>>, vector<1x4x96xf32>
    %593 = vector.shape_cast %592 : vector<1x4x96xf32> to vector<4x96xf32>
    %594 = vector.extract_strided_slice %593 {offsets = [0, 0], sizes = [4, 32], strides = [1, 1]} : vector<4x96xf32> to vector<4x32xf32>
    %595 = vector.extract_strided_slice %591 {offsets = [0, 0], sizes = [4, 32], strides = [1, 1]} : vector<4x96xf32> to vector<4x32xf32>
    %596 = arith.addf %594, %595 : vector<4x32xf32>
    %597 = arith.negf %596 : vector<4x32xf32>
    %598 = math.exp %597 : vector<4x32xf32>
    %cst_159 = arith.constant 1.000000e+00 : f32
    %599 = vector.broadcast %cst_159 : f32 to vector<4x32xf32>
    %600 = arith.addf %599, %598 : vector<4x32xf32>
    %601 = arith.divf %599, %600 : vector<4x32xf32>
    %602 = vector.extract_strided_slice %593 {offsets = [0, 32], sizes = [4, 32], strides = [1, 1]} : vector<4x96xf32> to vector<4x32xf32>
    %603 = vector.extract_strided_slice %591 {offsets = [0, 32], sizes = [4, 32], strides = [1, 1]} : vector<4x96xf32> to vector<4x32xf32>
    %604 = arith.addf %602, %603 : vector<4x32xf32>
    %605 = arith.negf %604 : vector<4x32xf32>
    %606 = math.exp %605 : vector<4x32xf32>
    %cst_160 = arith.constant 1.000000e+00 : f32
    %607 = vector.broadcast %cst_160 : f32 to vector<4x32xf32>
    %608 = arith.addf %607, %606 : vector<4x32xf32>
    %609 = arith.divf %607, %608 : vector<4x32xf32>
    %610 = vector.extract_strided_slice %593 {offsets = [0, 64], sizes = [4, 32], strides = [1, 1]} : vector<4x96xf32> to vector<4x32xf32>
    %611 = vector.extract_strided_slice %591 {offsets = [0, 64], sizes = [4, 32], strides = [1, 1]} : vector<4x96xf32> to vector<4x32xf32>
    %612 = arith.mulf %601, %611 : vector<4x32xf32>
    %613 = arith.addf %610, %612 : vector<4x32xf32>
    %614 = math.tanh %613 : vector<4x32xf32>
    %cst_161 = arith.constant 1.000000e+00 : f32
    %615 = vector.broadcast %cst_161 : f32 to vector<4x32xf32>
    %616 = arith.subf %615, %609 : vector<4x32xf32>
    %617 = arith.mulf %616, %614 : vector<4x32xf32>
    %618 = arith.mulf %609, %559 : vector<4x32xf32>
    %619 = arith.addf %617, %618 : vector<4x32xf32>
    %620 = tpu.concatenate %619, %585 in 1 : vector<4x32xf32>, vector<4x32xf32> -> vector<4x64xf32>
    %cst_162 = arith.constant dense<0.000000e+00> : vector<4x128xf32>
    %621 = tpu.matmul %620, %0, %cst_162 {dimension_numbers = #tpu.dot_dimension_numbers<[1], [0], [0], [1], [0, 0, 1, 1], [], []>} : vector<4x64xf32>, vector<64x128xf32>, vector<4x128xf32> -> vector<4x128xf32>
    %622 = vector.broadcast %14 : vector<1x128xf32> to vector<4x128xf32>
    %623 = arith.addf %621, %622 : vector<4x128xf32>
    %624 = vector.extract_strided_slice %623 {offsets = [0, 0], sizes = [4, 32], strides = [1, 1]} : vector<4x128xf32> to vector<4x32xf32>
    %625 = arith.negf %624 : vector<4x32xf32>
    %626 = math.exp %625 : vector<4x32xf32>
    %cst_163 = arith.constant 1.000000e+00 : f32
    %627 = vector.broadcast %cst_163 : f32 to vector<4x32xf32>
    %628 = arith.addf %627, %626 : vector<4x32xf32>
    %629 = arith.divf %627, %628 : vector<4x32xf32>
    %630 = vector.extract_strided_slice %623 {offsets = [0, 32], sizes = [4, 32], strides = [1, 1]} : vector<4x128xf32> to vector<4x32xf32>
    %631 = arith.negf %630 : vector<4x32xf32>
    %632 = math.exp %631 : vector<4x32xf32>
    %cst_164 = arith.constant 1.000000e+00 : f32
    %633 = vector.broadcast %cst_164 : f32 to vector<4x32xf32>
    %634 = arith.addf %633, %632 : vector<4x32xf32>
    %635 = arith.divf %633, %634 : vector<4x32xf32>
    %636 = vector.extract_strided_slice %623 {offsets = [0, 64], sizes = [4, 32], strides = [1, 1]} : vector<4x128xf32> to vector<4x32xf32>
    %637 = vector.extract_strided_slice %623 {offsets = [0, 96], sizes = [4, 32], strides = [1, 1]} : vector<4x128xf32> to vector<4x32xf32>
    %638 = arith.mulf %629, %637 : vector<4x32xf32>
    %639 = arith.addf %636, %638 : vector<4x32xf32>
    %640 = math.tanh %639 : vector<4x32xf32>
    %cst_165 = arith.constant 1.000000e+00 : f32
    %641 = vector.broadcast %cst_165 : f32 to vector<4x32xf32>
    %642 = arith.subf %641, %635 : vector<4x32xf32>
    %643 = arith.mulf %642, %640 : vector<4x32xf32>
    %644 = arith.mulf %635, %585 : vector<4x32xf32>
    %645 = arith.addf %643, %644 : vector<4x32xf32>
    %c9_166 = arith.constant 9 : index
    %c0_167 = arith.constant 0 : index
    %c0_168 = arith.constant 0 : index
    %646 = vector.load %arg5[%c9_166, %c0_167, %c0_168] : memref<16x4x32xf32, #tpu.memory_space<vmem>>, vector<1x4x32xf32>
    %647 = vector.shape_cast %646 : vector<1x4x32xf32> to vector<4x32xf32>
    %648 = vector.shape_cast %645 : vector<4x32xf32> to vector<1x4x32xf32>
    tpu.vector_store %arg5[%c9_166, %c0_167, %c0_168], %648 {strides = array<i32>} : memref<16x4x32xf32, #tpu.memory_space<vmem>>, vector<1x4x32xf32>,
    %cst_169 = arith.constant dense<0.000000e+00> : vector<4x96xf32>
    %649 = tpu.matmul %619, %1, %cst_169 {dimension_numbers = #tpu.dot_dimension_numbers<[1], [0], [0], [1], [0, 0, 1, 1], [], []>} : vector<4x32xf32>, vector<32x96xf32>, vector<4x96xf32> -> vector<4x96xf32>
    %650 = vector.broadcast %13 : vector<1x96xf32> to vector<4x96xf32>
    %651 = arith.addf %649, %650 : vector<4x96xf32>
    %c10 = arith.constant 10 : index
    %c0_170 = arith.constant 0 : index
    %c0_171 = arith.constant 0 : index
    %652 = vector.load %arg4[%c10, %c0_170, %c0_171] : memref<16x4x96xf32, #tpu.memory_space<vmem>>, vector<1x4x96xf32>
    %653 = vector.shape_cast %652 : vector<1x4x96xf32> to vector<4x96xf32>
    %654 = vector.extract_strided_slice %653 {offsets = [0, 0], sizes = [4, 32], strides = [1, 1]} : vector<4x96xf32> to vector<4x32xf32>
    %655 = vector.extract_strided_slice %651 {offsets = [0, 0], sizes = [4, 32], strides = [1, 1]} : vector<4x96xf32> to vector<4x32xf32>
    %656 = arith.addf %654, %655 : vector<4x32xf32>
    %657 = arith.negf %656 : vector<4x32xf32>
    %658 = math.exp %657 : vector<4x32xf32>
    %cst_172 = arith.constant 1.000000e+00 : f32
    %659 = vector.broadcast %cst_172 : f32 to vector<4x32xf32>
    %660 = arith.addf %659, %658 : vector<4x32xf32>
    %661 = arith.divf %659, %660 : vector<4x32xf32>
    %662 = vector.extract_strided_slice %653 {offsets = [0, 32], sizes = [4, 32], strides = [1, 1]} : vector<4x96xf32> to vector<4x32xf32>
    %663 = vector.extract_strided_slice %651 {offsets = [0, 32], sizes = [4, 32], strides = [1, 1]} : vector<4x96xf32> to vector<4x32xf32>
    %664 = arith.addf %662, %663 : vector<4x32xf32>
    %665 = arith.negf %664 : vector<4x32xf32>
    %666 = math.exp %665 : vector<4x32xf32>
    %cst_173 = arith.constant 1.000000e+00 : f32
    %667 = vector.broadcast %cst_173 : f32 to vector<4x32xf32>
    %668 = arith.addf %667, %666 : vector<4x32xf32>
    %669 = arith.divf %667, %668 : vector<4x32xf32>
    %670 = vector.extract_strided_slice %653 {offsets = [0, 64], sizes = [4, 32], strides = [1, 1]} : vector<4x96xf32> to vector<4x32xf32>
    %671 = vector.extract_strided_slice %651 {offsets = [0, 64], sizes = [4, 32], strides = [1, 1]} : vector<4x96xf32> to vector<4x32xf32>
    %672 = arith.mulf %661, %671 : vector<4x32xf32>
    %673 = arith.addf %670, %672 : vector<4x32xf32>
    %674 = math.tanh %673 : vector<4x32xf32>
    %cst_174 = arith.constant 1.000000e+00 : f32
    %675 = vector.broadcast %cst_174 : f32 to vector<4x32xf32>
    %676 = arith.subf %675, %669 : vector<4x32xf32>
    %677 = arith.mulf %676, %674 : vector<4x32xf32>
    %678 = arith.mulf %669, %619 : vector<4x32xf32>
    %679 = arith.addf %677, %678 : vector<4x32xf32>
    %680 = tpu.concatenate %679, %645 in 1 : vector<4x32xf32>, vector<4x32xf32> -> vector<4x64xf32>
    %cst_175 = arith.constant dense<0.000000e+00> : vector<4x128xf32>
    %681 = tpu.matmul %680, %0, %cst_175 {dimension_numbers = #tpu.dot_dimension_numbers<[1], [0], [0], [1], [0, 0, 1, 1], [], []>} : vector<4x64xf32>, vector<64x128xf32>, vector<4x128xf32> -> vector<4x128xf32>
    %682 = vector.broadcast %14 : vector<1x128xf32> to vector<4x128xf32>
    %683 = arith.addf %681, %682 : vector<4x128xf32>
    %684 = vector.extract_strided_slice %683 {offsets = [0, 0], sizes = [4, 32], strides = [1, 1]} : vector<4x128xf32> to vector<4x32xf32>
    %685 = arith.negf %684 : vector<4x32xf32>
    %686 = math.exp %685 : vector<4x32xf32>
    %cst_176 = arith.constant 1.000000e+00 : f32
    %687 = vector.broadcast %cst_176 : f32 to vector<4x32xf32>
    %688 = arith.addf %687, %686 : vector<4x32xf32>
    %689 = arith.divf %687, %688 : vector<4x32xf32>
    %690 = vector.extract_strided_slice %683 {offsets = [0, 32], sizes = [4, 32], strides = [1, 1]} : vector<4x128xf32> to vector<4x32xf32>
    %691 = arith.negf %690 : vector<4x32xf32>
    %692 = math.exp %691 : vector<4x32xf32>
    %cst_177 = arith.constant 1.000000e+00 : f32
    %693 = vector.broadcast %cst_177 : f32 to vector<4x32xf32>
    %694 = arith.addf %693, %692 : vector<4x32xf32>
    %695 = arith.divf %693, %694 : vector<4x32xf32>
    %696 = vector.extract_strided_slice %683 {offsets = [0, 64], sizes = [4, 32], strides = [1, 1]} : vector<4x128xf32> to vector<4x32xf32>
    %697 = vector.extract_strided_slice %683 {offsets = [0, 96], sizes = [4, 32], strides = [1, 1]} : vector<4x128xf32> to vector<4x32xf32>
    %698 = arith.mulf %689, %697 : vector<4x32xf32>
    %699 = arith.addf %696, %698 : vector<4x32xf32>
    %700 = math.tanh %699 : vector<4x32xf32>
    %cst_178 = arith.constant 1.000000e+00 : f32
    %701 = vector.broadcast %cst_178 : f32 to vector<4x32xf32>
    %702 = arith.subf %701, %695 : vector<4x32xf32>
    %703 = arith.mulf %702, %700 : vector<4x32xf32>
    %704 = arith.mulf %695, %645 : vector<4x32xf32>
    %705 = arith.addf %703, %704 : vector<4x32xf32>
    %c10_179 = arith.constant 10 : index
    %c0_180 = arith.constant 0 : index
    %c0_181 = arith.constant 0 : index
    %706 = vector.load %arg5[%c10_179, %c0_180, %c0_181] : memref<16x4x32xf32, #tpu.memory_space<vmem>>, vector<1x4x32xf32>
    %707 = vector.shape_cast %706 : vector<1x4x32xf32> to vector<4x32xf32>
    %708 = vector.shape_cast %705 : vector<4x32xf32> to vector<1x4x32xf32>
    tpu.vector_store %arg5[%c10_179, %c0_180, %c0_181], %708 {strides = array<i32>} : memref<16x4x32xf32, #tpu.memory_space<vmem>>, vector<1x4x32xf32>,
    %cst_182 = arith.constant dense<0.000000e+00> : vector<4x96xf32>
    %709 = tpu.matmul %679, %1, %cst_182 {dimension_numbers = #tpu.dot_dimension_numbers<[1], [0], [0], [1], [0, 0, 1, 1], [], []>} : vector<4x32xf32>, vector<32x96xf32>, vector<4x96xf32> -> vector<4x96xf32>
    %710 = vector.broadcast %13 : vector<1x96xf32> to vector<4x96xf32>
    %711 = arith.addf %709, %710 : vector<4x96xf32>
    %c11 = arith.constant 11 : index
    %c0_183 = arith.constant 0 : index
    %c0_184 = arith.constant 0 : index
    %712 = vector.load %arg4[%c11, %c0_183, %c0_184] : memref<16x4x96xf32, #tpu.memory_space<vmem>>, vector<1x4x96xf32>
    %713 = vector.shape_cast %712 : vector<1x4x96xf32> to vector<4x96xf32>
    %714 = vector.extract_strided_slice %713 {offsets = [0, 0], sizes = [4, 32], strides = [1, 1]} : vector<4x96xf32> to vector<4x32xf32>
    %715 = vector.extract_strided_slice %711 {offsets = [0, 0], sizes = [4, 32], strides = [1, 1]} : vector<4x96xf32> to vector<4x32xf32>
    %716 = arith.addf %714, %715 : vector<4x32xf32>
    %717 = arith.negf %716 : vector<4x32xf32>
    %718 = math.exp %717 : vector<4x32xf32>
    %cst_185 = arith.constant 1.000000e+00 : f32
    %719 = vector.broadcast %cst_185 : f32 to vector<4x32xf32>
    %720 = arith.addf %719, %718 : vector<4x32xf32>
    %721 = arith.divf %719, %720 : vector<4x32xf32>
    %722 = vector.extract_strided_slice %713 {offsets = [0, 32], sizes = [4, 32], strides = [1, 1]} : vector<4x96xf32> to vector<4x32xf32>
    %723 = vector.extract_strided_slice %711 {offsets = [0, 32], sizes = [4, 32], strides = [1, 1]} : vector<4x96xf32> to vector<4x32xf32>
    %724 = arith.addf %722, %723 : vector<4x32xf32>
    %725 = arith.negf %724 : vector<4x32xf32>
    %726 = math.exp %725 : vector<4x32xf32>
    %cst_186 = arith.constant 1.000000e+00 : f32
    %727 = vector.broadcast %cst_186 : f32 to vector<4x32xf32>
    %728 = arith.addf %727, %726 : vector<4x32xf32>
    %729 = arith.divf %727, %728 : vector<4x32xf32>
    %730 = vector.extract_strided_slice %713 {offsets = [0, 64], sizes = [4, 32], strides = [1, 1]} : vector<4x96xf32> to vector<4x32xf32>
    %731 = vector.extract_strided_slice %711 {offsets = [0, 64], sizes = [4, 32], strides = [1, 1]} : vector<4x96xf32> to vector<4x32xf32>
    %732 = arith.mulf %721, %731 : vector<4x32xf32>
    %733 = arith.addf %730, %732 : vector<4x32xf32>
    %734 = math.tanh %733 : vector<4x32xf32>
    %cst_187 = arith.constant 1.000000e+00 : f32
    %735 = vector.broadcast %cst_187 : f32 to vector<4x32xf32>
    %736 = arith.subf %735, %729 : vector<4x32xf32>
    %737 = arith.mulf %736, %734 : vector<4x32xf32>
    %738 = arith.mulf %729, %679 : vector<4x32xf32>
    %739 = arith.addf %737, %738 : vector<4x32xf32>
    %740 = tpu.concatenate %739, %705 in 1 : vector<4x32xf32>, vector<4x32xf32> -> vector<4x64xf32>
    %cst_188 = arith.constant dense<0.000000e+00> : vector<4x128xf32>
    %741 = tpu.matmul %740, %0, %cst_188 {dimension_numbers = #tpu.dot_dimension_numbers<[1], [0], [0], [1], [0, 0, 1, 1], [], []>} : vector<4x64xf32>, vector<64x128xf32>, vector<4x128xf32> -> vector<4x128xf32>
    %742 = vector.broadcast %14 : vector<1x128xf32> to vector<4x128xf32>
    %743 = arith.addf %741, %742 : vector<4x128xf32>
    %744 = vector.extract_strided_slice %743 {offsets = [0, 0], sizes = [4, 32], strides = [1, 1]} : vector<4x128xf32> to vector<4x32xf32>
    %745 = arith.negf %744 : vector<4x32xf32>
    %746 = math.exp %745 : vector<4x32xf32>
    %cst_189 = arith.constant 1.000000e+00 : f32
    %747 = vector.broadcast %cst_189 : f32 to vector<4x32xf32>
    %748 = arith.addf %747, %746 : vector<4x32xf32>
    %749 = arith.divf %747, %748 : vector<4x32xf32>
    %750 = vector.extract_strided_slice %743 {offsets = [0, 32], sizes = [4, 32], strides = [1, 1]} : vector<4x128xf32> to vector<4x32xf32>
    %751 = arith.negf %750 : vector<4x32xf32>
    %752 = math.exp %751 : vector<4x32xf32>
    %cst_190 = arith.constant 1.000000e+00 : f32
    %753 = vector.broadcast %cst_190 : f32 to vector<4x32xf32>
    %754 = arith.addf %753, %752 : vector<4x32xf32>
    %755 = arith.divf %753, %754 : vector<4x32xf32>
    %756 = vector.extract_strided_slice %743 {offsets = [0, 64], sizes = [4, 32], strides = [1, 1]} : vector<4x128xf32> to vector<4x32xf32>
    %757 = vector.extract_strided_slice %743 {offsets = [0, 96], sizes = [4, 32], strides = [1, 1]} : vector<4x128xf32> to vector<4x32xf32>
    %758 = arith.mulf %749, %757 : vector<4x32xf32>
    %759 = arith.addf %756, %758 : vector<4x32xf32>
    %760 = math.tanh %759 : vector<4x32xf32>
    %cst_191 = arith.constant 1.000000e+00 : f32
    %761 = vector.broadcast %cst_191 : f32 to vector<4x32xf32>
    %762 = arith.subf %761, %755 : vector<4x32xf32>
    %763 = arith.mulf %762, %760 : vector<4x32xf32>
    %764 = arith.mulf %755, %705 : vector<4x32xf32>
    %765 = arith.addf %763, %764 : vector<4x32xf32>
    %c11_192 = arith.constant 11 : index
    %c0_193 = arith.constant 0 : index
    %c0_194 = arith.constant 0 : index
    %766 = vector.load %arg5[%c11_192, %c0_193, %c0_194] : memref<16x4x32xf32, #tpu.memory_space<vmem>>, vector<1x4x32xf32>
    %767 = vector.shape_cast %766 : vector<1x4x32xf32> to vector<4x32xf32>
    %768 = vector.shape_cast %765 : vector<4x32xf32> to vector<1x4x32xf32>
    tpu.vector_store %arg5[%c11_192, %c0_193, %c0_194], %768 {strides = array<i32>} : memref<16x4x32xf32, #tpu.memory_space<vmem>>, vector<1x4x32xf32>,
    %cst_195 = arith.constant dense<0.000000e+00> : vector<4x96xf32>
    %769 = tpu.matmul %739, %1, %cst_195 {dimension_numbers = #tpu.dot_dimension_numbers<[1], [0], [0], [1], [0, 0, 1, 1], [], []>} : vector<4x32xf32>, vector<32x96xf32>, vector<4x96xf32> -> vector<4x96xf32>
    %770 = vector.broadcast %13 : vector<1x96xf32> to vector<4x96xf32>
    %771 = arith.addf %769, %770 : vector<4x96xf32>
    %c12 = arith.constant 12 : index
    %c0_196 = arith.constant 0 : index
    %c0_197 = arith.constant 0 : index
    %772 = vector.load %arg4[%c12, %c0_196, %c0_197] : memref<16x4x96xf32, #tpu.memory_space<vmem>>, vector<1x4x96xf32>
    %773 = vector.shape_cast %772 : vector<1x4x96xf32> to vector<4x96xf32>
    %774 = vector.extract_strided_slice %773 {offsets = [0, 0], sizes = [4, 32], strides = [1, 1]} : vector<4x96xf32> to vector<4x32xf32>
    %775 = vector.extract_strided_slice %771 {offsets = [0, 0], sizes = [4, 32], strides = [1, 1]} : vector<4x96xf32> to vector<4x32xf32>
    %776 = arith.addf %774, %775 : vector<4x32xf32>
    %777 = arith.negf %776 : vector<4x32xf32>
    %778 = math.exp %777 : vector<4x32xf32>
    %cst_198 = arith.constant 1.000000e+00 : f32
    %779 = vector.broadcast %cst_198 : f32 to vector<4x32xf32>
    %780 = arith.addf %779, %778 : vector<4x32xf32>
    %781 = arith.divf %779, %780 : vector<4x32xf32>
    %782 = vector.extract_strided_slice %773 {offsets = [0, 32], sizes = [4, 32], strides = [1, 1]} : vector<4x96xf32> to vector<4x32xf32>
    %783 = vector.extract_strided_slice %771 {offsets = [0, 32], sizes = [4, 32], strides = [1, 1]} : vector<4x96xf32> to vector<4x32xf32>
    %784 = arith.addf %782, %783 : vector<4x32xf32>
    %785 = arith.negf %784 : vector<4x32xf32>
    %786 = math.exp %785 : vector<4x32xf32>
    %cst_199 = arith.constant 1.000000e+00 : f32
    %787 = vector.broadcast %cst_199 : f32 to vector<4x32xf32>
    %788 = arith.addf %787, %786 : vector<4x32xf32>
    %789 = arith.divf %787, %788 : vector<4x32xf32>
    %790 = vector.extract_strided_slice %773 {offsets = [0, 64], sizes = [4, 32], strides = [1, 1]} : vector<4x96xf32> to vector<4x32xf32>
    %791 = vector.extract_strided_slice %771 {offsets = [0, 64], sizes = [4, 32], strides = [1, 1]} : vector<4x96xf32> to vector<4x32xf32>
    %792 = arith.mulf %781, %791 : vector<4x32xf32>
    %793 = arith.addf %790, %792 : vector<4x32xf32>
    %794 = math.tanh %793 : vector<4x32xf32>
    %cst_200 = arith.constant 1.000000e+00 : f32
    %795 = vector.broadcast %cst_200 : f32 to vector<4x32xf32>
    %796 = arith.subf %795, %789 : vector<4x32xf32>
    %797 = arith.mulf %796, %794 : vector<4x32xf32>
    %798 = arith.mulf %789, %739 : vector<4x32xf32>
    %799 = arith.addf %797, %798 : vector<4x32xf32>
    %800 = tpu.concatenate %799, %765 in 1 : vector<4x32xf32>, vector<4x32xf32> -> vector<4x64xf32>
    %cst_201 = arith.constant dense<0.000000e+00> : vector<4x128xf32>
    %801 = tpu.matmul %800, %0, %cst_201 {dimension_numbers = #tpu.dot_dimension_numbers<[1], [0], [0], [1], [0, 0, 1, 1], [], []>} : vector<4x64xf32>, vector<64x128xf32>, vector<4x128xf32> -> vector<4x128xf32>
    %802 = vector.broadcast %14 : vector<1x128xf32> to vector<4x128xf32>
    %803 = arith.addf %801, %802 : vector<4x128xf32>
    %804 = vector.extract_strided_slice %803 {offsets = [0, 0], sizes = [4, 32], strides = [1, 1]} : vector<4x128xf32> to vector<4x32xf32>
    %805 = arith.negf %804 : vector<4x32xf32>
    %806 = math.exp %805 : vector<4x32xf32>
    %cst_202 = arith.constant 1.000000e+00 : f32
    %807 = vector.broadcast %cst_202 : f32 to vector<4x32xf32>
    %808 = arith.addf %807, %806 : vector<4x32xf32>
    %809 = arith.divf %807, %808 : vector<4x32xf32>
    %810 = vector.extract_strided_slice %803 {offsets = [0, 32], sizes = [4, 32], strides = [1, 1]} : vector<4x128xf32> to vector<4x32xf32>
    %811 = arith.negf %810 : vector<4x32xf32>
    %812 = math.exp %811 : vector<4x32xf32>
    %cst_203 = arith.constant 1.000000e+00 : f32
    %813 = vector.broadcast %cst_203 : f32 to vector<4x32xf32>
    %814 = arith.addf %813, %812 : vector<4x32xf32>
    %815 = arith.divf %813, %814 : vector<4x32xf32>
    %816 = vector.extract_strided_slice %803 {offsets = [0, 64], sizes = [4, 32], strides = [1, 1]} : vector<4x128xf32> to vector<4x32xf32>
    %817 = vector.extract_strided_slice %803 {offsets = [0, 96], sizes = [4, 32], strides = [1, 1]} : vector<4x128xf32> to vector<4x32xf32>
    %818 = arith.mulf %809, %817 : vector<4x32xf32>
    %819 = arith.addf %816, %818 : vector<4x32xf32>
    %820 = math.tanh %819 : vector<4x32xf32>
    %cst_204 = arith.constant 1.000000e+00 : f32
    %821 = vector.broadcast %cst_204 : f32 to vector<4x32xf32>
    %822 = arith.subf %821, %815 : vector<4x32xf32>
    %823 = arith.mulf %822, %820 : vector<4x32xf32>
    %824 = arith.mulf %815, %765 : vector<4x32xf32>
    %825 = arith.addf %823, %824 : vector<4x32xf32>
    %c12_205 = arith.constant 12 : index
    %c0_206 = arith.constant 0 : index
    %c0_207 = arith.constant 0 : index
    %826 = vector.load %arg5[%c12_205, %c0_206, %c0_207] : memref<16x4x32xf32, #tpu.memory_space<vmem>>, vector<1x4x32xf32>
    %827 = vector.shape_cast %826 : vector<1x4x32xf32> to vector<4x32xf32>
    %828 = vector.shape_cast %825 : vector<4x32xf32> to vector<1x4x32xf32>
    tpu.vector_store %arg5[%c12_205, %c0_206, %c0_207], %828 {strides = array<i32>} : memref<16x4x32xf32, #tpu.memory_space<vmem>>, vector<1x4x32xf32>,
    %cst_208 = arith.constant dense<0.000000e+00> : vector<4x96xf32>
    %829 = tpu.matmul %799, %1, %cst_208 {dimension_numbers = #tpu.dot_dimension_numbers<[1], [0], [0], [1], [0, 0, 1, 1], [], []>} : vector<4x32xf32>, vector<32x96xf32>, vector<4x96xf32> -> vector<4x96xf32>
    %830 = vector.broadcast %13 : vector<1x96xf32> to vector<4x96xf32>
    %831 = arith.addf %829, %830 : vector<4x96xf32>
    %c13 = arith.constant 13 : index
    %c0_209 = arith.constant 0 : index
    %c0_210 = arith.constant 0 : index
    %832 = vector.load %arg4[%c13, %c0_209, %c0_210] : memref<16x4x96xf32, #tpu.memory_space<vmem>>, vector<1x4x96xf32>
    %833 = vector.shape_cast %832 : vector<1x4x96xf32> to vector<4x96xf32>
    %834 = vector.extract_strided_slice %833 {offsets = [0, 0], sizes = [4, 32], strides = [1, 1]} : vector<4x96xf32> to vector<4x32xf32>
    %835 = vector.extract_strided_slice %831 {offsets = [0, 0], sizes = [4, 32], strides = [1, 1]} : vector<4x96xf32> to vector<4x32xf32>
    %836 = arith.addf %834, %835 : vector<4x32xf32>
    %837 = arith.negf %836 : vector<4x32xf32>
    %838 = math.exp %837 : vector<4x32xf32>
    %cst_211 = arith.constant 1.000000e+00 : f32
    %839 = vector.broadcast %cst_211 : f32 to vector<4x32xf32>
    %840 = arith.addf %839, %838 : vector<4x32xf32>
    %841 = arith.divf %839, %840 : vector<4x32xf32>
    %842 = vector.extract_strided_slice %833 {offsets = [0, 32], sizes = [4, 32], strides = [1, 1]} : vector<4x96xf32> to vector<4x32xf32>
    %843 = vector.extract_strided_slice %831 {offsets = [0, 32], sizes = [4, 32], strides = [1, 1]} : vector<4x96xf32> to vector<4x32xf32>
    %844 = arith.addf %842, %843 : vector<4x32xf32>
    %845 = arith.negf %844 : vector<4x32xf32>
    %846 = math.exp %845 : vector<4x32xf32>
    %cst_212 = arith.constant 1.000000e+00 : f32
    %847 = vector.broadcast %cst_212 : f32 to vector<4x32xf32>
    %848 = arith.addf %847, %846 : vector<4x32xf32>
    %849 = arith.divf %847, %848 : vector<4x32xf32>
    %850 = vector.extract_strided_slice %833 {offsets = [0, 64], sizes = [4, 32], strides = [1, 1]} : vector<4x96xf32> to vector<4x32xf32>
    %851 = vector.extract_strided_slice %831 {offsets = [0, 64], sizes = [4, 32], strides = [1, 1]} : vector<4x96xf32> to vector<4x32xf32>
    %852 = arith.mulf %841, %851 : vector<4x32xf32>
    %853 = arith.addf %850, %852 : vector<4x32xf32>
    %854 = math.tanh %853 : vector<4x32xf32>
    %cst_213 = arith.constant 1.000000e+00 : f32
    %855 = vector.broadcast %cst_213 : f32 to vector<4x32xf32>
    %856 = arith.subf %855, %849 : vector<4x32xf32>
    %857 = arith.mulf %856, %854 : vector<4x32xf32>
    %858 = arith.mulf %849, %799 : vector<4x32xf32>
    %859 = arith.addf %857, %858 : vector<4x32xf32>
    %860 = tpu.concatenate %859, %825 in 1 : vector<4x32xf32>, vector<4x32xf32> -> vector<4x64xf32>
    %cst_214 = arith.constant dense<0.000000e+00> : vector<4x128xf32>
    %861 = tpu.matmul %860, %0, %cst_214 {dimension_numbers = #tpu.dot_dimension_numbers<[1], [0], [0], [1], [0, 0, 1, 1], [], []>} : vector<4x64xf32>, vector<64x128xf32>, vector<4x128xf32> -> vector<4x128xf32>
    %862 = vector.broadcast %14 : vector<1x128xf32> to vector<4x128xf32>
    %863 = arith.addf %861, %862 : vector<4x128xf32>
    %864 = vector.extract_strided_slice %863 {offsets = [0, 0], sizes = [4, 32], strides = [1, 1]} : vector<4x128xf32> to vector<4x32xf32>
    %865 = arith.negf %864 : vector<4x32xf32>
    %866 = math.exp %865 : vector<4x32xf32>
    %cst_215 = arith.constant 1.000000e+00 : f32
    %867 = vector.broadcast %cst_215 : f32 to vector<4x32xf32>
    %868 = arith.addf %867, %866 : vector<4x32xf32>
    %869 = arith.divf %867, %868 : vector<4x32xf32>
    %870 = vector.extract_strided_slice %863 {offsets = [0, 32], sizes = [4, 32], strides = [1, 1]} : vector<4x128xf32> to vector<4x32xf32>
    %871 = arith.negf %870 : vector<4x32xf32>
    %872 = math.exp %871 : vector<4x32xf32>
    %cst_216 = arith.constant 1.000000e+00 : f32
    %873 = vector.broadcast %cst_216 : f32 to vector<4x32xf32>
    %874 = arith.addf %873, %872 : vector<4x32xf32>
    %875 = arith.divf %873, %874 : vector<4x32xf32>
    %876 = vector.extract_strided_slice %863 {offsets = [0, 64], sizes = [4, 32], strides = [1, 1]} : vector<4x128xf32> to vector<4x32xf32>
    %877 = vector.extract_strided_slice %863 {offsets = [0, 96], sizes = [4, 32], strides = [1, 1]} : vector<4x128xf32> to vector<4x32xf32>
    %878 = arith.mulf %869, %877 : vector<4x32xf32>
    %879 = arith.addf %876, %878 : vector<4x32xf32>
    %880 = math.tanh %879 : vector<4x32xf32>
    %cst_217 = arith.constant 1.000000e+00 : f32
    %881 = vector.broadcast %cst_217 : f32 to vector<4x32xf32>
    %882 = arith.subf %881, %875 : vector<4x32xf32>
    %883 = arith.mulf %882, %880 : vector<4x32xf32>
    %884 = arith.mulf %875, %825 : vector<4x32xf32>
    %885 = arith.addf %883, %884 : vector<4x32xf32>
    %c13_218 = arith.constant 13 : index
    %c0_219 = arith.constant 0 : index
    %c0_220 = arith.constant 0 : index
    %886 = vector.load %arg5[%c13_218, %c0_219, %c0_220] : memref<16x4x32xf32, #tpu.memory_space<vmem>>, vector<1x4x32xf32>
    %887 = vector.shape_cast %886 : vector<1x4x32xf32> to vector<4x32xf32>
    %888 = vector.shape_cast %885 : vector<4x32xf32> to vector<1x4x32xf32>
    tpu.vector_store %arg5[%c13_218, %c0_219, %c0_220], %888 {strides = array<i32>} : memref<16x4x32xf32, #tpu.memory_space<vmem>>, vector<1x4x32xf32>,
    %cst_221 = arith.constant dense<0.000000e+00> : vector<4x96xf32>
    %889 = tpu.matmul %859, %1, %cst_221 {dimension_numbers = #tpu.dot_dimension_numbers<[1], [0], [0], [1], [0, 0, 1, 1], [], []>} : vector<4x32xf32>, vector<32x96xf32>, vector<4x96xf32> -> vector<4x96xf32>
    %890 = vector.broadcast %13 : vector<1x96xf32> to vector<4x96xf32>
    %891 = arith.addf %889, %890 : vector<4x96xf32>
    %c14 = arith.constant 14 : index
    %c0_222 = arith.constant 0 : index
    %c0_223 = arith.constant 0 : index
    %892 = vector.load %arg4[%c14, %c0_222, %c0_223] : memref<16x4x96xf32, #tpu.memory_space<vmem>>, vector<1x4x96xf32>
    %893 = vector.shape_cast %892 : vector<1x4x96xf32> to vector<4x96xf32>
    %894 = vector.extract_strided_slice %893 {offsets = [0, 0], sizes = [4, 32], strides = [1, 1]} : vector<4x96xf32> to vector<4x32xf32>
    %895 = vector.extract_strided_slice %891 {offsets = [0, 0], sizes = [4, 32], strides = [1, 1]} : vector<4x96xf32> to vector<4x32xf32>
    %896 = arith.addf %894, %895 : vector<4x32xf32>
    %897 = arith.negf %896 : vector<4x32xf32>
    %898 = math.exp %897 : vector<4x32xf32>
    %cst_224 = arith.constant 1.000000e+00 : f32
    %899 = vector.broadcast %cst_224 : f32 to vector<4x32xf32>
    %900 = arith.addf %899, %898 : vector<4x32xf32>
    %901 = arith.divf %899, %900 : vector<4x32xf32>
    %902 = vector.extract_strided_slice %893 {offsets = [0, 32], sizes = [4, 32], strides = [1, 1]} : vector<4x96xf32> to vector<4x32xf32>
    %903 = vector.extract_strided_slice %891 {offsets = [0, 32], sizes = [4, 32], strides = [1, 1]} : vector<4x96xf32> to vector<4x32xf32>
    %904 = arith.addf %902, %903 : vector<4x32xf32>
    %905 = arith.negf %904 : vector<4x32xf32>
    %906 = math.exp %905 : vector<4x32xf32>
    %cst_225 = arith.constant 1.000000e+00 : f32
    %907 = vector.broadcast %cst_225 : f32 to vector<4x32xf32>
    %908 = arith.addf %907, %906 : vector<4x32xf32>
    %909 = arith.divf %907, %908 : vector<4x32xf32>
    %910 = vector.extract_strided_slice %893 {offsets = [0, 64], sizes = [4, 32], strides = [1, 1]} : vector<4x96xf32> to vector<4x32xf32>
    %911 = vector.extract_strided_slice %891 {offsets = [0, 64], sizes = [4, 32], strides = [1, 1]} : vector<4x96xf32> to vector<4x32xf32>
    %912 = arith.mulf %901, %911 : vector<4x32xf32>
    %913 = arith.addf %910, %912 : vector<4x32xf32>
    %914 = math.tanh %913 : vector<4x32xf32>
    %cst_226 = arith.constant 1.000000e+00 : f32
    %915 = vector.broadcast %cst_226 : f32 to vector<4x32xf32>
    %916 = arith.subf %915, %909 : vector<4x32xf32>
    %917 = arith.mulf %916, %914 : vector<4x32xf32>
    %918 = arith.mulf %909, %859 : vector<4x32xf32>
    %919 = arith.addf %917, %918 : vector<4x32xf32>
    %920 = tpu.concatenate %919, %885 in 1 : vector<4x32xf32>, vector<4x32xf32> -> vector<4x64xf32>
    %cst_227 = arith.constant dense<0.000000e+00> : vector<4x128xf32>
    %921 = tpu.matmul %920, %0, %cst_227 {dimension_numbers = #tpu.dot_dimension_numbers<[1], [0], [0], [1], [0, 0, 1, 1], [], []>} : vector<4x64xf32>, vector<64x128xf32>, vector<4x128xf32> -> vector<4x128xf32>
    %922 = vector.broadcast %14 : vector<1x128xf32> to vector<4x128xf32>
    %923 = arith.addf %921, %922 : vector<4x128xf32>
    %924 = vector.extract_strided_slice %923 {offsets = [0, 0], sizes = [4, 32], strides = [1, 1]} : vector<4x128xf32> to vector<4x32xf32>
    %925 = arith.negf %924 : vector<4x32xf32>
    %926 = math.exp %925 : vector<4x32xf32>
    %cst_228 = arith.constant 1.000000e+00 : f32
    %927 = vector.broadcast %cst_228 : f32 to vector<4x32xf32>
    %928 = arith.addf %927, %926 : vector<4x32xf32>
    %929 = arith.divf %927, %928 : vector<4x32xf32>
    %930 = vector.extract_strided_slice %923 {offsets = [0, 32], sizes = [4, 32], strides = [1, 1]} : vector<4x128xf32> to vector<4x32xf32>
    %931 = arith.negf %930 : vector<4x32xf32>
    %932 = math.exp %931 : vector<4x32xf32>
    %cst_229 = arith.constant 1.000000e+00 : f32
    %933 = vector.broadcast %cst_229 : f32 to vector<4x32xf32>
    %934 = arith.addf %933, %932 : vector<4x32xf32>
    %935 = arith.divf %933, %934 : vector<4x32xf32>
    %936 = vector.extract_strided_slice %923 {offsets = [0, 64], sizes = [4, 32], strides = [1, 1]} : vector<4x128xf32> to vector<4x32xf32>
    %937 = vector.extract_strided_slice %923 {offsets = [0, 96], sizes = [4, 32], strides = [1, 1]} : vector<4x128xf32> to vector<4x32xf32>
    %938 = arith.mulf %929, %937 : vector<4x32xf32>
    %939 = arith.addf %936, %938 : vector<4x32xf32>
    %940 = math.tanh %939 : vector<4x32xf32>
    %cst_230 = arith.constant 1.000000e+00 : f32
    %941 = vector.broadcast %cst_230 : f32 to vector<4x32xf32>
    %942 = arith.subf %941, %935 : vector<4x32xf32>
    %943 = arith.mulf %942, %940 : vector<4x32xf32>
    %944 = arith.mulf %935, %885 : vector<4x32xf32>
    %945 = arith.addf %943, %944 : vector<4x32xf32>
    %c14_231 = arith.constant 14 : index
    %c0_232 = arith.constant 0 : index
    %c0_233 = arith.constant 0 : index
    %946 = vector.load %arg5[%c14_231, %c0_232, %c0_233] : memref<16x4x32xf32, #tpu.memory_space<vmem>>, vector<1x4x32xf32>
    %947 = vector.shape_cast %946 : vector<1x4x32xf32> to vector<4x32xf32>
    %948 = vector.shape_cast %945 : vector<4x32xf32> to vector<1x4x32xf32>
    tpu.vector_store %arg5[%c14_231, %c0_232, %c0_233], %948 {strides = array<i32>} : memref<16x4x32xf32, #tpu.memory_space<vmem>>, vector<1x4x32xf32>,
    %cst_234 = arith.constant dense<0.000000e+00> : vector<4x96xf32>
    %949 = tpu.matmul %919, %1, %cst_234 {dimension_numbers = #tpu.dot_dimension_numbers<[1], [0], [0], [1], [0, 0, 1, 1], [], []>} : vector<4x32xf32>, vector<32x96xf32>, vector<4x96xf32> -> vector<4x96xf32>
    %950 = vector.broadcast %13 : vector<1x96xf32> to vector<4x96xf32>
    %951 = arith.addf %949, %950 : vector<4x96xf32>
    %c15 = arith.constant 15 : index
    %c0_235 = arith.constant 0 : index
    %c0_236 = arith.constant 0 : index
    %952 = vector.load %arg4[%c15, %c0_235, %c0_236] : memref<16x4x96xf32, #tpu.memory_space<vmem>>, vector<1x4x96xf32>
    %953 = vector.shape_cast %952 : vector<1x4x96xf32> to vector<4x96xf32>
    %954 = vector.extract_strided_slice %953 {offsets = [0, 0], sizes = [4, 32], strides = [1, 1]} : vector<4x96xf32> to vector<4x32xf32>
    %955 = vector.extract_strided_slice %951 {offsets = [0, 0], sizes = [4, 32], strides = [1, 1]} : vector<4x96xf32> to vector<4x32xf32>
    %956 = arith.addf %954, %955 : vector<4x32xf32>
    %957 = arith.negf %956 : vector<4x32xf32>
    %958 = math.exp %957 : vector<4x32xf32>
    %cst_237 = arith.constant 1.000000e+00 : f32
    %959 = vector.broadcast %cst_237 : f32 to vector<4x32xf32>
    %960 = arith.addf %959, %958 : vector<4x32xf32>
    %961 = arith.divf %959, %960 : vector<4x32xf32>
    %962 = vector.extract_strided_slice %953 {offsets = [0, 32], sizes = [4, 32], strides = [1, 1]} : vector<4x96xf32> to vector<4x32xf32>
    %963 = vector.extract_strided_slice %951 {offsets = [0, 32], sizes = [4, 32], strides = [1, 1]} : vector<4x96xf32> to vector<4x32xf32>
    %964 = arith.addf %962, %963 : vector<4x32xf32>
    %965 = arith.negf %964 : vector<4x32xf32>
    %966 = math.exp %965 : vector<4x32xf32>
    %cst_238 = arith.constant 1.000000e+00 : f32
    %967 = vector.broadcast %cst_238 : f32 to vector<4x32xf32>
    %968 = arith.addf %967, %966 : vector<4x32xf32>
    %969 = arith.divf %967, %968 : vector<4x32xf32>
    %970 = vector.extract_strided_slice %953 {offsets = [0, 64], sizes = [4, 32], strides = [1, 1]} : vector<4x96xf32> to vector<4x32xf32>
    %971 = vector.extract_strided_slice %951 {offsets = [0, 64], sizes = [4, 32], strides = [1, 1]} : vector<4x96xf32> to vector<4x32xf32>
    %972 = arith.mulf %961, %971 : vector<4x32xf32>
    %973 = arith.addf %970, %972 : vector<4x32xf32>
    %974 = math.tanh %973 : vector<4x32xf32>
    %cst_239 = arith.constant 1.000000e+00 : f32
    %975 = vector.broadcast %cst_239 : f32 to vector<4x32xf32>
    %976 = arith.subf %975, %969 : vector<4x32xf32>
    %977 = arith.mulf %976, %974 : vector<4x32xf32>
    %978 = arith.mulf %969, %919 : vector<4x32xf32>
    %979 = arith.addf %977, %978 : vector<4x32xf32>
    %980 = tpu.concatenate %979, %945 in 1 : vector<4x32xf32>, vector<4x32xf32> -> vector<4x64xf32>
    %cst_240 = arith.constant dense<0.000000e+00> : vector<4x128xf32>
    %981 = tpu.matmul %980, %0, %cst_240 {dimension_numbers = #tpu.dot_dimension_numbers<[1], [0], [0], [1], [0, 0, 1, 1], [], []>} : vector<4x64xf32>, vector<64x128xf32>, vector<4x128xf32> -> vector<4x128xf32>
    %982 = vector.broadcast %14 : vector<1x128xf32> to vector<4x128xf32>
    %983 = arith.addf %981, %982 : vector<4x128xf32>
    %984 = vector.extract_strided_slice %983 {offsets = [0, 0], sizes = [4, 32], strides = [1, 1]} : vector<4x128xf32> to vector<4x32xf32>
    %985 = arith.negf %984 : vector<4x32xf32>
    %986 = math.exp %985 : vector<4x32xf32>
    %cst_241 = arith.constant 1.000000e+00 : f32
    %987 = vector.broadcast %cst_241 : f32 to vector<4x32xf32>
    %988 = arith.addf %987, %986 : vector<4x32xf32>
    %989 = arith.divf %987, %988 : vector<4x32xf32>
    %990 = vector.extract_strided_slice %983 {offsets = [0, 32], sizes = [4, 32], strides = [1, 1]} : vector<4x128xf32> to vector<4x32xf32>
    %991 = arith.negf %990 : vector<4x32xf32>
    %992 = math.exp %991 : vector<4x32xf32>
    %cst_242 = arith.constant 1.000000e+00 : f32
    %993 = vector.broadcast %cst_242 : f32 to vector<4x32xf32>
    %994 = arith.addf %993, %992 : vector<4x32xf32>
    %995 = arith.divf %993, %994 : vector<4x32xf32>
    %996 = vector.extract_strided_slice %983 {offsets = [0, 64], sizes = [4, 32], strides = [1, 1]} : vector<4x128xf32> to vector<4x32xf32>
    %997 = vector.extract_strided_slice %983 {offsets = [0, 96], sizes = [4, 32], strides = [1, 1]} : vector<4x128xf32> to vector<4x32xf32>
    %998 = arith.mulf %989, %997 : vector<4x32xf32>
    %999 = arith.addf %996, %998 : vector<4x32xf32>
    %1000 = math.tanh %999 : vector<4x32xf32>
    %cst_243 = arith.constant 1.000000e+00 : f32
    %1001 = vector.broadcast %cst_243 : f32 to vector<4x32xf32>
    %1002 = arith.subf %1001, %995 : vector<4x32xf32>
    %1003 = arith.mulf %1002, %1000 : vector<4x32xf32>
    %1004 = arith.mulf %995, %945 : vector<4x32xf32>
    %1005 = arith.addf %1003, %1004 : vector<4x32xf32>
    %c15_244 = arith.constant 15 : index
    %c0_245 = arith.constant 0 : index
    %c0_246 = arith.constant 0 : index
    %1006 = vector.load %arg5[%c15_244, %c0_245, %c0_246] : memref<16x4x32xf32, #tpu.memory_space<vmem>>, vector<1x4x32xf32>
    %1007 = vector.shape_cast %1006 : vector<1x4x32xf32> to vector<4x32xf32>
    %1008 = vector.shape_cast %1005 : vector<4x32xf32> to vector<1x4x32xf32>
    tpu.vector_store %arg5[%c15_244, %c0_245, %c0_246], %1008 {strides = array<i32>} : memref<16x4x32xf32, #tpu.memory_space<vmem>>, vector<1x4x32xf32>,
    %c0_247 = arith.constant 0 : index
    %c0_248 = arith.constant 0 : index
    %c0_249 = arith.constant 0 : index
    %1009 = vector.load %arg5[%c0_247, %c0_248, %c0_249] : memref<16x4x32xf32, #tpu.memory_space<vmem>>, vector<16x4x32xf32>
    %1010 = vector.shape_cast %1009 : vector<16x4x32xf32> to vector<64x32xf32>
    %cst_250 = arith.constant dense<0.000000e+00> : vector<64x64xf32>
    %1011 = tpu.matmul %1010, %3, %cst_250 {dimension_numbers = #tpu.dot_dimension_numbers<[1], [0], [0], [1], [0, 0, 1, 1], [], []>} : vector<64x32xf32>, vector<32x64xf32>, vector<64x64xf32> -> vector<64x64xf32>
    %1012 = vector.extract_strided_slice %1011 {offsets = [0, 0], sizes = [64, 32], strides = [1, 1]} : vector<64x64xf32> to vector<64x32xf32>
    %1013 = vector.shape_cast %1012 : vector<64x32xf32> to vector<16x4x32xf32>
    %1014 = vector.extract_strided_slice %1011 {offsets = [60, 32], sizes = [4, 32], strides = [1, 1]} : vector<64x64xf32> to vector<4x32xf32>
    %1015 = vector.shape_cast %1014 : vector<4x32xf32> to vector<1x4x32xf32>
    %1016 = vector.broadcast %1015 : vector<1x4x32xf32> to vector<16x4x32xf32>
    %1017 = arith.addf %1013, %1016 : vector<16x4x32xf32>
    %1018 = math.tanh %1017 : vector<16x4x32xf32>
    %1019 = vector.shape_cast %8 : vector<1x32xf32> to vector<1x1x32xf32>
    %1020 = vector.broadcast %1019 : vector<1x1x32xf32> to vector<16x4x32xf32>
    %1021 = arith.mulf %1018, %1020 : vector<16x4x32xf32>
    %cst_251 = arith.constant dense<0.000000e+00> : vector<16x4xf32>
    %1022 = vector.multi_reduction <add>, %1021, %cst_251 [2] : vector<16x4x32xf32> to vector<16x4xf32>
    %1023 = vector.shape_cast %1022 : vector<16x4xf32> to vector<16x4x1xf32>
    %cst_252 = arith.constant dense<0xFF800000> : vector<4x1xf32>
    %1024 = vector.multi_reduction <maximumf>, %1023, %cst_252 [0] : vector<16x4x1xf32> to vector<4x1xf32>
    %1025 = vector.shape_cast %1024 : vector<4x1xf32> to vector<1x4x1xf32>
    %1026 = vector.broadcast %1025 : vector<1x4x1xf32> to vector<16x4x1xf32>
    %1027 = arith.subf %1023, %1026 : vector<16x4x1xf32>
    %1028 = math.exp %1027 : vector<16x4x1xf32>
    %cst_253 = arith.constant dense<0.000000e+00> : vector<4x1xf32>
    %1029 = vector.multi_reduction <add>, %1028, %cst_253 [0] : vector<16x4x1xf32> to vector<4x1xf32>
    %1030 = vector.shape_cast %1029 : vector<4x1xf32> to vector<1x4x1xf32>
    %1031 = vector.broadcast %1030 : vector<1x4x1xf32> to vector<16x4x1xf32>
    %1032 = arith.divf %1028, %1031 : vector<16x4x1xf32>
    %1033 = vector.broadcast %1032 : vector<16x4x1xf32> to vector<16x4x32xf32>
    %1034 = arith.mulf %1009, %1033 : vector<16x4x32xf32>
    %cst_254 = arith.constant dense<0.000000e+00> : vector<4x32xf32>
    %1035 = vector.multi_reduction <add>, %1034, %cst_254 [0] : vector<16x4x32xf32> to vector<4x32xf32>
    %1036 = vector.broadcast %9 : vector<1x32xf32> to vector<4x32xf32>
    %1037 = arith.mulf %41, %1036 : vector<4x32xf32>
    %cst_255 = arith.constant dense<0.000000e+00> : vector<4xf32>
    %1038 = vector.multi_reduction <add>, %1037, %cst_255 [1] : vector<4x32xf32> to vector<4xf32>
    %1039 = vector.shape_cast %1038 : vector<4xf32> to vector<4x1xf32>
    %1040 = vector.broadcast %10 : vector<1x32xf32> to vector<4x32xf32>
    %1041 = arith.mulf %1035, %1040 : vector<4x32xf32>
    %cst_256 = arith.constant dense<0.000000e+00> : vector<4xf32>
    %1042 = vector.multi_reduction <add>, %1041, %cst_256 [1] : vector<4x32xf32> to vector<4xf32>
    %1043 = vector.shape_cast %1042 : vector<4xf32> to vector<4x1xf32>
    %1044 = arith.addf %1039, %1043 : vector<4x1xf32>
    %1045 = vector.broadcast %11 : vector<1x1xf32> to vector<4x1xf32>
    %1046 = arith.addf %1044, %1045 : vector<4x1xf32>
    %c0_257 = arith.constant 0 : index
    %c0_258 = arith.constant 0 : index
    %1047 = vector.load %arg3[%c0_257, %c0_258] : memref<4x1xf32, #tpu.memory_space<vmem>>, vector<4x1xf32>
    tpu.vector_store %arg3[%c0_257, %c0_258], %1046 {strides = array<i32>} : memref<4x1xf32, #tpu.memory_space<vmem>>, vector<4x1xf32>,
    return
  }
}

</mosaic_0001>

<llo_original>
// kernel: alstm2_forward.1
$region0: #{alstm2_forward.1}
  #allocation0 [shape = 'u32[]', space=smem, size = 0x4, offset = 0x4, fixed_abs, tag = 'smem constant byte address 0x4 - core index']
  #allocation1 [shape = 'u32[144,128]{1,0:T(1,128)}', space=vmem, size = 0x12000, scoped, tag = 'internal scratch']
  #allocation2 [shape = 'f32[16,4,96]{2,1,0:T(4,128)}', space=vmem, size = 0x8000, scoped, tag = 'scratch operand']
  #allocation3 [shape = 'f32[16,4,32]{2,1,0:T(4,128)}', space=vmem, size = 0x8000, scoped, tag = 'scratch operand']
  %s0 = inlined_call_operand.vmem [shape: f32[64,6], index: 0, kind: input, shape index: {}]
  %s1 = inlined_call_operand.vmem [shape: f32[256,128], index: 1, kind: input, shape index: {}]
  %s2 = inlined_call_operand.vmem [shape: f32[8,128], index: 2, kind: input, shape index: {}]
  %s3 = inlined_call_operand.vmem [shape: f32[4,1], index: 3, kind: output, shape index: {}]
  %s4 = sld [smem:[#allocation0]]
  $region22: #{alstm2_forward.1} parent=0
    _
  %s6 = ssub.s32 1, %s4
  %s7 = scalar_select 0, %s6, %s4
  // Predicated region
  $region2: #{alstm2_forward.1} parent=0 // pred_check
    _
  $region3: #{alstm2_forward.1} parent=0 // pred_check_branch
    %9 = sbr.rel (0) target = $region5
  $region4: #{alstm2_forward.1} parent=0 // pred_region
    _
  $region5: #{alstm2_forward.1} parent=0 // pred_fallthru
    _
  // Predicated region
  $region6: #{alstm2_forward.1} parent=0 // pred_check
    _
  $region7: #{alstm2_forward.1} parent=0 // pred_check_branch
    %11 = sbr.rel (0) target = $region9
  $region8: #{alstm2_forward.1} parent=0 // pred_region
    _
  $region9: #{alstm2_forward.1} parent=0 // pred_fallthru
    _
  // Predicated region
  $region10: #{alstm2_forward.1} parent=0 // pred_check
    _
  $region11: #{alstm2_forward.1} parent=0 // pred_check_branch
    %13 = sbr.rel (0) target = $region13
  $region12: #{alstm2_forward.1} parent=0 // pred_region
    _
  $region13: #{alstm2_forward.1} parent=0 // pred_fallthru
    _
  %v14 = vld [vmem:[%s1] sm:$0xff]
  %v15 = vld [vmem:[%s1 + $0x8] sm:$0xff]
  %v16 = vld [vmem:[%s1 + $0x10] sm:$0xff]
  %v17 = vld [vmem:[%s1 + $0x18] sm:$0xff]
  %v18 = vld [vmem:[%s1 + $0x20] sm:$0xff]
  %v19 = vld [vmem:[%s1 + $0x28] sm:$0xff]
  %v20 = vld [vmem:[%s1 + $0x30] sm:$0xff]
  %v21 = vld [vmem:[%s1 + $0x38] sm:$0xff]
  %v22 = vld [vmem:[%s1 + $0x40] sm:$0xff]
  %v23 = vld [vmem:[%s1 + $0x48] sm:$0xff]
  %v24 = vld [vmem:[%s1 + $0x50] sm:$0xff]
  %v25 = vld [vmem:[%s1 + $0x58] sm:$0xff]
  %v26 = vld [vmem:[%s1 + $0x60] sm:$0x3f]
  %v27 = vld [vmem:[%s1 + $0x68] sm:$0xff]
  %v28 = vld [vmem:[%s1 + $0x70] sm:$0xff]
  %v29 = vld [vmem:[%s1 + $0x78] sm:$0xff]
  %v30 = vld [vmem:[%s1 + $0x80] sm:$0xff]
  %v31 = vld [vmem:[%s1 + $0x88] sm:$0xff]
  %v32 = vld [vmem:[%s1 + $0x90] sm:$0xff]
  %v33 = vld [vmem:[%s1 + $0x98] sm:$0xff]
  %v34 = vld [vmem:[%s1 + $0xa0] sm:$0xff]
  %v35 = vld [vmem:[%s1 + $0xa8] sm:$0xff]
  %v36 = vld [vmem:[%s1 + $0xb0] sm:$0xff]
  %v37 = vld [vmem:[%s1 + $0xb8] sm:$0xff]
  %v38 = vld [vmem:[%s1 + $0xc0] sm:$0xff]
  %v39 = vld [vmem:[%s1 + $0xc8] sm:$0xff]
  %v40 = vld [vmem:[%s1 + $0xd0] sm:$0xff]
  %v41 = vld [vmem:[%s1 + $0xd8] sm:$0xff]
  %v42 = vld [vmem:[%s1 + $0xe0] sm:$0xff]
  %v43 = vld [vmem:[%s1 + $0xe8] sm:$0xff]
  %v44 = vld [vmem:[%s1 + $0xf0] sm:$0xff]
  %v45 = vld [vmem:[%s1 + $0xf8] sm:$0x3]
  %v46 = vld [vmem:[%s2] sm:$0x1]
  %v47 = vld [vmem:[%s2 + $0x1] sm:$0x1]
  %v48 = vld [vmem:[%s2 + $0x2] sm:$0x1]
  %v49 = vld [vmem:[%s2 + $0x3] sm:$0x1]
  %v50 = vld [vmem:[%s2 + $0x4] sm:$0x1]
  %v51 = vld [vmem:[%s0] sm:$0xff]
  %v52 = vld [vmem:[%s0 + $0x8] sm:$0xff]
  %v53 = vld [vmem:[%s0 + $0x10] sm:$0xff]
  %v54 = vld [vmem:[%s0 + $0x18] sm:$0xff]
  %v55 = vld [vmem:[%s0 + $0x20] sm:$0xff]
  %v56 = vld [vmem:[%s0 + $0x28] sm:$0xff]
  %v57 = vld [vmem:[%s0 + $0x30] sm:$0xff]
  %v58 = vld [vmem:[%s0 + $0x38] sm:$0xff]
  %vm67 = vcmask 1043456
  %v68 = vrot.slane %v51, 4
  %v69 = vrot.slane %v52, 4
  %v70 = vsel %vm67, %v68, %v69
  %v71 = vrot.slane %v53, 4
  %v72 = vsel %vm67, %v69, %v71
  %v73 = vrot.slane %v54, 4
  %v74 = vsel %vm67, %v71, %v73
  %v75 = vrot.slane %v55, 4
  %v76 = vsel %vm67, %v73, %v75
  %v77 = vrot.slane %v56, 4
  %v78 = vsel %vm67, %v75, %v77
  %v79 = vrot.slane %v57, 4
  %v80 = vsel %vm67, %v77, %v79
  %v81 = vrot.slane %v58, 4
  %v82 = vsel %vm67, %v79, %v81
  %v91 = vsel %vm67, 0.0, %v68
  %v93 = vsel %vm67, %v81, 0.0
  %94 = vrot.lane.b32.xlu0 %v51, 6
  %v95 = vpop.permute.xlu0 %94
  %96 = vrot.lane.b32.xlu0 %v52, 6
  %v97 = vpop.permute.xlu0 %96
  %98 = vrot.lane.b32.xlu0 %v53, 6
  %v99 = vpop.permute.xlu0 %98
  %100 = vrot.lane.b32.xlu0 %v54, 6
  %v101 = vpop.permute.xlu0 %100
  %102 = vrot.lane.b32.xlu0 %v55, 6
  %v103 = vpop.permute.xlu0 %102
  %104 = vrot.lane.b32.xlu0 %v56, 6
  %v105 = vpop.permute.xlu0 %104
  %106 = vrot.lane.b32.xlu0 %v57, 6
  %v107 = vpop.permute.xlu0 %106
  %108 = vrot.lane.b32.xlu0 %v58, 6
  %v109 = vpop.permute.xlu0 %108
  %119 = vrot.lane.b32.xlu0 %v70, 12
  %v120 = vpop.permute.xlu0 %119
  %121 = vrot.lane.b32.xlu0 %v72, 12
  %v122 = vpop.permute.xlu0 %121
  %123 = vrot.lane.b32.xlu0 %v74, 12
  %v124 = vpop.permute.xlu0 %123
  %125 = vrot.lane.b32.xlu0 %v76, 12
  %v126 = vpop.permute.xlu0 %125
  %127 = vrot.lane.b32.xlu0 %v78, 12
  %v128 = vpop.permute.xlu0 %127
  %129 = vrot.lane.b32.xlu0 %v80, 12
  %v130 = vpop.permute.xlu0 %129
  %131 = vrot.lane.b32.xlu0 %v82, 12
  %v132 = vpop.permute.xlu0 %131
  %133 = vrot.lane.b32.xlu0 %v93, 12
  %v134 = vpop.permute.xlu0 %133
  %vm143 = vcmask 48128
  %v144 = vsel %vm143, %v91, %v95
  %v145 = vsel %vm143, %v70, %v97
  %v146 = vsel %vm143, %v72, %v99
  %v147 = vsel %vm143, %v74, %v101
  %v148 = vsel %vm143, %v76, %v103
  %v149 = vsel %vm143, %v78, %v105
  %v150 = vsel %vm143, %v80, %v107
  %v151 = vsel %vm143, %v82, %v109
  %vm152 = vcmask 97280
  %v153 = vsel %vm152, %v144, %v120
  %v154 = vsel %vm152, %v145, %v122
  %v155 = vsel %vm152, %v146, %v124
  %v156 = vsel %vm152, %v147, %v126
  %v157 = vsel %vm152, %v148, %v128
  %v158 = vsel %vm152, %v149, %v130
  %v159 = vsel %vm152, %v150, %v132
  %v160 = vsel %vm152, %v151, %v134
  %v161 = vlaneseq
  %v162 = vshrl.u32 %v161, 7
  %v163 = vsub.s32 0, %v162
  %v164 = vrot.slane %v46, %v163
  %vm165 = vcmask 146432
  %v167 = vsel %vm165, %v153, 0
  %v170 = vsel %vm165, %v154, 0
  %v173 = vsel %vm165, %v155, 0
  %v176 = vsel %vm165, %v156, 0
  %v179 = vsel %vm165, %v157, 0
  %v182 = vsel %vm165, %v158, 0
  %v185 = vsel %vm165, %v159, 0
  %v188 = vsel %vm165, %v160, 0
  %vm190 = vcmask 1041408
  %v192 = vsel %vm190, %v45, 0
  %194 = vmatprep.subr.mxu0 0.0
  %195 = vmatpush1.msra.mxu0 0.0
  %196 = vmatprep.subr.mxu0 0.0
  %197 = vmatpush1.msra.mxu0 0.0
  %198 = vmatprep.subr.mxu0 0.0
  %199 = vmatpush1.msra.mxu0 0.0
  %200 = vmatprep.subr.mxu0 0.0
  %201 = vmatpush1.msra.mxu0 0.0
  %202 = vmatprep.subr.mxu0 0.0
  %203 = vmatpush1.msra.mxu0 0.0
  %204 = vmatprep.subr.mxu0 0.0
  %205 = vmatpush1.msra.mxu0 0.0
  %206 = vmatprep.subr.mxu0 0.0
  %207 = vmatpush1.msra.mxu0 0.0
  %208 = vmatprep.subr.mxu0 0.0
  %209 = vmatpush1.msra.mxu0 0.0
  %210 = vmatprep.subr.mxu0 0.0
  %211 = vmatpush1.msra.mxu0 0.0
  %212 = vmatprep.subr.mxu0 0.0
  %213 = vmatpush1.msra.mxu0 0.0
  %214 = vmatprep.subr.mxu0 0.0
  %215 = vmatpush1.msra.mxu0 0.0
  %216 = vmatprep.subr.mxu0 0.0
  %217 = vmatpush1.msra.mxu0 0.0
  %218 = vmatprep.subr.mxu0 0.0
  %219 = vmatpush1.msra.mxu0 0.0
  %220 = vmatprep.subr.mxu0 0.0
  %221 = vmatpush1.msra.mxu0 %v192
  %222 = vmatprep.subr.mxu0 0.0
  %223 = vmatpush1.msra.mxu0 %v44
  %224 = vmatprep.subr.mxu0 0.0
  %225 = vmatpush1.msra.mxu0 %v43
  %226 = vmatprep.subr.mxu0 0.0
  %227 = vmatpush2.msra.mxu0 0.0
  %228 = vmatprep.subr.mxu0 0.0
  %229 = vmatpush2.msra.mxu0 0.0
  %230 = vmatprep.subr.mxu0 0.0
  %231 = vmatpush2.msra.mxu0 0.0
  %232 = vmatprep.subr.mxu0 0.0
  %233 = vmatpush2.msra.mxu0 0.0
  %234 = vmatprep.subr.mxu0 0.0
  %235 = vmatpush2.msra.mxu0 0.0
  %236 = vmatprep.subr.mxu0 0.0
  %237 = vmatpush2.msra.mxu0 0.0
  %238 = vmatprep.subr.mxu0 0.0
  %239 = vmatpush2.msra.mxu0 0.0
  %240 = vmatprep.subr.mxu0 0.0
  %241 = vmatpush2.msra.mxu0 0.0
  %242 = vmatprep.subr.mxu0 0.0
  %243 = vmatpush2.msra.mxu0 0.0
  %244 = vmatprep.subr.mxu0 0.0
  %245 = vmatpush2.msra.mxu0 0.0
  %246 = vmatprep.subr.mxu0 0.0
  %247 = vmatpush2.msra.mxu0 0.0
  %248 = vmatprep.subr.mxu0 0.0
  %249 = vmatpush2.msra.mxu0 0.0
  %250 = vmatprep.subr.mxu0 0.0
  %251 = vmatpush2.msra.mxu0 0.0
  %252 = vmatprep.subr.mxu0 0.0
  %253 = vmatpush2.msra.mxu0 0.0
  %254 = vmatprep.subr.mxu0 0.0
  %255 = vmatpush2.msra.mxu0 0.0
  %256 = vmatprep.subr.mxu0 0.0
  %257 = vmatpush2.msra.mxu0 0.0
  %258 = vmatprep.mubr.f32.mxu0 0.0
  %259 = vmatmul.mubr.f32.gmra.mxu0 %v167
  %v260 = vpop.f32.mrf.mxu0
  %v261 = vadd.f32 %v164, %v260
  %v262 = vpop.f32.mrf.mxu0
  %263 = vmatprep.mubr.f32.mxu0 0.0
  %264 = vmatmul.mubr.f32.gmra.mxu0 %v170
  %v265 = vpop.f32.mrf.mxu0
  %v266 = vadd.f32 %v164, %v265
  %v267 = vpop.f32.mrf.mxu0
  %268 = vmatprep.mubr.f32.mxu0 0.0
  %269 = vmatmul.mubr.f32.gmra.mxu0 %v173
  %v270 = vpop.f32.mrf.mxu0
  %v271 = vadd.f32 %v164, %v270
  %v272 = vpop.f32.mrf.mxu0
  %273 = vmatprep.mubr.f32.mxu0 0.0
  %274 = vmatmul.mubr.f32.gmra.mxu0 %v176
  %v275 = vpop.f32.mrf.mxu0
  %v276 = vadd.f32 %v164, %v275
  %v277 = vpop.f32.mrf.mxu0
  %278 = vmatprep.mubr.f32.mxu0 0.0
  %279 = vmatmul.mubr.f32.gmra.mxu0 %v179
  %v280 = vpop.f32.mrf.mxu0
  %v281 = vadd.f32 %v164, %v280
  %v282 = vpop.f32.mrf.mxu0
  %283 = vmatprep.mubr.f32.mxu0 0.0
  %284 = vmatmul.mubr.f32.gmra.mxu0 %v182
  %v285 = vpop.f32.mrf.mxu0
  %v286 = vadd.f32 %v164, %v285
  %v287 = vpop.f32.mrf.mxu0
  %288 = vmatprep.mubr.f32.mxu0 0.0
  %289 = vmatmul.mubr.f32.gmra.mxu0 %v185
  %v290 = vpop.f32.mrf.mxu0
  %v291 = vadd.f32 %v164, %v290
  %v292 = vpop.f32.mrf.mxu0
  %293 = vmatprep.mubr.f32.mxu0 0.0
  %294 = vmatmul.mubr.f32.gmra.mxu0 %v188
  %v295 = vpop.f32.mrf.mxu0
  %v296 = vadd.f32 %v164, %v295
  %v297 = vpop.f32.mrf.mxu0
  %298 = vdwg.mxu0
  %v299 = vmax.f32 %v261, 0.0
  %v300 = vmax.f32 %v266, 0.0
  %v301 = vmax.f32 %v271, 0.0
  %v302 = vmax.f32 %v276, 0.0
  %v303 = vmax.f32 %v281, 0.0
  %v304 = vmax.f32 %v286, 0.0
  %v305 = vmax.f32 %v291, 0.0
  %v306 = vmax.f32 %v296, 0.0
  %v315 = vrot.slane %v299, 4
  %v316 = vrot.slane %v300, 4
  %v317 = vsel %vm67, %v315, %v316
  %v318 = vrot.slane %v301, 4
  %v319 = vsel %vm67, %v316, %v318
  %v320 = vrot.slane %v302, 4
  %v321 = vsel %vm67, %v318, %v320
  %v322 = vrot.slane %v303, 4
  %v323 = vsel %vm67, %v320, %v322
  %v324 = vrot.slane %v304, 4
  %v325 = vsel %vm67, %v322, %v324
  %v326 = vrot.slane %v305, 4
  %v327 = vsel %vm67, %v324, %v326
  %v328 = vrot.slane %v306, 4
  %v329 = vsel %vm67, %v326, %v328
  %v338 = vsel %vm67, 0.0, %v315
  %v340 = vsel %vm67, %v328, 0.0
  %341 = vrot.lane.b32.xlu0 %v299, 32
  %v342 = vpop.permute.xlu0 %341
  %343 = vrot.lane.b32.xlu0 %v300, 32
  %v344 = vpop.permute.xlu0 %343
  %345 = vrot.lane.b32.xlu0 %v301, 32
  %v346 = vpop.permute.xlu0 %345
  %347 = vrot.lane.b32.xlu0 %v302, 32
  %v348 = vpop.permute.xlu0 %347
  %349 = vrot.lane.b32.xlu0 %v303, 32
  %v350 = vpop.permute.xlu0 %349
  %351 = vrot.lane.b32.xlu0 %v304, 32
  %v352 = vpop.permute.xlu0 %351
  %353 = vrot.lane.b32.xlu0 %v305, 32
  %v354 = vpop.permute.xlu0 %353
  %355 = vrot.lane.b32.xlu0 %v306, 32
  %v356 = vpop.permute.xlu0 %355
  %366 = vrot.lane.b32.xlu0 %v317, 64
  %v367 = vpop.permute.xlu0 %366
  %368 = vrot.lane.b32.xlu0 %v319, 64
  %v369 = vpop.permute.xlu0 %368
  %370 = vrot.lane.b32.xlu0 %v321, 64
  %v371 = vpop.permute.xlu0 %370
  %372 = vrot.lane.b32.xlu0 %v323, 64
  %v373 = vpop.permute.xlu0 %372
  %374 = vrot.lane.b32.xlu0 %v325, 64
  %v375 = vpop.permute.xlu0 %374
  %376 = vrot.lane.b32.xlu0 %v327, 64
  %v377 = vpop.permute.xlu0 %376
  %378 = vrot.lane.b32.xlu0 %v329, 64
  %v379 = vpop.permute.xlu0 %378
  %380 = vrot.lane.b32.xlu0 %v340, 64
  %v381 = vpop.permute.xlu0 %380
  %vm390 = vcmask 261120
  %v391 = vsel %vm390, %v338, %v342
  %v392 = vsel %vm390, %v317, %v344
  %v393 = vsel %vm390, %v319, %v346
  %v394 = vsel %vm390, %v321, %v348
  %v395 = vsel %vm390, %v323, %v350
  %v396 = vsel %vm390, %v325, %v352
  %v397 = vsel %vm390, %v327, %v354
  %v398 = vsel %vm390, %v329, %v356
  %vm399 = vcmask 523264
  %v400 = vsel %vm399, %v391, %v367
  %v401 = vsel %vm399, %v392, %v369
  %v402 = vsel %vm399, %v393, %v371
  %v403 = vsel %vm399, %v394, %v373
  %v404 = vsel %vm399, %v395, %v375
  %v405 = vsel %vm399, %v396, %v377
  %v406 = vsel %vm399, %v397, %v379
  %v407 = vsel %vm399, %v398, %v381
  %409 = vrot.lane.b32.xlu0 %v164, 96
  %v410 = vpop.permute.xlu0 %409
  %vm412 = vcmask 785408
  %v414 = vsel %vm412, %v400, 0
  %v417 = vsel %vm412, %v401, 0
  %v420 = vsel %vm412, %v402, 0
  %v423 = vsel %vm412, %v403, 0
  %v426 = vsel %vm412, %v404, 0
  %v429 = vsel %vm412, %v405, 0
  %v432 = vsel %vm412, %v406, 0
  %v435 = vsel %vm412, %v407, 0
  %437 = vmatprep.subr.mxu0 0.0
  %438 = vmatpush1.msra.mxu0 0.0
  %439 = vmatprep.subr.mxu0 0.0
  %440 = vmatpush1.msra.mxu0 0.0
  %441 = vmatprep.subr.mxu0 0.0
  %442 = vmatpush1.msra.mxu0 0.0
  %443 = vmatprep.subr.mxu0 0.0
  %444 = vmatpush1.msra.mxu0 0.0
  %445 = vmatprep.subr.mxu0 0.0
  %446 = vmatpush1.msra.mxu0 %v42
  %447 = vmatprep.subr.mxu0 0.0
  %448 = vmatpush1.msra.mxu0 %v41
  %449 = vmatprep.subr.mxu0 0.0
  %450 = vmatpush1.msra.mxu0 %v40
  %451 = vmatprep.subr.mxu0 0.0
  %452 = vmatpush1.msra.mxu0 %v39
  %453 = vmatprep.subr.mxu0 0.0
  %454 = vmatpush1.msra.mxu0 %v38
  %455 = vmatprep.subr.mxu0 0.0
  %456 = vmatpush1.msra.mxu0 %v37
  %457 = vmatprep.subr.mxu0 0.0
  %458 = vmatpush1.msra.mxu0 %v36
  %459 = vmatprep.subr.mxu0 0.0
  %460 = vmatpush1.msra.mxu0 %v35
  %461 = vmatprep.subr.mxu0 0.0
  %462 = vmatpush1.msra.mxu0 %v34
  %463 = vmatprep.subr.mxu0 0.0
  %464 = vmatpush1.msra.mxu0 %v33
  %465 = vmatprep.subr.mxu0 0.0
  %466 = vmatpush1.msra.mxu0 %v32
  %467 = vmatprep.subr.mxu0 0.0
  %468 = vmatpush1.msra.mxu0 %v31
  %469 = vmatprep.subr.mxu0 0.0
  %470 = vmatpush2.msra.mxu0 0.0
  %471 = vmatprep.subr.mxu0 0.0
  %472 = vmatpush2.msra.mxu0 0.0
  %473 = vmatprep.subr.mxu0 0.0
  %474 = vmatpush2.msra.mxu0 0.0
  %475 = vmatprep.subr.mxu0 0.0
  %476 = vmatpush2.msra.mxu0 0.0
  %477 = vmatprep.subr.mxu0 0.0
  %478 = vmatpush2.msra.mxu0 0.0
  %479 = vmatprep.subr.mxu0 0.0
  %480 = vmatpush2.msra.mxu0 0.0
  %481 = vmatprep.subr.mxu0 0.0
  %482 = vmatpush2.msra.mxu0 0.0
  %483 = vmatprep.subr.mxu0 0.0
  %484 = vmatpush2.msra.mxu0 0.0
  %485 = vmatprep.subr.mxu0 0.0
  %486 = vmatpush2.msra.mxu0 0.0
  %487 = vmatprep.subr.mxu0 0.0
  %488 = vmatpush2.msra.mxu0 0.0
  %489 = vmatprep.subr.mxu0 0.0
  %490 = vmatpush2.msra.mxu0 0.0
  %491 = vmatprep.subr.mxu0 0.0
  %492 = vmatpush2.msra.mxu0 0.0
  %493 = vmatprep.subr.mxu0 0.0
  %494 = vmatpush2.msra.mxu0 0.0
  %495 = vmatprep.subr.mxu0 0.0
  %496 = vmatpush2.msra.mxu0 0.0
  %497 = vmatprep.subr.mxu0 0.0
  %498 = vmatpush2.msra.mxu0 0.0
  %499 = vmatprep.subr.mxu0 0.0
  %500 = vmatpush2.msra.mxu0 0.0
  %501 = vmatprep.mubr.f32.mxu0 0.0
  %502 = vmatmul.mubr.f32.gmra.mxu0 %v414
  %v503 = vpop.f32.mrf.mxu0
  %v504 = vadd.f32 %v410, %v503
  %v505 = vpop.f32.mrf.mxu0
  %506 = vmatprep.mubr.f32.mxu0 0.0
  %507 = vmatmul.mubr.f32.gmra.mxu0 %v417
  %v508 = vpop.f32.mrf.mxu0
  %v509 = vadd.f32 %v410, %v508
  %v510 = vpop.f32.mrf.mxu0
  %511 = vmatprep.mubr.f32.mxu0 0.0
  %512 = vmatmul.mubr.f32.gmra.mxu0 %v420
  %v513 = vpop.f32.mrf.mxu0
  %v514 = vadd.f32 %v410, %v513
  %v515 = vpop.f32.mrf.mxu0
  %516 = vmatprep.mubr.f32.mxu0 0.0
  %517 = vmatmul.mubr.f32.gmra.mxu0 %v423
  %v518 = vpop.f32.mrf.mxu0
  %v519 = vadd.f32 %v410, %v518
  %v520 = vpop.f32.mrf.mxu0
  %521 = vmatprep.mubr.f32.mxu0 0.0
  %522 = vmatmul.mubr.f32.gmra.mxu0 %v426
  %v523 = vpop.f32.mrf.mxu0
  %v524 = vadd.f32 %v410, %v523
  %v525 = vpop.f32.mrf.mxu0
  %526 = vmatprep.mubr.f32.mxu0 0.0
  %527 = vmatmul.mubr.f32.gmra.mxu0 %v429
  %v528 = vpop.f32.mrf.mxu0
  %v529 = vadd.f32 %v410, %v528
  %v530 = vpop.f32.mrf.mxu0
  %531 = vmatprep.mubr.f32.mxu0 0.0
  %532 = vmatmul.mubr.f32.gmra.mxu0 %v432
  %v533 = vpop.f32.mrf.mxu0
  %v534 = vadd.f32 %v410, %v533
  %v535 = vpop.f32.mrf.mxu0
  %536 = vmatprep.mubr.f32.mxu0 0.0
  %537 = vmatmul.mubr.f32.gmra.mxu0 %v435
  %v538 = vpop.f32.mrf.mxu0
  %v539 = vadd.f32 %v410, %v538
  %v540 = vpop.f32.mrf.mxu0
  %541 = vdwg.mxu0
  %v542 = vmax.f32 %v504, 0.0
  %v543 = vmax.f32 %v509, 0.0
  %v544 = vmax.f32 %v514, 0.0
  %v545 = vmax.f32 %v519, 0.0
  %v546 = vmax.f32 %v524, 0.0
  %v547 = vmax.f32 %v529, 0.0
  %v548 = vmax.f32 %v534, 0.0
  %v549 = vmax.f32 %v539, 0.0
  %v558 = vcombine.high %v542, %v542
  %v559 = vcombine.high %v543, %v543
  %v560 = vcombine.high %v544, %v544
  %v561 = vcombine.high %v545, %v545
  %v562 = vcombine.high %v546, %v546
  %v563 = vcombine.high %v547, %v547
  %v564 = vcombine.high %v548, %v548
  %v565 = vcombine.high %v549, %v549
  %vm574 = vcmask 257024
  %v575 = vsel %vm574, %v542, 0.0
  %v576 = vsel %vm574, %v558, 0.0
  %v577 = vadd.f32 %v575, %v576
  %v578 = vsel %vm574, %v543, 0.0
  %v579 = vadd.f32 %v577, %v578
  %v580 = vsel %vm574, %v559, 0.0
  %v581 = vadd.f32 %v579, %v580
  %v582 = vsel %vm574, %v544, 0.0
  %v583 = vadd.f32 %v581, %v582
  %v584 = vsel %vm574, %v560, 0.0
  %v585 = vadd.f32 %v583, %v584
  %v586 = vsel %vm574, %v545, 0.0
  %v587 = vadd.f32 %v585, %v586
  %v588 = vsel %vm574, %v561, 0.0
  %v589 = vadd.f32 %v587, %v588
  %v590 = vsel %vm574, %v546, 0.0
  %v591 = vadd.f32 %v589, %v590
  %v592 = vsel %vm574, %v562, 0.0
  %v593 = vadd.f32 %v591, %v592
  %v594 = vsel %vm574, %v547, 0.0
  %v595 = vadd.f32 %v593, %v594
  %v596 = vsel %vm574, %v563, 0.0
  %v597 = vadd.f32 %v595, %v596
  %v598 = vsel %vm574, %v548, 0.0
  %v599 = vadd.f32 %v597, %v598
  %v600 = vsel %vm574, %v564, 0.0
  %v601 = vadd.f32 %v599, %v600
  %v602 = vsel %vm574, %v549, 0.0
  %v603 = vadd.f32 %v601, %v602
  %v604 = vsel %vm574, %v565, 0.0
  %v605 = vadd.f32 %v603, %v604
  %v606 = vrcp.pop 16.0
  %v607 = vmul.f32 %v605, %v606
  %v608 = vlaneseq
  %v609 = vshrl.u32 %v608, 7
  %v610 = vsub.s32 0, %v609
  %v611 = vrot.slane %v48, %v610
  %v612 = vsel %vm143, %v51, 0
  %v614 = vsel %vm143, %v52, 0
  %v616 = vsel %vm143, %v53, 0
  %v618 = vsel %vm143, %v54, 0
  %v620 = vsel %vm143, %v55, 0
  %v622 = vsel %vm143, %v56, 0
  %v624 = vsel %vm143, %v57, 0
  %v626 = vsel %vm143, %v58, 0
  %vm628 = vcmask 1045504
  %v630 = vsel %vm628, %v26, 0
  %632 = vmatprep.subr.mxu0 0.0
  %633 = vmatpush1.msra.mxu0 0.0
  %634 = vmatprep.subr.mxu0 0.0
  %635 = vmatpush1.msra.mxu0 0.0
  %636 = vmatprep.subr.mxu0 0.0
  %637 = vmatpush1.msra.mxu0 0.0
  %638 = vmatprep.subr.mxu0 0.0
  %639 = vmatpush1.msra.mxu0 0.0
  %640 = vmatprep.subr.mxu0 0.0
  %641 = vmatpush1.msra.mxu0 0.0
  %642 = vmatprep.subr.mxu0 0.0
  %643 = vmatpush1.msra.mxu0 0.0
  %644 = vmatprep.subr.mxu0 0.0
  %645 = vmatpush1.msra.mxu0 0.0
  %646 = vmatprep.subr.mxu0 0.0
  %647 = vmatpush1.msra.mxu0 0.0
  %648 = vmatprep.subr.mxu0 0.0
  %649 = vmatpush1.msra.mxu0 0.0
  %650 = vmatprep.subr.mxu0 0.0
  %651 = vmatpush1.msra.mxu0 0.0
  %652 = vmatprep.subr.mxu0 0.0
  %653 = vmatpush1.msra.mxu0 0.0
  %654 = vmatprep.subr.mxu0 0.0
  %655 = vmatpush1.msra.mxu0 0.0
  %656 = vmatprep.subr.mxu0 0.0
  %657 = vmatpush1.msra.mxu0 0.0
  %658 = vmatprep.subr.mxu0 0.0
  %659 = vmatpush1.msra.mxu0 0.0
  %660 = vmatprep.subr.mxu0 0.0
  %661 = vmatpush1.msra.mxu0 0.0
  %662 = vmatprep.subr.mxu0 0.0
  %663 = vmatpush1.msra.mxu0 %v630
  %664 = vmatprep.subr.mxu0 0.0
  %665 = vmatpush2.msra.mxu0 0.0
  %666 = vmatprep.subr.mxu0 0.0
  %667 = vmatpush2.msra.mxu0 0.0
  %668 = vmatprep.subr.mxu0 0.0
  %669 = vmatpush2.msra.mxu0 0.0
  %670 = vmatprep.subr.mxu0 0.0
  %671 = vmatpush2.msra.mxu0 0.0
  %672 = vmatprep.subr.mxu0 0.0
  %673 = vmatpush2.msra.mxu0 0.0
  %674 = vmatprep.subr.mxu0 0.0
  %675 = vmatpush2.msra.mxu0 0.0
  %676 = vmatprep.subr.mxu0 0.0
  %677 = vmatpush2.msra.mxu0 0.0
  %678 = vmatprep.subr.mxu0 0.0
  %679 = vmatpush2.msra.mxu0 0.0
  %680 = vmatprep.subr.mxu0 0.0
  %681 = vmatpush2.msra.mxu0 0.0
  %682 = vmatprep.subr.mxu0 0.0
  %683 = vmatpush2.msra.mxu0 0.0
  %684 = vmatprep.subr.mxu0 0.0
  %685 = vmatpush2.msra.mxu0 0.0
  %686 = vmatprep.subr.mxu0 0.0
  %687 = vmatpush2.msra.mxu0 0.0
  %688 = vmatprep.subr.mxu0 0.0
  %689 = vmatpush2.msra.mxu0 0.0
  %690 = vmatprep.subr.mxu0 0.0
  %691 = vmatpush2.msra.mxu0 0.0
  %692 = vmatprep.subr.mxu0 0.0
  %693 = vmatpush2.msra.mxu0 0.0
  %694 = vmatprep.subr.mxu0 0.0
  %695 = vmatpush2.msra.mxu0 0.0
  %696 = vmatprep.mubr.f32.mxu0 0.0
  %697 = vmatmul.mubr.f32.gmra.mxu0 %v612
  %v698 = vpop.f32.mrf.mxu0
  %v699 = vadd.f32 %v611, %v698
  %v700 = vpop.f32.mrf.mxu0
  %701 = vmatprep.mubr.f32.mxu0 0.0
  %702 = vmatmul.mubr.f32.gmra.mxu0 %v614
  %v703 = vpop.f32.mrf.mxu0
  %v704 = vadd.f32 %v611, %v703
  %v705 = vpop.f32.mrf.mxu0
  %706 = vmatprep.mubr.f32.mxu0 0.0
  %707 = vmatmul.mubr.f32.gmra.mxu0 %v616
  %v708 = vpop.f32.mrf.mxu0
  %v709 = vadd.f32 %v611, %v708
  %v710 = vpop.f32.mrf.mxu0
  %711 = vmatprep.mubr.f32.mxu0 0.0
  %712 = vmatmul.mubr.f32.gmra.mxu0 %v618
  %v713 = vpop.f32.mrf.mxu0
  %v714 = vadd.f32 %v611, %v713
  %v715 = vpop.f32.mrf.mxu0
  %716 = vmatprep.mubr.f32.mxu0 0.0
  %717 = vmatmul.mubr.f32.gmra.mxu0 %v620
  %v718 = vpop.f32.mrf.mxu0
  %v719 = vadd.f32 %v611, %v718
  %v720 = vpop.f32.mrf.mxu0
  %721 = vmatprep.mubr.f32.mxu0 0.0
  %722 = vmatmul.mubr.f32.gmra.mxu0 %v622
  %v723 = vpop.f32.mrf.mxu0
  %v724 = vadd.f32 %v611, %v723
  %v725 = vpop.f32.mrf.mxu0
  %726 = vmatprep.mubr.f32.mxu0 0.0
  %727 = vmatmul.mubr.f32.gmra.mxu0 %v624
  %v728 = vpop.f32.mrf.mxu0
  %v729 = vadd.f32 %v611, %v728
  %v730 = vpop.f32.mrf.mxu0
  %731 = vmatprep.mubr.f32.mxu0 0.0
  %732 = vmatmul.mubr.f32.gmra.mxu0 %v626
  %v733 = vpop.f32.mrf.mxu0
  %v734 = vadd.f32 %v611, %v733
  %v735 = vpop.f32.mrf.mxu0
  %736 = vdwg.mxu0
  %v745 = vcombine.high %v699, %v699
  %v746 = vcombine.high %v704, %v704
  %v747 = vcombine.high %v709, %v709
  %v748 = vcombine.high %v714, %v714
  %v749 = vcombine.high %v719, %v719
  %v750 = vcombine.high %v724, %v724
  %v751 = vcombine.high %v729, %v729
  %v752 = vcombine.high %v734, %v734
  %vm761 = vcmask 781312
  %762 = vst.msk [vmem:[#allocation2] sm:$0xf] %vm761, %v699
  %763 = vst.msk [vmem:[#allocation2 + $0x4] sm:$0xf] %vm761, %v745
  %764 = vst.msk [vmem:[#allocation2 + $0x8] sm:$0xf] %vm761, %v704
  %765 = vst.msk [vmem:[#allocation2 + $0xc] sm:$0xf] %vm761, %v746
  %766 = vst.msk [vmem:[#allocation2 + $0x10] sm:$0xf] %vm761, %v709
  %767 = vst.msk [vmem:[#allocation2 + $0x14] sm:$0xf] %vm761, %v747
  %768 = vst.msk [vmem:[#allocation2 + $0x18] sm:$0xf] %vm761, %v714
  %769 = vst.msk [vmem:[#allocation2 + $0x1c] sm:$0xf] %vm761, %v748
  %770 = vst.msk [vmem:[#allocation2 + $0x20] sm:$0xf] %vm761, %v719
  %771 = vst.msk [vmem:[#allocation2 + $0x24] sm:$0xf] %vm761, %v749
  %772 = vst.msk [vmem:[#allocation2 + $0x28] sm:$0xf] %vm761, %v724
  %773 = vst.msk [vmem:[#allocation2 + $0x2c] sm:$0xf] %vm761, %v750
  %774 = vst.msk [vmem:[#allocation2 + $0x30] sm:$0xf] %vm761, %v729
  %775 = vst.msk [vmem:[#allocation2 + $0x34] sm:$0xf] %vm761, %v751
  %776 = vst.msk [vmem:[#allocation2 + $0x38] sm:$0xf] %vm761, %v734
  %777 = vst.msk [vmem:[#allocation2 + $0x3c] sm:$0xf] %vm761, %v752
  %v778 = vlaneseq
  %v779 = vshrl.u32 %v778, 7
  %v780 = vsub.s32 0, %v779
  %v781 = vrot.slane %v49, %v780
  %v783 = vsel %vm390, 0.0, 0
  %785 = vmatprep.subr.mxu0 0.0
  %786 = vmatpush1.msra.mxu0 0.0
  %787 = vmatprep.subr.mxu0 0.0
  %788 = vmatpush1.msra.mxu0 0.0
  %789 = vmatprep.subr.mxu0 0.0
  %790 = vmatpush1.msra.mxu0 0.0
  %791 = vmatprep.subr.mxu0 0.0
  %792 = vmatpush1.msra.mxu0 0.0
  %793 = vmatprep.subr.mxu0 0.0
  %794 = vmatpush1.msra.mxu0 0.0
  %795 = vmatprep.subr.mxu0 0.0
  %796 = vmatpush1.msra.mxu0 0.0
  %797 = vmatprep.subr.mxu0 0.0
  %798 = vmatpush1.msra.mxu0 0.0
  %799 = vmatprep.subr.mxu0 0.0
  %800 = vmatpush1.msra.mxu0 0.0
  %801 = vmatprep.subr.mxu0 0.0
  %802 = vmatpush1.msra.mxu0 0.0
  %803 = vmatprep.subr.mxu0 0.0
  %804 = vmatpush1.msra.mxu0 0.0
  %805 = vmatprep.subr.mxu0 0.0
  %806 = vmatpush1.msra.mxu0 0.0
  %807 = vmatprep.subr.mxu0 0.0
  %808 = vmatpush1.msra.mxu0 0.0
  %809 = vmatprep.subr.mxu0 0.0
  %810 = vmatpush1.msra.mxu0 %v25
  %811 = vmatprep.subr.mxu0 0.0
  %812 = vmatpush1.msra.mxu0 %v24
  %813 = vmatprep.subr.mxu0 0.0
  %814 = vmatpush1.msra.mxu0 %v23
  %815 = vmatprep.subr.mxu0 0.0
  %816 = vmatpush1.msra.mxu0 %v22
  %817 = vmatprep.subr.mxu0 0.0
  %818 = vmatpush2.msra.mxu0 0.0
  %819 = vmatprep.subr.mxu0 0.0
  %820 = vmatpush2.msra.mxu0 0.0
  %821 = vmatprep.subr.mxu0 0.0
  %822 = vmatpush2.msra.mxu0 0.0
  %823 = vmatprep.subr.mxu0 0.0
  %824 = vmatpush2.msra.mxu0 0.0
  %825 = vmatprep.subr.mxu0 0.0
  %826 = vmatpush2.msra.mxu0 0.0
  %827 = vmatprep.subr.mxu0 0.0
  %828 = vmatpush2.msra.mxu0 0.0
  %829 = vmatprep.subr.mxu0 0.0
  %830 = vmatpush2.msra.mxu0 0.0
  %831 = vmatprep.subr.mxu0 0.0
  %832 = vmatpush2.msra.mxu0 0.0
  %833 = vmatprep.subr.mxu0 0.0
  %834 = vmatpush2.msra.mxu0 0.0
  %835 = vmatprep.subr.mxu0 0.0
  %836 = vmatpush2.msra.mxu0 0.0
  %837 = vmatprep.subr.mxu0 0.0
  %838 = vmatpush2.msra.mxu0 0.0
  %839 = vmatprep.subr.mxu0 0.0
  %840 = vmatpush2.msra.mxu0 0.0
  %841 = vmatprep.subr.mxu0 0.0
  %842 = vmatpush2.msra.mxu0 0.0
  %843 = vmatprep.subr.mxu0 0.0
  %844 = vmatpush2.msra.mxu0 0.0
  %845 = vmatprep.subr.mxu0 0.0
  %846 = vmatpush2.msra.mxu0 0.0
  %847 = vmatprep.subr.mxu0 0.0
  %848 = vmatpush2.msra.mxu0 0.0
  %849 = vmatprep.mubr.f32.mxu0 0.0
  %850 = vmatmul.mubr.f32.gmra.mxu0 %v783
  %v851 = vpop.f32.mrf.mxu0
  %v852 = vadd.f32 %v781, %v851
  %v853 = vpop.f32.mrf.mxu0
  %854 = vdwg.mxu0
  %v855 = vld [vmem:[#allocation2] sm:$0xf]
  %v856 = vadd.f32 %v855, %v852
  %v857 = vxor.u32 %v856, 2147483648
  %v858 = vmul.f32 %v857, 1.442695
  %v859 = vpow.pop %v858
  %v860 = vadd.f32 %v859, 1.0
  %v861 = vrcp.pop %v860
  %v862 = vmul.f32 1.0, %v861
  %864 = vrot.lane.b32.xlu0 %v852, 64
  %v865 = vpop.permute.xlu0 %864
  %v867 = vmul.f32 %v862, %v865
  %869 = vrot.lane.b32.xlu0 %v867, 64
  %v870 = vpop.permute.xlu0 %869
  %v872 = vadd.f32 %v855, %v870
  %v873 = vtanh.pop %v872
  %v874 = vsub.f32 1.0, %v862
  %876 = vrot.lane.b32.xlu0 %v873, 96
  %v877 = vpop.permute.xlu0 %876
  %v879 = vmul.f32 %v874, %v877
  %v880 = vmul.f32 %v862, 0.0
  %v881 = vadd.f32 %v879, %v880
  %883 = vrot.lane.b32.xlu0 %v881, 96
  %v884 = vpop.permute.xlu0 %883
  %v886 = vsel %vm390, %v884, 0.0
  %v887 = vlaneseq
  %v888 = vshrl.u32 %v887, 7
  %v889 = vsub.s32 0, %v888
  %v890 = vrot.slane %v50, %v889
  %v892 = vsel %vm399, %v886, 0
  %894 = vmatprep.subr.mxu0 0.0
  %895 = vmatpush1.msra.mxu0 0.0
  %896 = vmatprep.subr.mxu0 0.0
  %897 = vmatpush1.msra.mxu0 0.0
  %898 = vmatprep.subr.mxu0 0.0
  %899 = vmatpush1.msra.mxu0 0.0
  %900 = vmatprep.subr.mxu0 0.0
  %901 = vmatpush1.msra.mxu0 0.0
  %902 = vmatprep.subr.mxu0 0.0
  %903 = vmatpush1.msra.mxu0 0.0
  %904 = vmatprep.subr.mxu0 0.0
  %905 = vmatpush1.msra.mxu0 0.0
  %906 = vmatprep.subr.mxu0 0.0
  %907 = vmatpush1.msra.mxu0 0.0
  %908 = vmatprep.subr.mxu0 0.0
  %909 = vmatpush1.msra.mxu0 0.0
  %910 = vmatprep.subr.mxu0 0.0
  %911 = vmatpush1.msra.mxu0 %v21
  %912 = vmatprep.subr.mxu0 0.0
  %913 = vmatpush1.msra.mxu0 %v20
  %914 = vmatprep.subr.mxu0 0.0
  %915 = vmatpush1.msra.mxu0 %v19
  %916 = vmatprep.subr.mxu0 0.0
  %917 = vmatpush1.msra.mxu0 %v18
  %918 = vmatprep.subr.mxu0 0.0
  %919 = vmatpush1.msra.mxu0 %v17
  %920 = vmatprep.subr.mxu0 0.0
  %921 = vmatpush1.msra.mxu0 %v16
  %922 = vmatprep.subr.mxu0 0.0
  %923 = vmatpush1.msra.mxu0 %v15
  %924 = vmatprep.subr.mxu0 0.0
  %925 = vmatpush1.msra.mxu0 %v14
  %926 = vmatprep.subr.mxu0 0.0
  %927 = vmatpush2.msra.mxu0 0.0
  %928 = vmatprep.subr.mxu0 0.0
  %929 = vmatpush2.msra.mxu0 0.0
  %930 = vmatprep.subr.mxu0 0.0
  %931 = vmatpush2.msra.mxu0 0.0
  %932 = vmatprep.subr.mxu0 0.0
  %933 = vmatpush2.msra.mxu0 0.0
  %934 = vmatprep.subr.mxu0 0.0
  %935 = vmatpush2.msra.mxu0 0.0
  %936 = vmatprep.subr.mxu0 0.0
  %937 = vmatpush2.msra.mxu0 0.0
  %938 = vmatprep.subr.mxu0 0.0
  %939 = vmatpush2.msra.mxu0 0.0
  %940 = vmatprep.subr.mxu0 0.0
  %941 = vmatpush2.msra.mxu0 0.0
  %942 = vmatprep.subr.mxu0 0.0
  %943 = vmatpush2.msra.mxu0 0.0
  %944 = vmatprep.subr.mxu0 0.0
  %945 = vmatpush2.msra.mxu0 0.0
  %946 = vmatprep.subr.mxu0 0.0
  %947 = vmatpush2.msra.mxu0 0.0
  %948 = vmatprep.subr.mxu0 0.0
  %949 = vmatpush2.msra.mxu0 0.0
  %950 = vmatprep.subr.mxu0 0.0
  %951 = vmatpush2.msra.mxu0 0.0
  %952 = vmatprep.subr.mxu0 0.0
  %953 = vmatpush2.msra.mxu0 0.0
  %954 = vmatprep.subr.mxu0 0.0
  %955 = vmatpush2.msra.mxu0 0.0
  %956 = vmatprep.subr.mxu0 0.0
  %957 = vmatpush2.msra.mxu0 0.0
  %958 = vmatprep.mubr.f32.mxu0 0.0
  %959 = vmatmul.mubr.f32.gmra.mxu0 %v892
  %v960 = vpop.f32.mrf.mxu0
  %v961 = vadd.f32 %v890, %v960
  %v962 = vpop.f32.mrf.mxu0
  %963 = vdwg.mxu0
  %v964 = vxor.u32 %v961, 2147483648
  %v965 = vmul.f32 %v964, 1.442695
  %v966 = vpow.pop %v965
  %v967 = vadd.f32 %v966, 1.0
  %v968 = vrcp.pop %v967
  %v969 = vmul.f32 1.0, %v968
  %971 = vrot.lane.b32.xlu0 %v961, 32
  %v972 = vpop.permute.xlu0 %971
  %v974 = vmul.f32 %v969, %v972
  %976 = vrot.lane.b32.xlu0 %v974, 64
  %v977 = vpop.permute.xlu0 %976
  %v979 = vadd.f32 %v961, %v977
  %v980 = vtanh.pop %v979
  %v981 = vsub.f32 1.0, %v969
  %983 = vrot.lane.b32.xlu0 %v980, 96
  %v984 = vpop.permute.xlu0 %983
  %v986 = vmul.f32 %v981, %v984
  %v987 = vmul.f32 %v969, 0.0
  %v988 = vadd.f32 %v986, %v987
  %990 = vrot.lane.b32.xlu0 %v988, 96
  %v991 = vpop.permute.xlu0 %990
  %993 = vst.msk [vmem:[#allocation3] sm:$0xf] %vm574, %v991
  %v994 = vsel %vm390, %v884, 0
  %996 = vmatprep.subr.mxu0 0.0
  %997 = vmatpush1.msra.mxu0 0.0
  %998 = vmatprep.subr.mxu0 0.0
  %999 = vmatpush1.msra.mxu0 0.0
  %1000 = vmatprep.subr.mxu0 0.0
  %1001 = vmatpush1.msra.mxu0 0.0
  %1002 = vmatprep.subr.mxu0 0.0
  %1003 = vmatpush1.msra.mxu0 0.0
  %1004 = vmatprep.subr.mxu0 0.0
  %1005 = vmatpush1.msra.mxu0 0.0
  %1006 = vmatprep.subr.mxu0 0.0
  %1007 = vmatpush1.msra.mxu0 0.0
  %1008 = vmatprep.subr.mxu0 0.0
  %1009 = vmatpush1.msra.mxu0 0.0
  %1010 = vmatprep.subr.mxu0 0.0
  %1011 = vmatpush1.msra.mxu0 0.0
  %1012 = vmatprep.subr.mxu0 0.0
  %1013 = vmatpush1.msra.mxu0 0.0
  %1014 = vmatprep.subr.mxu0 0.0
  %1015 = vmatpush1.msra.mxu0 0.0
  %1016 = vmatprep.subr.mxu0 0.0
  %1017 = vmatpush1.msra.mxu0 0.0
  %1018 = vmatprep.subr.mxu0 0.0
  %1019 = vmatpush1.msra.mxu0 0.0
  %1020 = vmatprep.subr.mxu0 0.0
  %1021 = vmatpush1.msra.mxu0 %v25
  %1022 = vmatprep.subr.mxu0 0.0
  %1023 = vmatpush1.msra.mxu0 %v24
  %1024 = vmatprep.subr.mxu0 0.0
  %1025 = vmatpush1.msra.mxu0 %v23
  %1026 = vmatprep.subr.mxu0 0.0
  %1027 = vmatpush1.msra.mxu0 %v22
  %1028 = vmatprep.subr.mxu0 0.0
  %1029 = vmatpush2.msra.mxu0 0.0
  %1030 = vmatprep.subr.mxu0 0.0
  %1031 = vmatpush2.msra.mxu0 0.0
  %1032 = vmatprep.subr.mxu0 0.0
  %1033 = vmatpush2.msra.mxu0 0.0
  %1034 = vmatprep.subr.mxu0 0.0
  %1035 = vmatpush2.msra.mxu0 0.0
  %1036 = vmatprep.subr.mxu0 0.0
  %1037 = vmatpush2.msra.mxu0 0.0
  %1038 = vmatprep.subr.mxu0 0.0
  %1039 = vmatpush2.msra.mxu0 0.0
  %1040 = vmatprep.subr.mxu0 0.0
  %1041 = vmatpush2.msra.mxu0 0.0
  %1042 = vmatprep.subr.mxu0 0.0
  %1043 = vmatpush2.msra.mxu0 0.0
  %1044 = vmatprep.subr.mxu0 0.0
  %1045 = vmatpush2.msra.mxu0 0.0
  %1046 = vmatprep.subr.mxu0 0.0
  %1047 = vmatpush2.msra.mxu0 0.0
  %1048 = vmatprep.subr.mxu0 0.0
  %1049 = vmatpush2.msra.mxu0 0.0
  %1050 = vmatprep.subr.mxu0 0.0
  %1051 = vmatpush2.msra.mxu0 0.0
  %1052 = vmatprep.subr.mxu0 0.0
  %1053 = vmatpush2.msra.mxu0 0.0
  %1054 = vmatprep.subr.mxu0 0.0
  %1055 = vmatpush2.msra.mxu0 0.0
  %1056 = vmatprep.subr.mxu0 0.0
  %1057 = vmatpush2.msra.mxu0 0.0
  %1058 = vmatprep.subr.mxu0 0.0
  %1059 = vmatpush2.msra.mxu0 0.0
  %1060 = vmatprep.mubr.f32.mxu0 0.0
  %1061 = vmatmul.mubr.f32.gmra.mxu0 %v994
  %v1062 = vpop.f32.mrf.mxu0
  %v1063 = vadd.f32 %v781, %v1062
  %v1064 = vpop.f32.mrf.mxu0
  %1065 = vdwg.mxu0
  %s1066 = scalar_lea.vmem [#allocation2], 4
  %v1067 = vld [vmem:[%s1066] sm:$0xf]
  %v1068 = vadd.f32 %v1067, %v1063
  %v1069 = vxor.u32 %v1068, 2147483648
  %v1070 = vmul.f32 %v1069, 1.442695
  %v1071 = vpow.pop %v1070
  %v1072 = vadd.f32 %v1071, 1.0
  %v1073 = vrcp.pop %v1072
  %v1074 = vmul.f32 1.0, %v1073
  %1076 = vrot.lane.b32.xlu0 %v1063, 64
  %v1077 = vpop.permute.xlu0 %1076
  %v1079 = vmul.f32 %v1074, %v1077
  %1081 = vrot.lane.b32.xlu0 %v1079, 64
  %v1082 = vpop.permute.xlu0 %1081
  %v1084 = vadd.f32 %v1067, %v1082
  %v1085 = vtanh.pop %v1084
  %v1086 = vsub.f32 1.0, %v1074
  %1088 = vrot.lane.b32.xlu0 %v1085, 96
  %v1089 = vpop.permute.xlu0 %1088
  %v1091 = vmul.f32 %v1086, %v1089
  %v1092 = vmul.f32 %v1074, %v881
  %v1093 = vadd.f32 %v1091, %v1092
  %1095 = vrot.lane.b32.xlu0 %v1093, 96
  %v1096 = vpop.permute.xlu0 %1095
  %v1098 = vsel %vm390, %v1096, %v988
  %v1100 = vsel %vm399, %v1098, 0
  %1102 = vmatprep.subr.mxu0 0.0
  %1103 = vmatpush1.msra.mxu0 0.0
  %1104 = vmatprep.subr.mxu0 0.0
  %1105 = vmatpush1.msra.mxu0 0.0
  %1106 = vmatprep.subr.mxu0 0.0
  %1107 = vmatpush1.msra.mxu0 0.0
  %1108 = vmatprep.subr.mxu0 0.0
  %1109 = vmatpush1.msra.mxu0 0.0
  %1110 = vmatprep.subr.mxu0 0.0
  %1111 = vmatpush1.msra.mxu0 0.0
  %1112 = vmatprep.subr.mxu0 0.0
  %1113 = vmatpush1.msra.mxu0 0.0
  %1114 = vmatprep.subr.mxu0 0.0
  %1115 = vmatpush1.msra.mxu0 0.0
  %1116 = vmatprep.subr.mxu0 0.0
  %1117 = vmatpush1.msra.mxu0 0.0
  %1118 = vmatprep.subr.mxu0 0.0
  %1119 = vmatpush1.msra.mxu0 %v21
  %1120 = vmatprep.subr.mxu0 0.0
  %1121 = vmatpush1.msra.mxu0 %v20
  %1122 = vmatprep.subr.mxu0 0.0
  %1123 = vmatpush1.msra.mxu0 %v19
  %1124 = vmatprep.subr.mxu0 0.0
  %1125 = vmatpush1.msra.mxu0 %v18
  %1126 = vmatprep.subr.mxu0 0.0
  %1127 = vmatpush1.msra.mxu0 %v17
  %1128 = vmatprep.subr.mxu0 0.0
  %1129 = vmatpush1.msra.mxu0 %v16
  %1130 = vmatprep.subr.mxu0 0.0
  %1131 = vmatpush1.msra.mxu0 %v15
  %1132 = vmatprep.subr.mxu0 0.0
  %1133 = vmatpush1.msra.mxu0 %v14
  %1134 = vmatprep.subr.mxu0 0.0
  %1135 = vmatpush2.msra.mxu0 0.0
  %1136 = vmatprep.subr.mxu0 0.0
  %1137 = vmatpush2.msra.mxu0 0.0
  %1138 = vmatprep.subr.mxu0 0.0
  %1139 = vmatpush2.msra.mxu0 0.0
  %1140 = vmatprep.subr.mxu0 0.0
  %1141 = vmatpush2.msra.mxu0 0.0
  %1142 = vmatprep.subr.mxu0 0.0
  %1143 = vmatpush2.msra.mxu0 0.0
  %1144 = vmatprep.subr.mxu0 0.0
  %1145 = vmatpush2.msra.mxu0 0.0
  %1146 = vmatprep.subr.mxu0 0.0
  %1147 = vmatpush2.msra.mxu0 0.0
  %1148 = vmatprep.subr.mxu0 0.0
  %1149 = vmatpush2.msra.mxu0 0.0
  %1150 = vmatprep.subr.mxu0 0.0
  %1151 = vmatpush2.msra.mxu0 0.0
  %1152 = vmatprep.subr.mxu0 0.0
  %1153 = vmatpush2.msra.mxu0 0.0
  %1154 = vmatprep.subr.mxu0 0.0
  %1155 = vmatpush2.msra.mxu0 0.0
  %1156 = vmatprep.subr.mxu0 0.0
  %1157 = vmatpush2.msra.mxu0 0.0
  %1158 = vmatprep.subr.mxu0 0.0
  %1159 = vmatpush2.msra.mxu0 0.0
  %1160 = vmatprep.subr.mxu0 0.0
  %1161 = vmatpush2.msra.mxu0 0.0
  %1162 = vmatprep.subr.mxu0 0.0
  %1163 = vmatpush2.msra.mxu0 0.0
  %1164 = vmatprep.subr.mxu0 0.0
  %1165 = vmatpush2.msra.mxu0 0.0
  %1166 = vmatprep.mubr.f32.mxu0 0.0
  %1167 = vmatmul.mubr.f32.gmra.mxu0 %v1100
  %v1168 = vpop.f32.mrf.mxu0
  %v1169 = vadd.f32 %v890, %v1168
  %v1170 = vpop.f32.mrf.mxu0
  %1171 = vdwg.mxu0
  %v1172 = vxor.u32 %v1169, 2147483648
  %v1173 = vmul.f32 %v1172, 1.442695
  %v1174 = vpow.pop %v1173
  %v1175 = vadd.f32 %v1174, 1.0
  %v1176 = vrcp.pop %v1175
  %v1177 = vmul.f32 1.0, %v1176
  %1179 = vrot.lane.b32.xlu0 %v1169, 32
  %v1180 = vpop.permute.xlu0 %1179
  %v1182 = vmul.f32 %v1177, %v1180
  %1184 = vrot.lane.b32.xlu0 %v1182, 64
  %v1185 = vpop.permute.xlu0 %1184
  %v1187 = vadd.f32 %v1169, %v1185
  %v1188 = vtanh.pop %v1187
  %v1189 = vsub.f32 1.0, %v1177
  %1191 = vrot.lane.b32.xlu0 %v1188, 96
  %v1192 = vpop.permute.xlu0 %1191
  %v1194 = vmul.f32 %v1189, %v1192
  %v1195 = vmul.f32 %v1177, %v988
  %v1196 = vadd.f32 %v1194, %v1195
  %1198 = vrot.lane.b32.xlu0 %v1196, 96
  %v1199 = vpop.permute.xlu0 %1198
  %s1201 = scalar_lea.vmem [#allocation3], 4
  %1202 = vst.msk [vmem:[%s1201] sm:$0xf] %vm574, %v1199
  %v1203 = vsel %vm390, %v1096, 0
  %1205 = vmatprep.subr.mxu0 0.0
  %1206 = vmatpush1.msra.mxu0 0.0
  %1207 = vmatprep.subr.mxu0 0.0
  %1208 = vmatpush1.msra.mxu0 0.0
  %1209 = vmatprep.subr.mxu0 0.0
  %1210 = vmatpush1.msra.mxu0 0.0
  %1211 = vmatprep.subr.mxu0 0.0
  %1212 = vmatpush1.msra.mxu0 0.0
  %1213 = vmatprep.subr.mxu0 0.0
  %1214 = vmatpush1.msra.mxu0 0.0
  %1215 = vmatprep.subr.mxu0 0.0
  %1216 = vmatpush1.msra.mxu0 0.0
  %1217 = vmatprep.subr.mxu0 0.0
  %1218 = vmatpush1.msra.mxu0 0.0
  %1219 = vmatprep.subr.mxu0 0.0
  %1220 = vmatpush1.msra.mxu0 0.0
  %1221 = vmatprep.subr.mxu0 0.0
  %1222 = vmatpush1.msra.mxu0 0.0
  %1223 = vmatprep.subr.mxu0 0.0
  %1224 = vmatpush1.msra.mxu0 0.0
  %1225 = vmatprep.subr.mxu0 0.0
  %1226 = vmatpush1.msra.mxu0 0.0
  %1227 = vmatprep.subr.mxu0 0.0
  %1228 = vmatpush1.msra.mxu0 0.0
  %1229 = vmatprep.subr.mxu0 0.0
  %1230 = vmatpush1.msra.mxu0 %v25
  %1231 = vmatprep.subr.mxu0 0.0
  %1232 = vmatpush1.msra.mxu0 %v24
  %1233 = vmatprep.subr.mxu0 0.0
  %1234 = vmatpush1.msra.mxu0 %v23
  %1235 = vmatprep.subr.mxu0 0.0
  %1236 = vmatpush1.msra.mxu0 %v22
  %1237 = vmatprep.subr.mxu0 0.0
  %1238 = vmatpush2.msra.mxu0 0.0
  %1239 = vmatprep.subr.mxu0 0.0
  %1240 = vmatpush2.msra.mxu0 0.0
  %1241 = vmatprep.subr.mxu0 0.0
  %1242 = vmatpush2.msra.mxu0 0.0
  %1243 = vmatprep.subr.mxu0 0.0
  %1244 = vmatpush2.msra.mxu0 0.0
  %1245 = vmatprep.subr.mxu0 0.0
  %1246 = vmatpush2.msra.mxu0 0.0
  %1247 = vmatprep.subr.mxu0 0.0
  %1248 = vmatpush2.msra.mxu0 0.0
  %1249 = vmatprep.subr.mxu0 0.0
  %1250 = vmatpush2.msra.mxu0 0.0
  %1251 = vmatprep.subr.mxu0 0.0
  %1252 = vmatpush2.msra.mxu0 0.0
  %1253 = vmatprep.subr.mxu0 0.0
  %1254 = vmatpush2.msra.mxu0 0.0
  %1255 = vmatprep.subr.mxu0 0.0
  %1256 = vmatpush2.msra.mxu0 0.0
  %1257 = vmatprep.subr.mxu0 0.0
  %1258 = vmatpush2.msra.mxu0 0.0
  %1259 = vmatprep.subr.mxu0 0.0
  %1260 = vmatpush2.msra.mxu0 0.0
  %1261 = vmatprep.subr.mxu0 0.0
  %1262 = vmatpush2.msra.mxu0 0.0
  %1263 = vmatprep.subr.mxu0 0.0
  %1264 = vmatpush2.msra.mxu0 0.0
  %1265 = vmatprep.subr.mxu0 0.0
  %1266 = vmatpush2.msra.mxu0 0.0
  %1267 = vmatprep.subr.mxu0 0.0
  %1268 = vmatpush2.msra.mxu0 0.0
  %1269 = vmatprep.mubr.f32.mxu0 0.0
  %1270 = vmatmul.mubr.f32.gmra.mxu0 %v1203
  %v1271 = vpop.f32.mrf.mxu0
  %v1272 = vadd.f32 %v781, %v1271
  %v1273 = vpop.f32.mrf.mxu0
  %1274 = vdwg.mxu0
  %s1275 = scalar_lea.vmem [#allocation2], 8
  %v1276 = vld [vmem:[%s1275] sm:$0xf]
  %v1277 = vadd.f32 %v1276, %v1272
  %v1278 = vxor.u32 %v1277, 2147483648
  %v1279 = vmul.f32 %v1278, 1.442695
  %v1280 = vpow.pop %v1279
  %v1281 = vadd.f32 %v1280, 1.0
  %v1282 = vrcp.pop %v1281
  %v1283 = vmul.f32 1.0, %v1282
  %1285 = vrot.lane.b32.xlu0 %v1272, 64
  %v1286 = vpop.permute.xlu0 %1285
  %v1288 = vmul.f32 %v1283, %v1286
  %1290 = vrot.lane.b32.xlu0 %v1288, 64
  %v1291 = vpop.permute.xlu0 %1290
  %v1293 = vadd.f32 %v1276, %v1291
  %v1294 = vtanh.pop %v1293
  %v1295 = vsub.f32 1.0, %v1283
  %1297 = vrot.lane.b32.xlu0 %v1294, 96
  %v1298 = vpop.permute.xlu0 %1297
  %v1300 = vmul.f32 %v1295, %v1298
  %v1301 = vmul.f32 %v1283, %v1093
  %v1302 = vadd.f32 %v1300, %v1301
  %1304 = vrot.lane.b32.xlu0 %v1302, 96
  %v1305 = vpop.permute.xlu0 %1304
  %v1307 = vsel %vm390, %v1305, %v1196
  %v1309 = vsel %vm399, %v1307, 0
  %1311 = vmatprep.subr.mxu0 0.0
  %1312 = vmatpush1.msra.mxu0 0.0
  %1313 = vmatprep.subr.mxu0 0.0
  %1314 = vmatpush1.msra.mxu0 0.0
  %1315 = vmatprep.subr.mxu0 0.0
  %1316 = vmatpush1.msra.mxu0 0.0
  %1317 = vmatprep.subr.mxu0 0.0
  %1318 = vmatpush1.msra.mxu0 0.0
  %1319 = vmatprep.subr.mxu0 0.0
  %1320 = vmatpush1.msra.mxu0 0.0
  %1321 = vmatprep.subr.mxu0 0.0
  %1322 = vmatpush1.msra.mxu0 0.0
  %1323 = vmatprep.subr.mxu0 0.0
  %1324 = vmatpush1.msra.mxu0 0.0
  %1325 = vmatprep.subr.mxu0 0.0
  %1326 = vmatpush1.msra.mxu0 0.0
  %1327 = vmatprep.subr.mxu0 0.0
  %1328 = vmatpush1.msra.mxu0 %v21
  %1329 = vmatprep.subr.mxu0 0.0
  %1330 = vmatpush1.msra.mxu0 %v20
  %1331 = vmatprep.subr.mxu0 0.0
  %1332 = vmatpush1.msra.mxu0 %v19
  %1333 = vmatprep.subr.mxu0 0.0
  %1334 = vmatpush1.msra.mxu0 %v18
  %1335 = vmatprep.subr.mxu0 0.0
  %1336 = vmatpush1.msra.mxu0 %v17
  %1337 = vmatprep.subr.mxu0 0.0
  %1338 = vmatpush1.msra.mxu0 %v16
  %1339 = vmatprep.subr.mxu0 0.0
  %1340 = vmatpush1.msra.mxu0 %v15
  %1341 = vmatprep.subr.mxu0 0.0
  %1342 = vmatpush1.msra.mxu0 %v14
  %1343 = vmatprep.subr.mxu0 0.0
  %1344 = vmatpush2.msra.mxu0 0.0
  %1345 = vmatprep.subr.mxu0 0.0
  %1346 = vmatpush2.msra.mxu0 0.0
  %1347 = vmatprep.subr.mxu0 0.0
  %1348 = vmatpush2.msra.mxu0 0.0
  %1349 = vmatprep.subr.mxu0 0.0
  %1350 = vmatpush2.msra.mxu0 0.0
  %1351 = vmatprep.subr.mxu0 0.0
  %1352 = vmatpush2.msra.mxu0 0.0
  %1353 = vmatprep.subr.mxu0 0.0
  %1354 = vmatpush2.msra.mxu0 0.0
  %1355 = vmatprep.subr.mxu0 0.0
  %1356 = vmatpush2.msra.mxu0 0.0
  %1357 = vmatprep.subr.mxu0 0.0
  %1358 = vmatpush2.msra.mxu0 0.0
  %1359 = vmatprep.subr.mxu0 0.0
  %1360 = vmatpush2.msra.mxu0 0.0
  %1361 = vmatprep.subr.mxu0 0.0
  %1362 = vmatpush2.msra.mxu0 0.0
  %1363 = vmatprep.subr.mxu0 0.0
  %1364 = vmatpush2.msra.mxu0 0.0
  %1365 = vmatprep.subr.mxu0 0.0
  %1366 = vmatpush2.msra.mxu0 0.0
  %1367 = vmatprep.subr.mxu0 0.0
  %1368 = vmatpush2.msra.mxu0 0.0
  %1369 = vmatprep.subr.mxu0 0.0
  %1370 = vmatpush2.msra.mxu0 0.0
  %1371 = vmatprep.subr.mxu0 0.0
  %1372 = vmatpush2.msra.mxu0 0.0
  %1373 = vmatprep.subr.mxu0 0.0
  %1374 = vmatpush2.msra.mxu0 0.0
  %1375 = vmatprep.mubr.f32.mxu0 0.0
  %1376 = vmatmul.mubr.f32.gmra.mxu0 %v1309
  %v1377 = vpop.f32.mrf.mxu0
  %v1378 = vadd.f32 %v890, %v1377
  %v1379 = vpop.f32.mrf.mxu0
  %1380 = vdwg.mxu0
  %v1381 = vxor.u32 %v1378, 2147483648
  %v1382 = vmul.f32 %v1381, 1.442695
  %v1383 = vpow.pop %v1382
  %v1384 = vadd.f32 %v1383, 1.0
  %v1385 = vrcp.pop %v1384
  %v1386 = vmul.f32 1.0, %v1385
  %1388 = vrot.lane.b32.xlu0 %v1378, 32
  %v1389 = vpop.permute.xlu0 %1388
  %v1391 = vmul.f32 %v1386, %v1389
  %1393 = vrot.lane.b32.xlu0 %v1391, 64
  %v1394 = vpop.permute.xlu0 %1393
  %v1396 = vadd.f32 %v1378, %v1394
  %v1397 = vtanh.pop %v1396
  %v1398 = vsub.f32 1.0, %v1386
  %1400 = vrot.lane.b32.xlu0 %v1397, 96
  %v1401 = vpop.permute.xlu0 %1400
  %v1403 = vmul.f32 %v1398, %v1401
  %v1404 = vmul.f32 %v1386, %v1196
  %v1405 = vadd.f32 %v1403, %v1404
  %1407 = vrot.lane.b32.xlu0 %v1405, 96
  %v1408 = vpop.permute.xlu0 %1407
  %s1410 = scalar_lea.vmem [#allocation3], 8
  %1411 = vst.msk [vmem:[%s1410] sm:$0xf] %vm574, %v1408
  %v1412 = vsel %vm390, %v1305, 0
  %1414 = vmatprep.subr.mxu0 0.0
  %1415 = vmatpush1.msra.mxu0 0.0
  %1416 = vmatprep.subr.mxu0 0.0
  %1417 = vmatpush1.msra.mxu0 0.0
  %1418 = vmatprep.subr.mxu0 0.0
  %1419 = vmatpush1.msra.mxu0 0.0
  %1420 = vmatprep.subr.mxu0 0.0
  %1421 = vmatpush1.msra.mxu0 0.0
  %1422 = vmatprep.subr.mxu0 0.0
  %1423 = vmatpush1.msra.mxu0 0.0
  %1424 = vmatprep.subr.mxu0 0.0
  %1425 = vmatpush1.msra.mxu0 0.0
  %1426 = vmatprep.subr.mxu0 0.0
  %1427 = vmatpush1.msra.mxu0 0.0
  %1428 = vmatprep.subr.mxu0 0.0
  %1429 = vmatpush1.msra.mxu0 0.0
  %1430 = vmatprep.subr.mxu0 0.0
  %1431 = vmatpush1.msra.mxu0 0.0
  %1432 = vmatprep.subr.mxu0 0.0
  %1433 = vmatpush1.msra.mxu0 0.0
  %1434 = vmatprep.subr.mxu0 0.0
  %1435 = vmatpush1.msra.mxu0 0.0
  %1436 = vmatprep.subr.mxu0 0.0
  %1437 = vmatpush1.msra.mxu0 0.0
  %1438 = vmatprep.subr.mxu0 0.0
  %1439 = vmatpush1.msra.mxu0 %v25
  %1440 = vmatprep.subr.mxu0 0.0
  %1441 = vmatpush1.msra.mxu0 %v24
  %1442 = vmatprep.subr.mxu0 0.0
  %1443 = vmatpush1.msra.mxu0 %v23
  %1444 = vmatprep.subr.mxu0 0.0
  %1445 = vmatpush1.msra.mxu0 %v22
  %1446 = vmatprep.subr.mxu0 0.0
  %1447 = vmatpush2.msra.mxu0 0.0
  %1448 = vmatprep.subr.mxu0 0.0
  %1449 = vmatpush2.msra.mxu0 0.0
  %1450 = vmatprep.subr.mxu0 0.0
  %1451 = vmatpush2.msra.mxu0 0.0
  %1452 = vmatprep.subr.mxu0 0.0
  %1453 = vmatpush2.msra.mxu0 0.0
  %1454 = vmatprep.subr.mxu0 0.0
  %1455 = vmatpush2.msra.mxu0 0.0
  %1456 = vmatprep.subr.mxu0 0.0
  %1457 = vmatpush2.msra.mxu0 0.0
  %1458 = vmatprep.subr.mxu0 0.0
  %1459 = vmatpush2.msra.mxu0 0.0
  %1460 = vmatprep.subr.mxu0 0.0
  %1461 = vmatpush2.msra.mxu0 0.0
  %1462 = vmatprep.subr.mxu0 0.0
  %1463 = vmatpush2.msra.mxu0 0.0
  %1464 = vmatprep.subr.mxu0 0.0
  %1465 = vmatpush2.msra.mxu0 0.0
  %1466 = vmatprep.subr.mxu0 0.0
  %1467 = vmatpush2.msra.mxu0 0.0
  %1468 = vmatprep.subr.mxu0 0.0
  %1469 = vmatpush2.msra.mxu0 0.0
  %1470 = vmatprep.subr.mxu0 0.0
  %1471 = vmatpush2.msra.mxu0 0.0
  %1472 = vmatprep.subr.mxu0 0.0
  %1473 = vmatpush2.msra.mxu0 0.0
  %1474 = vmatprep.subr.mxu0 0.0
  %1475 = vmatpush2.msra.mxu0 0.0
  %1476 = vmatprep.subr.mxu0 0.0
  %1477 = vmatpush2.msra.mxu0 0.0
  %1478 = vmatprep.mubr.f32.mxu0 0.0
  %1479 = vmatmul.mubr.f32.gmra.mxu0 %v1412
  %v1480 = vpop.f32.mrf.mxu0
  %v1481 = vadd.f32 %v781, %v1480
  %v1482 = vpop.f32.mrf.mxu0
  %1483 = vdwg.mxu0
  %s1484 = scalar_lea.vmem [#allocation2], 12
  %v1485 = vld [vmem:[%s1484] sm:$0xf]
  %v1486 = vadd.f32 %v1485, %v1481
  %v1487 = vxor.u32 %v1486, 2147483648
  %v1488 = vmul.f32 %v1487, 1.442695
  %v1489 = vpow.pop %v1488
  %v1490 = vadd.f32 %v1489, 1.0
  %v1491 = vrcp.pop %v1490
  %v1492 = vmul.f32 1.0, %v1491
  %1494 = vrot.lane.b32.xlu0 %v1481, 64
  %v1495 = vpop.permute.xlu0 %1494
  %v1497 = vmul.f32 %v1492, %v1495
  %1499 = vrot.lane.b32.xlu0 %v1497, 64
  %v1500 = vpop.permute.xlu0 %1499
  %v1502 = vadd.f32 %v1485, %v1500
  %v1503 = vtanh.pop %v1502
  %v1504 = vsub.f32 1.0, %v1492
  %1506 = vrot.lane.b32.xlu0 %v1503, 96
  %v1507 = vpop.permute.xlu0 %1506
  %v1509 = vmul.f32 %v1504, %v1507
  %v1510 = vmul.f32 %v1492, %v1302
  %v1511 = vadd.f32 %v1509, %v1510
  %1513 = vrot.lane.b32.xlu0 %v1511, 96
  %v1514 = vpop.permute.xlu0 %1513
  %v1516 = vsel %vm390, %v1514, %v1405
  %v1518 = vsel %vm399, %v1516, 0
  %1520 = vmatprep.subr.mxu0 0.0
  %1521 = vmatpush1.msra.mxu0 0.0
  %1522 = vmatprep.subr.mxu0 0.0
  %1523 = vmatpush1.msra.mxu0 0.0
  %1524 = vmatprep.subr.mxu0 0.0
  %1525 = vmatpush1.msra.mxu0 0.0
  %1526 = vmatprep.subr.mxu0 0.0
  %1527 = vmatpush1.msra.mxu0 0.0
  %1528 = vmatprep.subr.mxu0 0.0
  %1529 = vmatpush1.msra.mxu0 0.0
  %1530 = vmatprep.subr.mxu0 0.0
  %1531 = vmatpush1.msra.mxu0 0.0
  %1532 = vmatprep.subr.mxu0 0.0
  %1533 = vmatpush1.msra.mxu0 0.0
  %1534 = vmatprep.subr.mxu0 0.0
  %1535 = vmatpush1.msra.mxu0 0.0
  %1536 = vmatprep.subr.mxu0 0.0
  %1537 = vmatpush1.msra.mxu0 %v21
  %1538 = vmatprep.subr.mxu0 0.0
  %1539 = vmatpush1.msra.mxu0 %v20
  %1540 = vmatprep.subr.mxu0 0.0
  %1541 = vmatpush1.msra.mxu0 %v19
  %1542 = vmatprep.subr.mxu0 0.0
  %1543 = vmatpush1.msra.mxu0 %v18
  %1544 = vmatprep.subr.mxu0 0.0
  %1545 = vmatpush1.msra.mxu0 %v17
  %1546 = vmatprep.subr.mxu0 0.0
  %1547 = vmatpush1.msra.mxu0 %v16
  %1548 = vmatprep.subr.mxu0 0.0
  %1549 = vmatpush1.msra.mxu0 %v15
  %1550 = vmatprep.subr.mxu0 0.0
  %1551 = vmatpush1.msra.mxu0 %v14
  %1552 = vmatprep.subr.mxu0 0.0
  %1553 = vmatpush2.msra.mxu0 0.0
  %1554 = vmatprep.subr.mxu0 0.0
  %1555 = vmatpush2.msra.mxu0 0.0
  %1556 = vmatprep.subr.mxu0 0.0
  %1557 = vmatpush2.msra.mxu0 0.0
  %1558 = vmatprep.subr.mxu0 0.0
  %1559 = vmatpush2.msra.mxu0 0.0
  %1560 = vmatprep.subr.mxu0 0.0
  %1561 = vmatpush2.msra.mxu0 0.0
  %1562 = vmatprep.subr.mxu0 0.0
  %1563 = vmatpush2.msra.mxu0 0.0
  %1564 = vmatprep.subr.mxu0 0.0
  %1565 = vmatpush2.msra.mxu0 0.0
  %1566 = vmatprep.subr.mxu0 0.0
  %1567 = vmatpush2.msra.mxu0 0.0
  %1568 = vmatprep.subr.mxu0 0.0
  %1569 = vmatpush2.msra.mxu0 0.0
  %1570 = vmatprep.subr.mxu0 0.0
  %1571 = vmatpush2.msra.mxu0 0.0
  %1572 = vmatprep.subr.mxu0 0.0
  %1573 = vmatpush2.msra.mxu0 0.0
  %1574 = vmatprep.subr.mxu0 0.0
  %1575 = vmatpush2.msra.mxu0 0.0
  %1576 = vmatprep.subr.mxu0 0.0
  %1577 = vmatpush2.msra.mxu0 0.0
  %1578 = vmatprep.subr.mxu0 0.0
  %1579 = vmatpush2.msra.mxu0 0.0
  %1580 = vmatprep.subr.mxu0 0.0
  %1581 = vmatpush2.msra.mxu0 0.0
  %1582 = vmatprep.subr.mxu0 0.0
  %1583 = vmatpush2.msra.mxu0 0.0
  %1584 = vmatprep.mubr.f32.mxu0 0.0
  %1585 = vmatmul.mubr.f32.gmra.mxu0 %v1518
  %v1586 = vpop.f32.mrf.mxu0
  %v1587 = vadd.f32 %v890, %v1586
  %v1588 = vpop.f32.mrf.mxu0
  %1589 = vdwg.mxu0
  %v1590 = vxor.u32 %v1587, 2147483648
  %v1591 = vmul.f32 %v1590, 1.442695
  %v1592 = vpow.pop %v1591
  %v1593 = vadd.f32 %v1592, 1.0
  %v1594 = vrcp.pop %v1593
  %v1595 = vmul.f32 1.0, %v1594
  %1597 = vrot.lane.b32.xlu0 %v1587, 32
  %v1598 = vpop.permute.xlu0 %1597
  %v1600 = vmul.f32 %v1595, %v1598
  %1602 = vrot.lane.b32.xlu0 %v1600, 64
  %v1603 = vpop.permute.xlu0 %1602
  %v1605 = vadd.f32 %v1587, %v1603
  %v1606 = vtanh.pop %v1605
  %v1607 = vsub.f32 1.0, %v1595
  %1609 = vrot.lane.b32.xlu0 %v1606, 96
  %v1610 = vpop.permute.xlu0 %1609
  %v1612 = vmul.f32 %v1607, %v1610
  %v1613 = vmul.f32 %v1595, %v1405
  %v1614 = vadd.f32 %v1612, %v1613
  %1616 = vrot.lane.b32.xlu0 %v1614, 96
  %v1617 = vpop.permute.xlu0 %1616
  %s1619 = scalar_lea.vmem [#allocation3], 12
  %1620 = vst.msk [vmem:[%s1619] sm:$0xf] %vm574, %v1617
  %v1621 = vsel %vm390, %v1514, 0
  %1623 = vmatprep.subr.mxu0 0.0
  %1624 = vmatpush1.msra.mxu0 0.0
  %1625 = vmatprep.subr.mxu0 0.0
  %1626 = vmatpush1.msra.mxu0 0.0
  %1627 = vmatprep.subr.mxu0 0.0
  %1628 = vmatpush1.msra.mxu0 0.0
  %1629 = vmatprep.subr.mxu0 0.0
  %1630 = vmatpush1.msra.mxu0 0.0
  %1631 = vmatprep.subr.mxu0 0.0
  %1632 = vmatpush1.msra.mxu0 0.0
  %1633 = vmatprep.subr.mxu0 0.0
  %1634 = vmatpush1.msra.mxu0 0.0
  %1635 = vmatprep.subr.mxu0 0.0
  %1636 = vmatpush1.msra.mxu0 0.0
  %1637 = vmatprep.subr.mxu0 0.0
  %1638 = vmatpush1.msra.mxu0 0.0
  %1639 = vmatprep.subr.mxu0 0.0
  %1640 = vmatpush1.msra.mxu0 0.0
  %1641 = vmatprep.subr.mxu0 0.0
  %1642 = vmatpush1.msra.mxu0 0.0
  %1643 = vmatprep.subr.mxu0 0.0
  %1644 = vmatpush1.msra.mxu0 0.0
  %1645 = vmatprep.subr.mxu0 0.0
  %1646 = vmatpush1.msra.mxu0 0.0
  %1647 = vmatprep.subr.mxu0 0.0
  %1648 = vmatpush1.msra.mxu0 %v25
  %1649 = vmatprep.subr.mxu0 0.0
  %1650 = vmatpush1.msra.mxu0 %v24
  %1651 = vmatprep.subr.mxu0 0.0
  %1652 = vmatpush1.msra.mxu0 %v23
  %1653 = vmatprep.subr.mxu0 0.0
  %1654 = vmatpush1.msra.mxu0 %v22
  %1655 = vmatprep.subr.mxu0 0.0
  %1656 = vmatpush2.msra.mxu0 0.0
  %1657 = vmatprep.subr.mxu0 0.0
  %1658 = vmatpush2.msra.mxu0 0.0
  %1659 = vmatprep.subr.mxu0 0.0
  %1660 = vmatpush2.msra.mxu0 0.0
  %1661 = vmatprep.subr.mxu0 0.0
  %1662 = vmatpush2.msra.mxu0 0.0
  %1663 = vmatprep.subr.mxu0 0.0
  %1664 = vmatpush2.msra.mxu0 0.0
  %1665 = vmatprep.subr.mxu0 0.0
  %1666 = vmatpush2.msra.mxu0 0.0
  %1667 = vmatprep.subr.mxu0 0.0
  %1668 = vmatpush2.msra.mxu0 0.0
  %1669 = vmatprep.subr.mxu0 0.0
  %1670 = vmatpush2.msra.mxu0 0.0
  %1671 = vmatprep.subr.mxu0 0.0
  %1672 = vmatpush2.msra.mxu0 0.0
  %1673 = vmatprep.subr.mxu0 0.0
  %1674 = vmatpush2.msra.mxu0 0.0
  %1675 = vmatprep.subr.mxu0 0.0
  %1676 = vmatpush2.msra.mxu0 0.0
  %1677 = vmatprep.subr.mxu0 0.0
  %1678 = vmatpush2.msra.mxu0 0.0
  %1679 = vmatprep.subr.mxu0 0.0
  %1680 = vmatpush2.msra.mxu0 0.0
  %1681 = vmatprep.subr.mxu0 0.0
  %1682 = vmatpush2.msra.mxu0 0.0
  %1683 = vmatprep.subr.mxu0 0.0
  %1684 = vmatpush2.msra.mxu0 0.0
  %1685 = vmatprep.subr.mxu0 0.0
  %1686 = vmatpush2.msra.mxu0 0.0
  %1687 = vmatprep.mubr.f32.mxu0 0.0
  %1688 = vmatmul.mubr.f32.gmra.mxu0 %v1621
  %v1689 = vpop.f32.mrf.mxu0
  %v1690 = vadd.f32 %v781, %v1689
  %v1691 = vpop.f32.mrf.mxu0
  %1692 = vdwg.mxu0
  %s1693 = scalar_lea.vmem [#allocation2], 16
  %v1694 = vld [vmem:[%s1693] sm:$0xf]
  %v1695 = vadd.f32 %v1694, %v1690
  %v1696 = vxor.u32 %v1695, 2147483648
  %v1697 = vmul.f32 %v1696, 1.442695
  %v1698 = vpow.pop %v1697
  %v1699 = vadd.f32 %v1698, 1.0
  %v1700 = vrcp.pop %v1699
  %v1701 = vmul.f32 1.0, %v1700
  %1703 = vrot.lane.b32.xlu0 %v1690, 64
  %v1704 = vpop.permute.xlu0 %1703
  %v1706 = vmul.f32 %v1701, %v1704
  %1708 = vrot.lane.b32.xlu0 %v1706, 64
  %v1709 = vpop.permute.xlu0 %1708
  %v1711 = vadd.f32 %v1694, %v1709
  %v1712 = vtanh.pop %v1711
  %v1713 = vsub.f32 1.0, %v1701
  %1715 = vrot.lane.b32.xlu0 %v1712, 96
  %v1716 = vpop.permute.xlu0 %1715
  %v1718 = vmul.f32 %v1713, %v1716
  %v1719 = vmul.f32 %v1701, %v1511
  %v1720 = vadd.f32 %v1718, %v1719
  %1722 = vrot.lane.b32.xlu0 %v1720, 96
  %v1723 = vpop.permute.xlu0 %1722
  %v1725 = vsel %vm390, %v1723, %v1614
  %v1727 = vsel %vm399, %v1725, 0
  %1729 = vmatprep.subr.mxu0 0.0
  %1730 = vmatpush1.msra.mxu0 0.0
  %1731 = vmatprep.subr.mxu0 0.0
  %1732 = vmatpush1.msra.mxu0 0.0
  %1733 = vmatprep.subr.mxu0 0.0
  %1734 = vmatpush1.msra.mxu0 0.0
  %1735 = vmatprep.subr.mxu0 0.0
  %1736 = vmatpush1.msra.mxu0 0.0
  %1737 = vmatprep.subr.mxu0 0.0
  %1738 = vmatpush1.msra.mxu0 0.0
  %1739 = vmatprep.subr.mxu0 0.0
  %1740 = vmatpush1.msra.mxu0 0.0
  %1741 = vmatprep.subr.mxu0 0.0
  %1742 = vmatpush1.msra.mxu0 0.0
  %1743 = vmatprep.subr.mxu0 0.0
  %1744 = vmatpush1.msra.mxu0 0.0
  %1745 = vmatprep.subr.mxu0 0.0
  %1746 = vmatpush1.msra.mxu0 %v21
  %1747 = vmatprep.subr.mxu0 0.0
  %1748 = vmatpush1.msra.mxu0 %v20
  %1749 = vmatprep.subr.mxu0 0.0
  %1750 = vmatpush1.msra.mxu0 %v19
  %1751 = vmatprep.subr.mxu0 0.0
  %1752 = vmatpush1.msra.mxu0 %v18
  %1753 = vmatprep.subr.mxu0 0.0
  %1754 = vmatpush1.msra.mxu0 %v17
  %1755 = vmatprep.subr.mxu0 0.0
  %1756 = vmatpush1.msra.mxu0 %v16
  %1757 = vmatprep.subr.mxu0 0.0
  %1758 = vmatpush1.msra.mxu0 %v15
  %1759 = vmatprep.subr.mxu0 0.0
  %1760 = vmatpush1.msra.mxu0 %v14
  %1761 = vmatprep.subr.mxu0 0.0
  %1762 = vmatpush2.msra.mxu0 0.0
  %1763 = vmatprep.subr.mxu0 0.0
  %1764 = vmatpush2.msra.mxu0 0.0
  %1765 = vmatprep.subr.mxu0 0.0
  %1766 = vmatpush2.msra.mxu0 0.0
  %1767 = vmatprep.subr.mxu0 0.0
  %1768 = vmatpush2.msra.mxu0 0.0
  %1769 = vmatprep.subr.mxu0 0.0
  %1770 = vmatpush2.msra.mxu0 0.0
  %1771 = vmatprep.subr.mxu0 0.0
  %1772 = vmatpush2.msra.mxu0 0.0
  %1773 = vmatprep.subr.mxu0 0.0
  %1774 = vmatpush2.msra.mxu0 0.0
  %1775 = vmatprep.subr.mxu0 0.0
  %1776 = vmatpush2.msra.mxu0 0.0
  %1777 = vmatprep.subr.mxu0 0.0
  %1778 = vmatpush2.msra.mxu0 0.0
  %1779 = vmatprep.subr.mxu0 0.0
  %1780 = vmatpush2.msra.mxu0 0.0
  %1781 = vmatprep.subr.mxu0 0.0
  %1782 = vmatpush2.msra.mxu0 0.0
  %1783 = vmatprep.subr.mxu0 0.0
  %1784 = vmatpush2.msra.mxu0 0.0
  %1785 = vmatprep.subr.mxu0 0.0
  %1786 = vmatpush2.msra.mxu0 0.0
  %1787 = vmatprep.subr.mxu0 0.0
  %1788 = vmatpush2.msra.mxu0 0.0
  %1789 = vmatprep.subr.mxu0 0.0
  %1790 = vmatpush2.msra.mxu0 0.0
  %1791 = vmatprep.subr.mxu0 0.0
  %1792 = vmatpush2.msra.mxu0 0.0
  %1793 = vmatprep.mubr.f32.mxu0 0.0
  %1794 = vmatmul.mubr.f32.gmra.mxu0 %v1727
  %v1795 = vpop.f32.mrf.mxu0
  %v1796 = vadd.f32 %v890, %v1795
  %v1797 = vpop.f32.mrf.mxu0
  %1798 = vdwg.mxu0
  %v1799 = vxor.u32 %v1796, 2147483648
  %v1800 = vmul.f32 %v1799, 1.442695
  %v1801 = vpow.pop %v1800
  %v1802 = vadd.f32 %v1801, 1.0
  %v1803 = vrcp.pop %v1802
  %v1804 = vmul.f32 1.0, %v1803
  %1806 = vrot.lane.b32.xlu0 %v1796, 32
  %v1807 = vpop.permute.xlu0 %1806
  %v1809 = vmul.f32 %v1804, %v1807
  %1811 = vrot.lane.b32.xlu0 %v1809, 64
  %v1812 = vpop.permute.xlu0 %1811
  %v1814 = vadd.f32 %v1796, %v1812
  %v1815 = vtanh.pop %v1814
  %v1816 = vsub.f32 1.0, %v1804
  %1818 = vrot.lane.b32.xlu0 %v1815, 96
  %v1819 = vpop.permute.xlu0 %1818
  %v1821 = vmul.f32 %v1816, %v1819
  %v1822 = vmul.f32 %v1804, %v1614
  %v1823 = vadd.f32 %v1821, %v1822
  %1825 = vrot.lane.b32.xlu0 %v1823, 96
  %v1826 = vpop.permute.xlu0 %1825
  %s1828 = scalar_lea.vmem [#allocation3], 16
  %1829 = vst.msk [vmem:[%s1828] sm:$0xf] %vm574, %v1826
  %v1830 = vsel %vm390, %v1723, 0
  %1832 = vmatprep.subr.mxu0 0.0
  %1833 = vmatpush1.msra.mxu0 0.0
  %1834 = vmatprep.subr.mxu0 0.0
  %1835 = vmatpush1.msra.mxu0 0.0
  %1836 = vmatprep.subr.mxu0 0.0
  %1837 = vmatpush1.msra.mxu0 0.0
  %1838 = vmatprep.subr.mxu0 0.0
  %1839 = vmatpush1.msra.mxu0 0.0
  %1840 = vmatprep.subr.mxu0 0.0
  %1841 = vmatpush1.msra.mxu0 0.0
  %1842 = vmatprep.subr.mxu0 0.0
  %1843 = vmatpush1.msra.mxu0 0.0
  %1844 = vmatprep.subr.mxu0 0.0
  %1845 = vmatpush1.msra.mxu0 0.0
  %1846 = vmatprep.subr.mxu0 0.0
  %1847 = vmatpush1.msra.mxu0 0.0
  %1848 = vmatprep.subr.mxu0 0.0
  %1849 = vmatpush1.msra.mxu0 0.0
  %1850 = vmatprep.subr.mxu0 0.0
  %1851 = vmatpush1.msra.mxu0 0.0
  %1852 = vmatprep.subr.mxu0 0.0
  %1853 = vmatpush1.msra.mxu0 0.0
  %1854 = vmatprep.subr.mxu0 0.0
  %1855 = vmatpush1.msra.mxu0 0.0
  %1856 = vmatprep.subr.mxu0 0.0
  %1857 = vmatpush1.msra.mxu0 %v25
  %1858 = vmatprep.subr.mxu0 0.0
  %1859 = vmatpush1.msra.mxu0 %v24
  %1860 = vmatprep.subr.mxu0 0.0
  %1861 = vmatpush1.msra.mxu0 %v23
  %1862 = vmatprep.subr.mxu0 0.0
  %1863 = vmatpush1.msra.mxu0 %v22
  %1864 = vmatprep.subr.mxu0 0.0
  %1865 = vmatpush2.msra.mxu0 0.0
  %1866 = vmatprep.subr.mxu0 0.0
  %1867 = vmatpush2.msra.mxu0 0.0
  %1868 = vmatprep.subr.mxu0 0.0
  %1869 = vmatpush2.msra.mxu0 0.0
  %1870 = vmatprep.subr.mxu0 0.0
  %1871 = vmatpush2.msra.mxu0 0.0
  %1872 = vmatprep.subr.mxu0 0.0
  %1873 = vmatpush2.msra.mxu0 0.0
  %1874 = vmatprep.subr.mxu0 0.0
  %1875 = vmatpush2.msra.mxu0 0.0
  %1876 = vmatprep.subr.mxu0 0.0
  %1877 = vmatpush2.msra.mxu0 0.0
  %1878 = vmatprep.subr.mxu0 0.0
  %1879 = vmatpush2.msra.mxu0 0.0
  %1880 = vmatprep.subr.mxu0 0.0
  %1881 = vmatpush2.msra.mxu0 0.0
  %1882 = vmatprep.subr.mxu0 0.0
  %1883 = vmatpush2.msra.mxu0 0.0
  %1884 = vmatprep.subr.mxu0 0.0
  %1885 = vmatpush2.msra.mxu0 0.0
  %1886 = vmatprep.subr.mxu0 0.0
  %1887 = vmatpush2.msra.mxu0 0.0
  %1888 = vmatprep.subr.mxu0 0.0
  %1889 = vmatpush2.msra.mxu0 0.0
  %1890 = vmatprep.subr.mxu0 0.0
  %1891 = vmatpush2.msra.mxu0 0.0
  %1892 = vmatprep.subr.mxu0 0.0
  %1893 = vmatpush2.msra.mxu0 0.0
  %1894 = vmatprep.subr.mxu0 0.0
  %1895 = vmatpush2.msra.mxu0 0.0
  %1896 = vmatprep.mubr.f32.mxu0 0.0
  %1897 = vmatmul.mubr.f32.gmra.mxu0 %v1830
  %v1898 = vpop.f32.mrf.mxu0
  %v1899 = vadd.f32 %v781, %v1898
  %v1900 = vpop.f32.mrf.mxu0
  %1901 = vdwg.mxu0
  %s1902 = scalar_lea.vmem [#allocation2], 20
  %v1903 = vld [vmem:[%s1902] sm:$0xf]
  %v1904 = vadd.f32 %v1903, %v1899
  %v1905 = vxor.u32 %v1904, 2147483648
  %v1906 = vmul.f32 %v1905, 1.442695
  %v1907 = vpow.pop %v1906
  %v1908 = vadd.f32 %v1907, 1.0
  %v1909 = vrcp.pop %v1908
  %v1910 = vmul.f32 1.0, %v1909
  %1912 = vrot.lane.b32.xlu0 %v1899, 64
  %v1913 = vpop.permute.xlu0 %1912
  %v1915 = vmul.f32 %v1910, %v1913
  %1917 = vrot.lane.b32.xlu0 %v1915, 64
  %v1918 = vpop.permute.xlu0 %1917
  %v1920 = vadd.f32 %v1903, %v1918
  %v1921 = vtanh.pop %v1920
  %v1922 = vsub.f32 1.0, %v1910
  %1924 = vrot.lane.b32.xlu0 %v1921, 96
  %v1925 = vpop.permute.xlu0 %1924
  %v1927 = vmul.f32 %v1922, %v1925
  %v1928 = vmul.f32 %v1910, %v1720
  %v1929 = vadd.f32 %v1927, %v1928
  %1931 = vrot.lane.b32.xlu0 %v1929, 96
  %v1932 = vpop.permute.xlu0 %1931
  %v1934 = vsel %vm390, %v1932, %v1823
  %v1936 = vsel %vm399, %v1934, 0
  %1938 = vmatprep.subr.mxu0 0.0
  %1939 = vmatpush1.msra.mxu0 0.0
  %1940 = vmatprep.subr.mxu0 0.0
  %1941 = vmatpush1.msra.mxu0 0.0
  %1942 = vmatprep.subr.mxu0 0.0
  %1943 = vmatpush1.msra.mxu0 0.0
  %1944 = vmatprep.subr.mxu0 0.0
  %1945 = vmatpush1.msra.mxu0 0.0
  %1946 = vmatprep.subr.mxu0 0.0
  %1947 = vmatpush1.msra.mxu0 0.0
  %1948 = vmatprep.subr.mxu0 0.0
  %1949 = vmatpush1.msra.mxu0 0.0
  %1950 = vmatprep.subr.mxu0 0.0
  %1951 = vmatpush1.msra.mxu0 0.0
  %1952 = vmatprep.subr.mxu0 0.0
  %1953 = vmatpush1.msra.mxu0 0.0
  %1954 = vmatprep.subr.mxu0 0.0
  %1955 = vmatpush1.msra.mxu0 %v21
  %1956 = vmatprep.subr.mxu0 0.0
  %1957 = vmatpush1.msra.mxu0 %v20
  %1958 = vmatprep.subr.mxu0 0.0
  %1959 = vmatpush1.msra.mxu0 %v19
  %1960 = vmatprep.subr.mxu0 0.0
  %1961 = vmatpush1.msra.mxu0 %v18
  %1962 = vmatprep.subr.mxu0 0.0
  %1963 = vmatpush1.msra.mxu0 %v17
  %1964 = vmatprep.subr.mxu0 0.0
  %1965 = vmatpush1.msra.mxu0 %v16
  %1966 = vmatprep.subr.mxu0 0.0
  %1967 = vmatpush1.msra.mxu0 %v15
  %1968 = vmatprep.subr.mxu0 0.0
  %1969 = vmatpush1.msra.mxu0 %v14
  %1970 = vmatprep.subr.mxu0 0.0
  %1971 = vmatpush2.msra.mxu0 0.0
  %1972 = vmatprep.subr.mxu0 0.0
  %1973 = vmatpush2.msra.mxu0 0.0
  %1974 = vmatprep.subr.mxu0 0.0
  %1975 = vmatpush2.msra.mxu0 0.0
  %1976 = vmatprep.subr.mxu0 0.0
  %1977 = vmatpush2.msra.mxu0 0.0
  %1978 = vmatprep.subr.mxu0 0.0
  %1979 = vmatpush2.msra.mxu0 0.0
  %1980 = vmatprep.subr.mxu0 0.0
  %1981 = vmatpush2.msra.mxu0 0.0
  %1982 = vmatprep.subr.mxu0 0.0
  %1983 = vmatpush2.msra.mxu0 0.0
  %1984 = vmatprep.subr.mxu0 0.0
  %1985 = vmatpush2.msra.mxu0 0.0
  %1986 = vmatprep.subr.mxu0 0.0
  %1987 = vmatpush2.msra.mxu0 0.0
  %1988 = vmatprep.subr.mxu0 0.0
  %1989 = vmatpush2.msra.mxu0 0.0
  %1990 = vmatprep.subr.mxu0 0.0
  %1991 = vmatpush2.msra.mxu0 0.0
  %1992 = vmatprep.subr.mxu0 0.0
  %1993 = vmatpush2.msra.mxu0 0.0
  %1994 = vmatprep.subr.mxu0 0.0
  %1995 = vmatpush2.msra.mxu0 0.0
  %1996 = vmatprep.subr.mxu0 0.0
  %1997 = vmatpush2.msra.mxu0 0.0
  %1998 = vmatprep.subr.mxu0 0.0
  %1999 = vmatpush2.msra.mxu0 0.0
  %2000 = vmatprep.subr.mxu0 0.0
  %2001 = vmatpush2.msra.mxu0 0.0
  %2002 = vmatprep.mubr.f32.mxu0 0.0
  %2003 = vmatmul.mubr.f32.gmra.mxu0 %v1936
  %v2004 = vpop.f32.mrf.mxu0
  %v2005 = vadd.f32 %v890, %v2004
  %v2006 = vpop.f32.mrf.mxu0
  %2007 = vdwg.mxu0
  %v2008 = vxor.u32 %v2005, 2147483648
  %v2009 = vmul.f32 %v2008, 1.442695
  %v2010 = vpow.pop %v2009
  %v2011 = vadd.f32 %v2010, 1.0
  %v2012 = vrcp.pop %v2011
  %v2013 = vmul.f32 1.0, %v2012
  %2015 = vrot.lane.b32.xlu0 %v2005, 32
  %v2016 = vpop.permute.xlu0 %2015
  %v2018 = vmul.f32 %v2013, %v2016
  %2020 = vrot.lane.b32.xlu0 %v2018, 64
  %v2021 = vpop.permute.xlu0 %2020
  %v2023 = vadd.f32 %v2005, %v2021
  %v2024 = vtanh.pop %v2023
  %v2025 = vsub.f32 1.0, %v2013
  %2027 = vrot.lane.b32.xlu0 %v2024, 96
  %v2028 = vpop.permute.xlu0 %2027
  %v2030 = vmul.f32 %v2025, %v2028
  %v2031 = vmul.f32 %v2013, %v1823
  %v2032 = vadd.f32 %v2030, %v2031
  %2034 = vrot.lane.b32.xlu0 %v2032, 96
  %v2035 = vpop.permute.xlu0 %2034
  %s2037 = scalar_lea.vmem [#allocation3], 20
  %2038 = vst.msk [vmem:[%s2037] sm:$0xf] %vm574, %v2035
  %v2039 = vsel %vm390, %v1932, 0
  %2041 = vmatprep.subr.mxu0 0.0
  %2042 = vmatpush1.msra.mxu0 0.0
  %2043 = vmatprep.subr.mxu0 0.0
  %2044 = vmatpush1.msra.mxu0 0.0
  %2045 = vmatprep.subr.mxu0 0.0
  %2046 = vmatpush1.msra.mxu0 0.0
  %2047 = vmatprep.subr.mxu0 0.0
  %2048 = vmatpush1.msra.mxu0 0.0
  %2049 = vmatprep.subr.mxu0 0.0
  %2050 = vmatpush1.msra.mxu0 0.0
  %2051 = vmatprep.subr.mxu0 0.0
  %2052 = vmatpush1.msra.mxu0 0.0
  %2053 = vmatprep.subr.mxu0 0.0
  %2054 = vmatpush1.msra.mxu0 0.0
  %2055 = vmatprep.subr.mxu0 0.0
  %2056 = vmatpush1.msra.mxu0 0.0
  %2057 = vmatprep.subr.mxu0 0.0
  %2058 = vmatpush1.msra.mxu0 0.0
  %2059 = vmatprep.subr.mxu0 0.0
  %2060 = vmatpush1.msra.mxu0 0.0
  %2061 = vmatprep.subr.mxu0 0.0
  %2062 = vmatpush1.msra.mxu0 0.0
  %2063 = vmatprep.subr.mxu0 0.0
  %2064 = vmatpush1.msra.mxu0 0.0
  %2065 = vmatprep.subr.mxu0 0.0
  %2066 = vmatpush1.msra.mxu0 %v25
  %2067 = vmatprep.subr.mxu0 0.0
  %2068 = vmatpush1.msra.mxu0 %v24
  %2069 = vmatprep.subr.mxu0 0.0
  %2070 = vmatpush1.msra.mxu0 %v23
  %2071 = vmatprep.subr.mxu0 0.0
  %2072 = vmatpush1.msra.mxu0 %v22
  %2073 = vmatprep.subr.mxu0 0.0
  %2074 = vmatpush2.msra.mxu0 0.0
  %2075 = vmatprep.subr.mxu0 0.0
  %2076 = vmatpush2.msra.mxu0 0.0
  %2077 = vmatprep.subr.mxu0 0.0
  %2078 = vmatpush2.msra.mxu0 0.0
  %2079 = vmatprep.subr.mxu0 0.0
  %2080 = vmatpush2.msra.mxu0 0.0
  %2081 = vmatprep.subr.mxu0 0.0
  %2082 = vmatpush2.msra.mxu0 0.0
  %2083 = vmatprep.subr.mxu0 0.0
  %2084 = vmatpush2.msra.mxu0 0.0
  %2085 = vmatprep.subr.mxu0 0.0
  %2086 = vmatpush2.msra.mxu0 0.0
  %2087 = vmatprep.subr.mxu0 0.0
  %2088 = vmatpush2.msra.mxu0 0.0
  %2089 = vmatprep.subr.mxu0 0.0
  %2090 = vmatpush2.msra.mxu0 0.0
  %2091 = vmatprep.subr.mxu0 0.0
  %2092 = vmatpush2.msra.mxu0 0.0
  %2093 = vmatprep.subr.mxu0 0.0
  %2094 = vmatpush2.msra.mxu0 0.0
  %2095 = vmatprep.subr.mxu0 0.0
  %2096 = vmatpush2.msra.mxu0 0.0
  %2097 = vmatprep.subr.mxu0 0.0
  %2098 = vmatpush2.msra.mxu0 0.0
  %2099 = vmatprep.subr.mxu0 0.0
  %2100 = vmatpush2.msra.mxu0 0.0
  %2101 = vmatprep.subr.mxu0 0.0
  %2102 = vmatpush2.msra.mxu0 0.0
  %2103 = vmatprep.subr.mxu0 0.0
  %2104 = vmatpush2.msra.mxu0 0.0
  %2105 = vmatprep.mubr.f32.mxu0 0.0
  %2106 = vmatmul.mubr.f32.gmra.mxu0 %v2039
  %v2107 = vpop.f32.mrf.mxu0
  %v2108 = vadd.f32 %v781, %v2107
  %v2109 = vpop.f32.mrf.mxu0
  %2110 = vdwg.mxu0
  %s2111 = scalar_lea.vmem [#allocation2], 24
  %v2112 = vld [vmem:[%s2111] sm:$0xf]
  %v2113 = vadd.f32 %v2112, %v2108
  %v2114 = vxor.u32 %v2113, 2147483648
  %v2115 = vmul.f32 %v2114, 1.442695
  %v2116 = vpow.pop %v2115
  %v2117 = vadd.f32 %v2116, 1.0
  %v2118 = vrcp.pop %v2117
  %v2119 = vmul.f32 1.0, %v2118
  %2121 = vrot.lane.b32.xlu0 %v2108, 64
  %v2122 = vpop.permute.xlu0 %2121
  %v2124 = vmul.f32 %v2119, %v2122
  %2126 = vrot.lane.b32.xlu0 %v2124, 64
  %v2127 = vpop.permute.xlu0 %2126
  %v2129 = vadd.f32 %v2112, %v2127
  %v2130 = vtanh.pop %v2129
  %v2131 = vsub.f32 1.0, %v2119
  %2133 = vrot.lane.b32.xlu0 %v2130, 96
  %v2134 = vpop.permute.xlu0 %2133
  %v2136 = vmul.f32 %v2131, %v2134
  %v2137 = vmul.f32 %v2119, %v1929
  %v2138 = vadd.f32 %v2136, %v2137
  %2140 = vrot.lane.b32.xlu0 %v2138, 96
  %v2141 = vpop.permute.xlu0 %2140
  %v2143 = vsel %vm390, %v2141, %v2032
  %v2145 = vsel %vm399, %v2143, 0
  %2147 = vmatprep.subr.mxu0 0.0
  %2148 = vmatpush1.msra.mxu0 0.0
  %2149 = vmatprep.subr.mxu0 0.0
  %2150 = vmatpush1.msra.mxu0 0.0
  %2151 = vmatprep.subr.mxu0 0.0
  %2152 = vmatpush1.msra.mxu0 0.0
  %2153 = vmatprep.subr.mxu0 0.0
  %2154 = vmatpush1.msra.mxu0 0.0
  %2155 = vmatprep.subr.mxu0 0.0
  %2156 = vmatpush1.msra.mxu0 0.0
  %2157 = vmatprep.subr.mxu0 0.0
  %2158 = vmatpush1.msra.mxu0 0.0
  %2159 = vmatprep.subr.mxu0 0.0
  %2160 = vmatpush1.msra.mxu0 0.0
  %2161 = vmatprep.subr.mxu0 0.0
  %2162 = vmatpush1.msra.mxu0 0.0
  %2163 = vmatprep.subr.mxu0 0.0
  %2164 = vmatpush1.msra.mxu0 %v21
  %2165 = vmatprep.subr.mxu0 0.0
  %2166 = vmatpush1.msra.mxu0 %v20
  %2167 = vmatprep.subr.mxu0 0.0
  %2168 = vmatpush1.msra.mxu0 %v19
  %2169 = vmatprep.subr.mxu0 0.0
  %2170 = vmatpush1.msra.mxu0 %v18
  %2171 = vmatprep.subr.mxu0 0.0
  %2172 = vmatpush1.msra.mxu0 %v17
  %2173 = vmatprep.subr.mxu0 0.0
  %2174 = vmatpush1.msra.mxu0 %v16
  %2175 = vmatprep.subr.mxu0 0.0
  %2176 = vmatpush1.msra.mxu0 %v15
  %2177 = vmatprep.subr.mxu0 0.0
  %2178 = vmatpush1.msra.mxu0 %v14
  %2179 = vmatprep.subr.mxu0 0.0
  %2180 = vmatpush2.msra.mxu0 0.0
  %2181 = vmatprep.subr.mxu0 0.0
  %2182 = vmatpush2.msra.mxu0 0.0
  %2183 = vmatprep.subr.mxu0 0.0
  %2184 = vmatpush2.msra.mxu0 0.0
  %2185 = vmatprep.subr.mxu0 0.0
  %2186 = vmatpush2.msra.mxu0 0.0
  %2187 = vmatprep.subr.mxu0 0.0
  %2188 = vmatpush2.msra.mxu0 0.0
  %2189 = vmatprep.subr.mxu0 0.0
  %2190 = vmatpush2.msra.mxu0 0.0
  %2191 = vmatprep.subr.mxu0 0.0
  %2192 = vmatpush2.msra.mxu0 0.0
  %2193 = vmatprep.subr.mxu0 0.0
  %2194 = vmatpush2.msra.mxu0 0.0
  %2195 = vmatprep.subr.mxu0 0.0
  %2196 = vmatpush2.msra.mxu0 0.0
  %2197 = vmatprep.subr.mxu0 0.0
  %2198 = vmatpush2.msra.mxu0 0.0
  %2199 = vmatprep.subr.mxu0 0.0
  %2200 = vmatpush2.msra.mxu0 0.0
  %2201 = vmatprep.subr.mxu0 0.0
  %2202 = vmatpush2.msra.mxu0 0.0
  %2203 = vmatprep.subr.mxu0 0.0
  %2204 = vmatpush2.msra.mxu0 0.0
  %2205 = vmatprep.subr.mxu0 0.0
  %2206 = vmatpush2.msra.mxu0 0.0
  %2207 = vmatprep.subr.mxu0 0.0
  %2208 = vmatpush2.msra.mxu0 0.0
  %2209 = vmatprep.subr.mxu0 0.0
  %2210 = vmatpush2.msra.mxu0 0.0
  %2211 = vmatprep.mubr.f32.mxu0 0.0
  %2212 = vmatmul.mubr.f32.gmra.mxu0 %v2145
  %v2213 = vpop.f32.mrf.mxu0
  %v2214 = vadd.f32 %v890, %v2213
  %v2215 = vpop.f32.mrf.mxu0
  %2216 = vdwg.mxu0
  %v2217 = vxor.u32 %v2214, 2147483648
  %v2218 = vmul.f32 %v2217, 1.442695
  %v2219 = vpow.pop %v2218
  %v2220 = vadd.f32 %v2219, 1.0
  %v2221 = vrcp.pop %v2220
  %v2222 = vmul.f32 1.0, %v2221
  %2224 = vrot.lane.b32.xlu0 %v2214, 32
  %v2225 = vpop.permute.xlu0 %2224
  %v2227 = vmul.f32 %v2222, %v2225
  %2229 = vrot.lane.b32.xlu0 %v2227, 64
  %v2230 = vpop.permute.xlu0 %2229
  %v2232 = vadd.f32 %v2214, %v2230
  %v2233 = vtanh.pop %v2232
  %v2234 = vsub.f32 1.0, %v2222
  %2236 = vrot.lane.b32.xlu0 %v2233, 96
  %v2237 = vpop.permute.xlu0 %2236
  %v2239 = vmul.f32 %v2234, %v2237
  %v2240 = vmul.f32 %v2222, %v2032
  %v2241 = vadd.f32 %v2239, %v2240
  %2243 = vrot.lane.b32.xlu0 %v2241, 96
  %v2244 = vpop.permute.xlu0 %2243
  %s2246 = scalar_lea.vmem [#allocation3], 24
  %2247 = vst.msk [vmem:[%s2246] sm:$0xf] %vm574, %v2244
  %v2248 = vsel %vm390, %v2141, 0
  %2250 = vmatprep.subr.mxu0 0.0
  %2251 = vmatpush1.msra.mxu0 0.0
  %2252 = vmatprep.subr.mxu0 0.0
  %2253 = vmatpush1.msra.mxu0 0.0
  %2254 = vmatprep.subr.mxu0 0.0
  %2255 = vmatpush1.msra.mxu0 0.0
  %2256 = vmatprep.subr.mxu0 0.0
  %2257 = vmatpush1.msra.mxu0 0.0
  %2258 = vmatprep.subr.mxu0 0.0
  %2259 = vmatpush1.msra.mxu0 0.0
  %2260 = vmatprep.subr.mxu0 0.0
  %2261 = vmatpush1.msra.mxu0 0.0
  %2262 = vmatprep.subr.mxu0 0.0
  %2263 = vmatpush1.msra.mxu0 0.0
  %2264 = vmatprep.subr.mxu0 0.0
  %2265 = vmatpush1.msra.mxu0 0.0
  %2266 = vmatprep.subr.mxu0 0.0
  %2267 = vmatpush1.msra.mxu0 0.0
  %2268 = vmatprep.subr.mxu0 0.0
  %2269 = vmatpush1.msra.mxu0 0.0
  %2270 = vmatprep.subr.mxu0 0.0
  %2271 = vmatpush1.msra.mxu0 0.0
  %2272 = vmatprep.subr.mxu0 0.0
  %2273 = vmatpush1.msra.mxu0 0.0
  %2274 = vmatprep.subr.mxu0 0.0
  %2275 = vmatpush1.msra.mxu0 %v25
  %2276 = vmatprep.subr.mxu0 0.0
  %2277 = vmatpush1.msra.mxu0 %v24
  %2278 = vmatprep.subr.mxu0 0.0
  %2279 = vmatpush1.msra.mxu0 %v23
  %2280 = vmatprep.subr.mxu0 0.0
  %2281 = vmatpush1.msra.mxu0 %v22
  %2282 = vmatprep.subr.mxu0 0.0
  %2283 = vmatpush2.msra.mxu0 0.0
  %2284 = vmatprep.subr.mxu0 0.0
  %2285 = vmatpush2.msra.mxu0 0.0
  %2286 = vmatprep.subr.mxu0 0.0
  %2287 = vmatpush2.msra.mxu0 0.0
  %2288 = vmatprep.subr.mxu0 0.0
  %2289 = vmatpush2.msra.mxu0 0.0
  %2290 = vmatprep.subr.mxu0 0.0
  %2291 = vmatpush2.msra.mxu0 0.0
  %2292 = vmatprep.subr.mxu0 0.0
  %2293 = vmatpush2.msra.mxu0 0.0
  %2294 = vmatprep.subr.mxu0 0.0
  %2295 = vmatpush2.msra.mxu0 0.0
  %2296 = vmatprep.subr.mxu0 0.0
  %2297 = vmatpush2.msra.mxu0 0.0
  %2298 = vmatprep.subr.mxu0 0.0
  %2299 = vmatpush2.msra.mxu0 0.0
  %2300 = vmatprep.subr.mxu0 0.0
  %2301 = vmatpush2.msra.mxu0 0.0
  %2302 = vmatprep.subr.mxu0 0.0
  %2303 = vmatpush2.msra.mxu0 0.0
  %2304 = vmatprep.subr.mxu0 0.0
  %2305 = vmatpush2.msra.mxu0 0.0
  %2306 = vmatprep.subr.mxu0 0.0
  %2307 = vmatpush2.msra.mxu0 0.0
  %2308 = vmatprep.subr.mxu0 0.0
  %2309 = vmatpush2.msra.mxu0 0.0
  %2310 = vmatprep.subr.mxu0 0.0
  %2311 = vmatpush2.msra.mxu0 0.0
  %2312 = vmatprep.subr.mxu0 0.0
  %2313 = vmatpush2.msra.mxu0 0.0
  %2314 = vmatprep.mubr.f32.mxu0 0.0
  %2315 = vmatmul.mubr.f32.gmra.mxu0 %v2248
  %v2316 = vpop.f32.mrf.mxu0
  %v2317 = vadd.f32 %v781, %v2316
  %v2318 = vpop.f32.mrf.mxu0
  %2319 = vdwg.mxu0
  %s2320 = scalar_lea.vmem [#allocation2], 28
  %v2321 = vld [vmem:[%s2320] sm:$0xf]
  %v2322 = vadd.f32 %v2321, %v2317
  %v2323 = vxor.u32 %v2322, 2147483648
  %v2324 = vmul.f32 %v2323, 1.442695
  %v2325 = vpow.pop %v2324
  %v2326 = vadd.f32 %v2325, 1.0
  %v2327 = vrcp.pop %v2326
  %v2328 = vmul.f32 1.0, %v2327
  %2330 = vrot.lane.b32.xlu0 %v2317, 64
  %v2331 = vpop.permute.xlu0 %2330
  %v2333 = vmul.f32 %v2328, %v2331
  %2335 = vrot.lane.b32.xlu0 %v2333, 64
  %v2336 = vpop.permute.xlu0 %2335
  %v2338 = vadd.f32 %v2321, %v2336
  %v2339 = vtanh.pop %v2338
  %v2340 = vsub.f32 1.0, %v2328
  %2342 = vrot.lane.b32.xlu0 %v2339, 96
  %v2343 = vpop.permute.xlu0 %2342
  %v2345 = vmul.f32 %v2340, %v2343
  %v2346 = vmul.f32 %v2328, %v2138
  %v2347 = vadd.f32 %v2345, %v2346
  %2349 = vrot.lane.b32.xlu0 %v2347, 96
  %v2350 = vpop.permute.xlu0 %2349
  %v2352 = vsel %vm390, %v2350, %v2241
  %v2354 = vsel %vm399, %v2352, 0
  %2356 = vmatprep.subr.mxu0 0.0
  %2357 = vmatpush1.msra.mxu0 0.0
  %2358 = vmatprep.subr.mxu0 0.0
  %2359 = vmatpush1.msra.mxu0 0.0
  %2360 = vmatprep.subr.mxu0 0.0
  %2361 = vmatpush1.msra.mxu0 0.0
  %2362 = vmatprep.subr.mxu0 0.0
  %2363 = vmatpush1.msra.mxu0 0.0
  %2364 = vmatprep.subr.mxu0 0.0
  %2365 = vmatpush1.msra.mxu0 0.0
  %2366 = vmatprep.subr.mxu0 0.0
  %2367 = vmatpush1.msra.mxu0 0.0
  %2368 = vmatprep.subr.mxu0 0.0
  %2369 = vmatpush1.msra.mxu0 0.0
  %2370 = vmatprep.subr.mxu0 0.0
  %2371 = vmatpush1.msra.mxu0 0.0
  %2372 = vmatprep.subr.mxu0 0.0
  %2373 = vmatpush1.msra.mxu0 %v21
  %2374 = vmatprep.subr.mxu0 0.0
  %2375 = vmatpush1.msra.mxu0 %v20
  %2376 = vmatprep.subr.mxu0 0.0
  %2377 = vmatpush1.msra.mxu0 %v19
  %2378 = vmatprep.subr.mxu0 0.0
  %2379 = vmatpush1.msra.mxu0 %v18
  %2380 = vmatprep.subr.mxu0 0.0
  %2381 = vmatpush1.msra.mxu0 %v17
  %2382 = vmatprep.subr.mxu0 0.0
  %2383 = vmatpush1.msra.mxu0 %v16
  %2384 = vmatprep.subr.mxu0 0.0
  %2385 = vmatpush1.msra.mxu0 %v15
  %2386 = vmatprep.subr.mxu0 0.0
  %2387 = vmatpush1.msra.mxu0 %v14
  %2388 = vmatprep.subr.mxu0 0.0
  %2389 = vmatpush2.msra.mxu0 0.0
  %2390 = vmatprep.subr.mxu0 0.0
  %2391 = vmatpush2.msra.mxu0 0.0
  %2392 = vmatprep.subr.mxu0 0.0
  %2393 = vmatpush2.msra.mxu0 0.0
  %2394 = vmatprep.subr.mxu0 0.0
  %2395 = vmatpush2.msra.mxu0 0.0
  %2396 = vmatprep.subr.mxu0 0.0
  %2397 = vmatpush2.msra.mxu0 0.0
  %2398 = vmatprep.subr.mxu0 0.0
  %2399 = vmatpush2.msra.mxu0 0.0
  %2400 = vmatprep.subr.mxu0 0.0
  %2401 = vmatpush2.msra.mxu0 0.0
  %2402 = vmatprep.subr.mxu0 0.0
  %2403 = vmatpush2.msra.mxu0 0.0
  %2404 = vmatprep.subr.mxu0 0.0
  %2405 = vmatpush2.msra.mxu0 0.0
  %2406 = vmatprep.subr.mxu0 0.0
  %2407 = vmatpush2.msra.mxu0 0.0
  %2408 = vmatprep.subr.mxu0 0.0
  %2409 = vmatpush2.msra.mxu0 0.0
  %2410 = vmatprep.subr.mxu0 0.0
  %2411 = vmatpush2.msra.mxu0 0.0
  %2412 = vmatprep.subr.mxu0 0.0
  %2413 = vmatpush2.msra.mxu0 0.0
  %2414 = vmatprep.subr.mxu0 0.0
  %2415 = vmatpush2.msra.mxu0 0.0
  %2416 = vmatprep.subr.mxu0 0.0
  %2417 = vmatpush2.msra.mxu0 0.0
  %2418 = vmatprep.subr.mxu0 0.0
  %2419 = vmatpush2.msra.mxu0 0.0
  %2420 = vmatprep.mubr.f32.mxu0 0.0
  %2421 = vmatmul.mubr.f32.gmra.mxu0 %v2354
  %v2422 = vpop.f32.mrf.mxu0
  %v2423 = vadd.f32 %v890, %v2422
  %v2424 = vpop.f32.mrf.mxu0
  %2425 = vdwg.mxu0
  %v2426 = vxor.u32 %v2423, 2147483648
  %v2427 = vmul.f32 %v2426, 1.442695
  %v2428 = vpow.pop %v2427
  %v2429 = vadd.f32 %v2428, 1.0
  %v2430 = vrcp.pop %v2429
  %v2431 = vmul.f32 1.0, %v2430
  %2433 = vrot.lane.b32.xlu0 %v2423, 32
  %v2434 = vpop.permute.xlu0 %2433
  %v2436 = vmul.f32 %v2431, %v2434
  %2438 = vrot.lane.b32.xlu0 %v2436, 64
  %v2439 = vpop.permute.xlu0 %2438
  %v2441 = vadd.f32 %v2423, %v2439
  %v2442 = vtanh.pop %v2441
  %v2443 = vsub.f32 1.0, %v2431
  %2445 = vrot.lane.b32.xlu0 %v2442, 96
  %v2446 = vpop.permute.xlu0 %2445
  %v2448 = vmul.f32 %v2443, %v2446
  %v2449 = vmul.f32 %v2431, %v2241
  %v2450 = vadd.f32 %v2448, %v2449
  %2452 = vrot.lane.b32.xlu0 %v2450, 96
  %v2453 = vpop.permute.xlu0 %2452
  %s2455 = scalar_lea.vmem [#allocation3], 28
  %2456 = vst.msk [vmem:[%s2455] sm:$0xf] %vm574, %v2453
  %v2457 = vsel %vm390, %v2350, 0
  %2459 = vmatprep.subr.mxu0 0.0
  %2460 = vmatpush1.msra.mxu0 0.0
  %2461 = vmatprep.subr.mxu0 0.0
  %2462 = vmatpush1.msra.mxu0 0.0
  %2463 = vmatprep.subr.mxu0 0.0
  %2464 = vmatpush1.msra.mxu0 0.0
  %2465 = vmatprep.subr.mxu0 0.0
  %2466 = vmatpush1.msra.mxu0 0.0
  %2467 = vmatprep.subr.mxu0 0.0
  %2468 = vmatpush1.msra.mxu0 0.0
  %2469 = vmatprep.subr.mxu0 0.0
  %2470 = vmatpush1.msra.mxu0 0.0
  %2471 = vmatprep.subr.mxu0 0.0
  %2472 = vmatpush1.msra.mxu0 0.0
  %2473 = vmatprep.subr.mxu0 0.0
  %2474 = vmatpush1.msra.mxu0 0.0
  %2475 = vmatprep.subr.mxu0 0.0
  %2476 = vmatpush1.msra.mxu0 0.0
  %2477 = vmatprep.subr.mxu0 0.0
  %2478 = vmatpush1.msra.mxu0 0.0
  %2479 = vmatprep.subr.mxu0 0.0
  %2480 = vmatpush1.msra.mxu0 0.0
  %2481 = vmatprep.subr.mxu0 0.0
  %2482 = vmatpush1.msra.mxu0 0.0
  %2483 = vmatprep.subr.mxu0 0.0
  %2484 = vmatpush1.msra.mxu0 %v25
  %2485 = vmatprep.subr.mxu0 0.0
  %2486 = vmatpush1.msra.mxu0 %v24
  %2487 = vmatprep.subr.mxu0 0.0
  %2488 = vmatpush1.msra.mxu0 %v23
  %2489 = vmatprep.subr.mxu0 0.0
  %2490 = vmatpush1.msra.mxu0 %v22
  %2491 = vmatprep.subr.mxu0 0.0
  %2492 = vmatpush2.msra.mxu0 0.0
  %2493 = vmatprep.subr.mxu0 0.0
  %2494 = vmatpush2.msra.mxu0 0.0
  %2495 = vmatprep.subr.mxu0 0.0
  %2496 = vmatpush2.msra.mxu0 0.0
  %2497 = vmatprep.subr.mxu0 0.0
  %2498 = vmatpush2.msra.mxu0 0.0
  %2499 = vmatprep.subr.mxu0 0.0
  %2500 = vmatpush2.msra.mxu0 0.0
  %2501 = vmatprep.subr.mxu0 0.0
  %2502 = vmatpush2.msra.mxu0 0.0
  %2503 = vmatprep.subr.mxu0 0.0
  %2504 = vmatpush2.msra.mxu0 0.0
  %2505 = vmatprep.subr.mxu0 0.0
  %2506 = vmatpush2.msra.mxu0 0.0
  %2507 = vmatprep.subr.mxu0 0.0
  %2508 = vmatpush2.msra.mxu0 0.0
  %2509 = vmatprep.subr.mxu0 0.0
  %2510 = vmatpush2.msra.mxu0 0.0
  %2511 = vmatprep.subr.mxu0 0.0
  %2512 = vmatpush2.msra.mxu0 0.0
  %2513 = vmatprep.subr.mxu0 0.0
  %2514 = vmatpush2.msra.mxu0 0.0
  %2515 = vmatprep.subr.mxu0 0.0
  %2516 = vmatpush2.msra.mxu0 0.0
  %2517 = vmatprep.subr.mxu0 0.0
  %2518 = vmatpush2.msra.mxu0 0.0
  %2519 = vmatprep.subr.mxu0 0.0
  %2520 = vmatpush2.msra.mxu0 0.0
  %2521 = vmatprep.subr.mxu0 0.0
  %2522 = vmatpush2.msra.mxu0 0.0
  %2523 = vmatprep.mubr.f32.mxu0 0.0
  %2524 = vmatmul.mubr.f32.gmra.mxu0 %v2457
  %v2525 = vpop.f32.mrf.mxu0
  %v2526 = vadd.f32 %v781, %v2525
  %v2527 = vpop.f32.mrf.mxu0
  %2528 = vdwg.mxu0
  %s2529 = scalar_lea.vmem [#allocation2], 32
  %v2530 = vld [vmem:[%s2529] sm:$0xf]
  %v2531 = vadd.f32 %v2530, %v2526
  %v2532 = vxor.u32 %v2531, 2147483648
  %v2533 = vmul.f32 %v2532, 1.442695
  %v2534 = vpow.pop %v2533
  %v2535 = vadd.f32 %v2534, 1.0
  %v2536 = vrcp.pop %v2535
  %v2537 = vmul.f32 1.0, %v2536
  %2539 = vrot.lane.b32.xlu0 %v2526, 64
  %v2540 = vpop.permute.xlu0 %2539
  %v2542 = vmul.f32 %v2537, %v2540
  %2544 = vrot.lane.b32.xlu0 %v2542, 64
  %v2545 = vpop.permute.xlu0 %2544
  %v2547 = vadd.f32 %v2530, %v2545
  %v2548 = vtanh.pop %v2547
  %v2549 = vsub.f32 1.0, %v2537
  %2551 = vrot.lane.b32.xlu0 %v2548, 96
  %v2552 = vpop.permute.xlu0 %2551
  %v2554 = vmul.f32 %v2549, %v2552
  %v2555 = vmul.f32 %v2537, %v2347
  %v2556 = vadd.f32 %v2554, %v2555
  %2558 = vrot.lane.b32.xlu0 %v2556, 96
  %v2559 = vpop.permute.xlu0 %2558
  %v2561 = vsel %vm390, %v2559, %v2450
  %v2563 = vsel %vm399, %v2561, 0
  %2565 = vmatprep.subr.mxu0 0.0
  %2566 = vmatpush1.msra.mxu0 0.0
  %2567 = vmatprep.subr.mxu0 0.0
  %2568 = vmatpush1.msra.mxu0 0.0
  %2569 = vmatprep.subr.mxu0 0.0
  %2570 = vmatpush1.msra.mxu0 0.0
  %2571 = vmatprep.subr.mxu0 0.0
  %2572 = vmatpush1.msra.mxu0 0.0
  %2573 = vmatprep.subr.mxu0 0.0
  %2574 = vmatpush1.msra.mxu0 0.0
  %2575 = vmatprep.subr.mxu0 0.0
  %2576 = vmatpush1.msra.mxu0 0.0
  %2577 = vmatprep.subr.mxu0 0.0
  %2578 = vmatpush1.msra.mxu0 0.0
  %2579 = vmatprep.subr.mxu0 0.0
  %2580 = vmatpush1.msra.mxu0 0.0
  %2581 = vmatprep.subr.mxu0 0.0
  %2582 = vmatpush1.msra.mxu0 %v21
  %2583 = vmatprep.subr.mxu0 0.0
  %2584 = vmatpush1.msra.mxu0 %v20
  %2585 = vmatprep.subr.mxu0 0.0
  %2586 = vmatpush1.msra.mxu0 %v19
  %2587 = vmatprep.subr.mxu0 0.0
  %2588 = vmatpush1.msra.mxu0 %v18
  %2589 = vmatprep.subr.mxu0 0.0
  %2590 = vmatpush1.msra.mxu0 %v17
  %2591 = vmatprep.subr.mxu0 0.0
  %2592 = vmatpush1.msra.mxu0 %v16
  %2593 = vmatprep.subr.mxu0 0.0
  %2594 = vmatpush1.msra.mxu0 %v15
  %2595 = vmatprep.subr.mxu0 0.0
  %2596 = vmatpush1.msra.mxu0 %v14
  %2597 = vmatprep.subr.mxu0 0.0
  %2598 = vmatpush2.msra.mxu0 0.0
  %2599 = vmatprep.subr.mxu0 0.0
  %2600 = vmatpush2.msra.mxu0 0.0
  %2601 = vmatprep.subr.mxu0 0.0
  %2602 = vmatpush2.msra.mxu0 0.0
  %2603 = vmatprep.subr.mxu0 0.0
  %2604 = vmatpush2.msra.mxu0 0.0
  %2605 = vmatprep.subr.mxu0 0.0
  %2606 = vmatpush2.msra.mxu0 0.0
  %2607 = vmatprep.subr.mxu0 0.0
  %2608 = vmatpush2.msra.mxu0 0.0
  %2609 = vmatprep.subr.mxu0 0.0
  %2610 = vmatpush2.msra.mxu0 0.0
  %2611 = vmatprep.subr.mxu0 0.0
  %2612 = vmatpush2.msra.mxu0 0.0
  %2613 = vmatprep.subr.mxu0 0.0
  %2614 = vmatpush2.msra.mxu0 0.0
  %2615 = vmatprep.subr.mxu0 0.0
  %2616 = vmatpush2.msra.mxu0 0.0
  %2617 = vmatprep.subr.mxu0 0.0
  %2618 = vmatpush2.msra.mxu0 0.0
  %2619 = vmatprep.subr.mxu0 0.0
  %2620 = vmatpush2.msra.mxu0 0.0
  %2621 = vmatprep.subr.mxu0 0.0
  %2622 = vmatpush2.msra.mxu0 0.0
  %2623 = vmatprep.subr.mxu0 0.0
  %2624 = vmatpush2.msra.mxu0 0.0
  %2625 = vmatprep.subr.mxu0 0.0
  %2626 = vmatpush2.msra.mxu0 0.0
  %2627 = vmatprep.subr.mxu0 0.0
  %2628 = vmatpush2.msra.mxu0 0.0
  %2629 = vmatprep.mubr.f32.mxu0 0.0
  %2630 = vmatmul.mubr.f32.gmra.mxu0 %v2563
  %v2631 = vpop.f32.mrf.mxu0
  %v2632 = vadd.f32 %v890, %v2631
  %v2633 = vpop.f32.mrf.mxu0
  %2634 = vdwg.mxu0
  %v2635 = vxor.u32 %v2632, 2147483648
  %v2636 = vmul.f32 %v2635, 1.442695
  %v2637 = vpow.pop %v2636
  %v2638 = vadd.f32 %v2637, 1.0
  %v2639 = vrcp.pop %v2638
  %v2640 = vmul.f32 1.0, %v2639
  %2642 = vrot.lane.b32.xlu0 %v2632, 32
  %v2643 = vpop.permute.xlu0 %2642
  %v2645 = vmul.f32 %v2640, %v2643
  %2647 = vrot.lane.b32.xlu0 %v2645, 64
  %v2648 = vpop.permute.xlu0 %2647
  %v2650 = vadd.f32 %v2632, %v2648
  %v2651 = vtanh.pop %v2650
  %v2652 = vsub.f32 1.0, %v2640
  %2654 = vrot.lane.b32.xlu0 %v2651, 96
  %v2655 = vpop.permute.xlu0 %2654
  %v2657 = vmul.f32 %v2652, %v2655
  %v2658 = vmul.f32 %v2640, %v2450
  %v2659 = vadd.f32 %v2657, %v2658
  %2661 = vrot.lane.b32.xlu0 %v2659, 96
  %v2662 = vpop.permute.xlu0 %2661
  %s2664 = scalar_lea.vmem [#allocation3], 32
  %2665 = vst.msk [vmem:[%s2664] sm:$0xf] %vm574, %v2662
  %v2666 = vsel %vm390, %v2559, 0
  %2668 = vmatprep.subr.mxu0 0.0
  %2669 = vmatpush1.msra.mxu0 0.0
  %2670 = vmatprep.subr.mxu0 0.0
  %2671 = vmatpush1.msra.mxu0 0.0
  %2672 = vmatprep.subr.mxu0 0.0
  %2673 = vmatpush1.msra.mxu0 0.0
  %2674 = vmatprep.subr.mxu0 0.0
  %2675 = vmatpush1.msra.mxu0 0.0
  %2676 = vmatprep.subr.mxu0 0.0
  %2677 = vmatpush1.msra.mxu0 0.0
  %2678 = vmatprep.subr.mxu0 0.0
  %2679 = vmatpush1.msra.mxu0 0.0
  %2680 = vmatprep.subr.mxu0 0.0
  %2681 = vmatpush1.msra.mxu0 0.0
  %2682 = vmatprep.subr.mxu0 0.0
  %2683 = vmatpush1.msra.mxu0 0.0
  %2684 = vmatprep.subr.mxu0 0.0
  %2685 = vmatpush1.msra.mxu0 0.0
  %2686 = vmatprep.subr.mxu0 0.0
  %2687 = vmatpush1.msra.mxu0 0.0
  %2688 = vmatprep.subr.mxu0 0.0
  %2689 = vmatpush1.msra.mxu0 0.0
  %2690 = vmatprep.subr.mxu0 0.0
  %2691 = vmatpush1.msra.mxu0 0.0
  %2692 = vmatprep.subr.mxu0 0.0
  %2693 = vmatpush1.msra.mxu0 %v25
  %2694 = vmatprep.subr.mxu0 0.0
  %2695 = vmatpush1.msra.mxu0 %v24
  %2696 = vmatprep.subr.mxu0 0.0
  %2697 = vmatpush1.msra.mxu0 %v23
  %2698 = vmatprep.subr.mxu0 0.0
  %2699 = vmatpush1.msra.mxu0 %v22
  %2700 = vmatprep.subr.mxu0 0.0
  %2701 = vmatpush2.msra.mxu0 0.0
  %2702 = vmatprep.subr.mxu0 0.0
  %2703 = vmatpush2.msra.mxu0 0.0
  %2704 = vmatprep.subr.mxu0 0.0
  %2705 = vmatpush2.msra.mxu0 0.0
  %2706 = vmatprep.subr.mxu0 0.0
  %2707 = vmatpush2.msra.mxu0 0.0
  %2708 = vmatprep.subr.mxu0 0.0
  %2709 = vmatpush2.msra.mxu0 0.0
  %2710 = vmatprep.subr.mxu0 0.0
  %2711 = vmatpush2.msra.mxu0 0.0
  %2712 = vmatprep.subr.mxu0 0.0
  %2713 = vmatpush2.msra.mxu0 0.0
  %2714 = vmatprep.subr.mxu0 0.0
  %2715 = vmatpush2.msra.mxu0 0.0
  %2716 = vmatprep.subr.mxu0 0.0
  %2717 = vmatpush2.msra.mxu0 0.0
  %2718 = vmatprep.subr.mxu0 0.0
  %2719 = vmatpush2.msra.mxu0 0.0
  %2720 = vmatprep.subr.mxu0 0.0
  %2721 = vmatpush2.msra.mxu0 0.0
  %2722 = vmatprep.subr.mxu0 0.0
  %2723 = vmatpush2.msra.mxu0 0.0
  %2724 = vmatprep.subr.mxu0 0.0
  %2725 = vmatpush2.msra.mxu0 0.0
  %2726 = vmatprep.subr.mxu0 0.0
  %2727 = vmatpush2.msra.mxu0 0.0
  %2728 = vmatprep.subr.mxu0 0.0
  %2729 = vmatpush2.msra.mxu0 0.0
  %2730 = vmatprep.subr.mxu0 0.0
  %2731 = vmatpush2.msra.mxu0 0.0
  %2732 = vmatprep.mubr.f32.mxu0 0.0
  %2733 = vmatmul.mubr.f32.gmra.mxu0 %v2666
  %v2734 = vpop.f32.mrf.mxu0
  %v2735 = vadd.f32 %v781, %v2734
  %v2736 = vpop.f32.mrf.mxu0
  %2737 = vdwg.mxu0
  %s2738 = scalar_lea.vmem [#allocation2], 36
  %v2739 = vld [vmem:[%s2738] sm:$0xf]
  %v2740 = vadd.f32 %v2739, %v2735
  %v2741 = vxor.u32 %v2740, 2147483648
  %v2742 = vmul.f32 %v2741, 1.442695
  %v2743 = vpow.pop %v2742
  %v2744 = vadd.f32 %v2743, 1.0
  %v2745 = vrcp.pop %v2744
  %v2746 = vmul.f32 1.0, %v2745
  %2748 = vrot.lane.b32.xlu0 %v2735, 64
  %v2749 = vpop.permute.xlu0 %2748
  %v2751 = vmul.f32 %v2746, %v2749
  %2753 = vrot.lane.b32.xlu0 %v2751, 64
  %v2754 = vpop.permute.xlu0 %2753
  %v2756 = vadd.f32 %v2739, %v2754
  %v2757 = vtanh.pop %v2756
  %v2758 = vsub.f32 1.0, %v2746
  %2760 = vrot.lane.b32.xlu0 %v2757, 96
  %v2761 = vpop.permute.xlu0 %2760
  %v2763 = vmul.f32 %v2758, %v2761
  %v2764 = vmul.f32 %v2746, %v2556
  %v2765 = vadd.f32 %v2763, %v2764
  %2767 = vrot.lane.b32.xlu0 %v2765, 96
  %v2768 = vpop.permute.xlu0 %2767
  %v2770 = vsel %vm390, %v2768, %v2659
  %v2772 = vsel %vm399, %v2770, 0
  %2774 = vmatprep.subr.mxu0 0.0
  %2775 = vmatpush1.msra.mxu0 0.0
  %2776 = vmatprep.subr.mxu0 0.0
  %2777 = vmatpush1.msra.mxu0 0.0
  %2778 = vmatprep.subr.mxu0 0.0
  %2779 = vmatpush1.msra.mxu0 0.0
  %2780 = vmatprep.subr.mxu0 0.0
  %2781 = vmatpush1.msra.mxu0 0.0
  %2782 = vmatprep.subr.mxu0 0.0
  %2783 = vmatpush1.msra.mxu0 0.0
  %2784 = vmatprep.subr.mxu0 0.0
  %2785 = vmatpush1.msra.mxu0 0.0
  %2786 = vmatprep.subr.mxu0 0.0
  %2787 = vmatpush1.msra.mxu0 0.0
  %2788 = vmatprep.subr.mxu0 0.0
  %2789 = vmatpush1.msra.mxu0 0.0
  %2790 = vmatprep.subr.mxu0 0.0
  %2791 = vmatpush1.msra.mxu0 %v21
  %2792 = vmatprep.subr.mxu0 0.0
  %2793 = vmatpush1.msra.mxu0 %v20
  %2794 = vmatprep.subr.mxu0 0.0
  %2795 = vmatpush1.msra.mxu0 %v19
  %2796 = vmatprep.subr.mxu0 0.0
  %2797 = vmatpush1.msra.mxu0 %v18
  %2798 = vmatprep.subr.mxu0 0.0
  %2799 = vmatpush1.msra.mxu0 %v17
  %2800 = vmatprep.subr.mxu0 0.0
  %2801 = vmatpush1.msra.mxu0 %v16
  %2802 = vmatprep.subr.mxu0 0.0
  %2803 = vmatpush1.msra.mxu0 %v15
  %2804 = vmatprep.subr.mxu0 0.0
  %2805 = vmatpush1.msra.mxu0 %v14
  %2806 = vmatprep.subr.mxu0 0.0
  %2807 = vmatpush2.msra.mxu0 0.0
  %2808 = vmatprep.subr.mxu0 0.0
  %2809 = vmatpush2.msra.mxu0 0.0
  %2810 = vmatprep.subr.mxu0 0.0
  %2811 = vmatpush2.msra.mxu0 0.0
  %2812 = vmatprep.subr.mxu0 0.0
  %2813 = vmatpush2.msra.mxu0 0.0
  %2814 = vmatprep.subr.mxu0 0.0
  %2815 = vmatpush2.msra.mxu0 0.0
  %2816 = vmatprep.subr.mxu0 0.0
  %2817 = vmatpush2.msra.mxu0 0.0
  %2818 = vmatprep.subr.mxu0 0.0
  %2819 = vmatpush2.msra.mxu0 0.0
  %2820 = vmatprep.subr.mxu0 0.0
  %2821 = vmatpush2.msra.mxu0 0.0
  %2822 = vmatprep.subr.mxu0 0.0
  %2823 = vmatpush2.msra.mxu0 0.0
  %2824 = vmatprep.subr.mxu0 0.0
  %2825 = vmatpush2.msra.mxu0 0.0
  %2826 = vmatprep.subr.mxu0 0.0
  %2827 = vmatpush2.msra.mxu0 0.0
  %2828 = vmatprep.subr.mxu0 0.0
  %2829 = vmatpush2.msra.mxu0 0.0
  %2830 = vmatprep.subr.mxu0 0.0
  %2831 = vmatpush2.msra.mxu0 0.0
  %2832 = vmatprep.subr.mxu0 0.0
  %2833 = vmatpush2.msra.mxu0 0.0
  %2834 = vmatprep.subr.mxu0 0.0
  %2835 = vmatpush2.msra.mxu0 0.0
  %2836 = vmatprep.subr.mxu0 0.0
  %2837 = vmatpush2.msra.mxu0 0.0
  %2838 = vmatprep.mubr.f32.mxu0 0.0
  %2839 = vmatmul.mubr.f32.gmra.mxu0 %v2772
  %v2840 = vpop.f32.mrf.mxu0
  %v2841 = vadd.f32 %v890, %v2840
  %v2842 = vpop.f32.mrf.mxu0
  %2843 = vdwg.mxu0
  %v2844 = vxor.u32 %v2841, 2147483648
  %v2845 = vmul.f32 %v2844, 1.442695
  %v2846 = vpow.pop %v2845
  %v2847 = vadd.f32 %v2846, 1.0
  %v2848 = vrcp.pop %v2847
  %v2849 = vmul.f32 1.0, %v2848
  %2851 = vrot.lane.b32.xlu0 %v2841, 32
  %v2852 = vpop.permute.xlu0 %2851
  %v2854 = vmul.f32 %v2849, %v2852
  %2856 = vrot.lane.b32.xlu0 %v2854, 64
  %v2857 = vpop.permute.xlu0 %2856
  %v2859 = vadd.f32 %v2841, %v2857
  %v2860 = vtanh.pop %v2859
  %v2861 = vsub.f32 1.0, %v2849
  %2863 = vrot.lane.b32.xlu0 %v2860, 96
  %v2864 = vpop.permute.xlu0 %2863
  %v2866 = vmul.f32 %v2861, %v2864
  %v2867 = vmul.f32 %v2849, %v2659
  %v2868 = vadd.f32 %v2866, %v2867
  %2870 = vrot.lane.b32.xlu0 %v2868, 96
  %v2871 = vpop.permute.xlu0 %2870
  %s2873 = scalar_lea.vmem [#allocation3], 36
  %2874 = vst.msk [vmem:[%s2873] sm:$0xf] %vm574, %v2871
  %v2875 = vsel %vm390, %v2768, 0
  %2877 = vmatprep.subr.mxu0 0.0
  %2878 = vmatpush1.msra.mxu0 0.0
  %2879 = vmatprep.subr.mxu0 0.0
  %2880 = vmatpush1.msra.mxu0 0.0
  %2881 = vmatprep.subr.mxu0 0.0
  %2882 = vmatpush1.msra.mxu0 0.0
  %2883 = vmatprep.subr.mxu0 0.0
  %2884 = vmatpush1.msra.mxu0 0.0
  %2885 = vmatprep.subr.mxu0 0.0
  %2886 = vmatpush1.msra.mxu0 0.0
  %2887 = vmatprep.subr.mxu0 0.0
  %2888 = vmatpush1.msra.mxu0 0.0
  %2889 = vmatprep.subr.mxu0 0.0
  %2890 = vmatpush1.msra.mxu0 0.0
  %2891 = vmatprep.subr.mxu0 0.0
  %2892 = vmatpush1.msra.mxu0 0.0
  %2893 = vmatprep.subr.mxu0 0.0
  %2894 = vmatpush1.msra.mxu0 0.0
  %2895 = vmatprep.subr.mxu0 0.0
  %2896 = vmatpush1.msra.mxu0 0.0
  %2897 = vmatprep.subr.mxu0 0.0
  %2898 = vmatpush1.msra.mxu0 0.0
  %2899 = vmatprep.subr.mxu0 0.0
  %2900 = vmatpush1.msra.mxu0 0.0
  %2901 = vmatprep.subr.mxu0 0.0
  %2902 = vmatpush1.msra.mxu0 %v25
  %2903 = vmatprep.subr.mxu0 0.0
  %2904 = vmatpush1.msra.mxu0 %v24
  %2905 = vmatprep.subr.mxu0 0.0
  %2906 = vmatpush1.msra.mxu0 %v23
  %2907 = vmatprep.subr.mxu0 0.0
  %2908 = vmatpush1.msra.mxu0 %v22
  %2909 = vmatprep.subr.mxu0 0.0
  %2910 = vmatpush2.msra.mxu0 0.0
  %2911 = vmatprep.subr.mxu0 0.0
  %2912 = vmatpush2.msra.mxu0 0.0
  %2913 = vmatprep.subr.mxu0 0.0
  %2914 = vmatpush2.msra.mxu0 0.0
  %2915 = vmatprep.subr.mxu0 0.0
  %2916 = vmatpush2.msra.mxu0 0.0
  %2917 = vmatprep.subr.mxu0 0.0
  %2918 = vmatpush2.msra.mxu0 0.0
  %2919 = vmatprep.subr.mxu0 0.0
  %2920 = vmatpush2.msra.mxu0 0.0
  %2921 = vmatprep.subr.mxu0 0.0
  %2922 = vmatpush2.msra.mxu0 0.0
  %2923 = vmatprep.subr.mxu0 0.0
  %2924 = vmatpush2.msra.mxu0 0.0
  %2925 = vmatprep.subr.mxu0 0.0
  %2926 = vmatpush2.msra.mxu0 0.0
  %2927 = vmatprep.subr.mxu0 0.0
  %2928 = vmatpush2.msra.mxu0 0.0
  %2929 = vmatprep.subr.mxu0 0.0
  %2930 = vmatpush2.msra.mxu0 0.0
  %2931 = vmatprep.subr.mxu0 0.0
  %2932 = vmatpush2.msra.mxu0 0.0
  %2933 = vmatprep.subr.mxu0 0.0
  %2934 = vmatpush2.msra.mxu0 0.0
  %2935 = vmatprep.subr.mxu0 0.0
  %2936 = vmatpush2.msra.mxu0 0.0
  %2937 = vmatprep.subr.mxu0 0.0
  %2938 = vmatpush2.msra.mxu0 0.0
  %2939 = vmatprep.subr.mxu0 0.0
  %2940 = vmatpush2.msra.mxu0 0.0
  %2941 = vmatprep.mubr.f32.mxu0 0.0
  %2942 = vmatmul.mubr.f32.gmra.mxu0 %v2875
  %v2943 = vpop.f32.mrf.mxu0
  %v2944 = vadd.f32 %v781, %v2943
  %v2945 = vpop.f32.mrf.mxu0
  %2946 = vdwg.mxu0
  %s2947 = scalar_lea.vmem [#allocation2], 40
  %v2948 = vld [vmem:[%s2947] sm:$0xf]
  %v2949 = vadd.f32 %v2948, %v2944
  %v2950 = vxor.u32 %v2949, 2147483648
  %v2951 = vmul.f32 %v2950, 1.442695
  %v2952 = vpow.pop %v2951
  %v2953 = vadd.f32 %v2952, 1.0
  %v2954 = vrcp.pop %v2953
  %v2955 = vmul.f32 1.0, %v2954
  %2957 = vrot.lane.b32.xlu0 %v2944, 64
  %v2958 = vpop.permute.xlu0 %2957
  %v2960 = vmul.f32 %v2955, %v2958
  %2962 = vrot.lane.b32.xlu0 %v2960, 64
  %v2963 = vpop.permute.xlu0 %2962
  %v2965 = vadd.f32 %v2948, %v2963
  %v2966 = vtanh.pop %v2965
  %v2967 = vsub.f32 1.0, %v2955
  %2969 = vrot.lane.b32.xlu0 %v2966, 96
  %v2970 = vpop.permute.xlu0 %2969
  %v2972 = vmul.f32 %v2967, %v2970
  %v2973 = vmul.f32 %v2955, %v2765
  %v2974 = vadd.f32 %v2972, %v2973
  %2976 = vrot.lane.b32.xlu0 %v2974, 96
  %v2977 = vpop.permute.xlu0 %2976
  %v2979 = vsel %vm390, %v2977, %v2868
  %v2981 = vsel %vm399, %v2979, 0
  %2983 = vmatprep.subr.mxu0 0.0
  %2984 = vmatpush1.msra.mxu0 0.0
  %2985 = vmatprep.subr.mxu0 0.0
  %2986 = vmatpush1.msra.mxu0 0.0
  %2987 = vmatprep.subr.mxu0 0.0
  %2988 = vmatpush1.msra.mxu0 0.0
  %2989 = vmatprep.subr.mxu0 0.0
  %2990 = vmatpush1.msra.mxu0 0.0
  %2991 = vmatprep.subr.mxu0 0.0
  %2992 = vmatpush1.msra.mxu0 0.0
  %2993 = vmatprep.subr.mxu0 0.0
  %2994 = vmatpush1.msra.mxu0 0.0
  %2995 = vmatprep.subr.mxu0 0.0
  %2996 = vmatpush1.msra.mxu0 0.0
  %2997 = vmatprep.subr.mxu0 0.0
  %2998 = vmatpush1.msra.mxu0 0.0
  %2999 = vmatprep.subr.mxu0 0.0
  %3000 = vmatpush1.msra.mxu0 %v21
  %3001 = vmatprep.subr.mxu0 0.0
  %3002 = vmatpush1.msra.mxu0 %v20
  %3003 = vmatprep.subr.mxu0 0.0
  %3004 = vmatpush1.msra.mxu0 %v19
  %3005 = vmatprep.subr.mxu0 0.0
  %3006 = vmatpush1.msra.mxu0 %v18
  %3007 = vmatprep.subr.mxu0 0.0
  %3008 = vmatpush1.msra.mxu0 %v17
  %3009 = vmatprep.subr.mxu0 0.0
  %3010 = vmatpush1.msra.mxu0 %v16
  %3011 = vmatprep.subr.mxu0 0.0
  %3012 = vmatpush1.msra.mxu0 %v15
  %3013 = vmatprep.subr.mxu0 0.0
  %3014 = vmatpush1.msra.mxu0 %v14
  %3015 = vmatprep.subr.mxu0 0.0
  %3016 = vmatpush2.msra.mxu0 0.0
  %3017 = vmatprep.subr.mxu0 0.0
  %3018 = vmatpush2.msra.mxu0 0.0
  %3019 = vmatprep.subr.mxu0 0.0
  %3020 = vmatpush2.msra.mxu0 0.0
  %3021 = vmatprep.subr.mxu0 0.0
  %3022 = vmatpush2.msra.mxu0 0.0
  %3023 = vmatprep.subr.mxu0 0.0
  %3024 = vmatpush2.msra.mxu0 0.0
  %3025 = vmatprep.subr.mxu0 0.0
  %3026 = vmatpush2.msra.mxu0 0.0
  %3027 = vmatprep.subr.mxu0 0.0
  %3028 = vmatpush2.msra.mxu0 0.0
  %3029 = vmatprep.subr.mxu0 0.0
  %3030 = vmatpush2.msra.mxu0 0.0
  %3031 = vmatprep.subr.mxu0 0.0
  %3032 = vmatpush2.msra.mxu0 0.0
  %3033 = vmatprep.subr.mxu0 0.0
  %3034 = vmatpush2.msra.mxu0 0.0
  %3035 = vmatprep.subr.mxu0 0.0
  %3036 = vmatpush2.msra.mxu0 0.0
  %3037 = vmatprep.subr.mxu0 0.0
  %3038 = vmatpush2.msra.mxu0 0.0
  %3039 = vmatprep.subr.mxu0 0.0
  %3040 = vmatpush2.msra.mxu0 0.0
  %3041 = vmatprep.subr.mxu0 0.0
  %3042 = vmatpush2.msra.mxu0 0.0
  %3043 = vmatprep.subr.mxu0 0.0
  %3044 = vmatpush2.msra.mxu0 0.0
  %3045 = vmatprep.subr.mxu0 0.0
  %3046 = vmatpush2.msra.mxu0 0.0
  %3047 = vmatprep.mubr.f32.mxu0 0.0
  %3048 = vmatmul.mubr.f32.gmra.mxu0 %v2981
  %v3049 = vpop.f32.mrf.mxu0
  %v3050 = vadd.f32 %v890, %v3049
  %v3051 = vpop.f32.mrf.mxu0
  %3052 = vdwg.mxu0
  %v3053 = vxor.u32 %v3050, 2147483648
  %v3054 = vmul.f32 %v3053, 1.442695
  %v3055 = vpow.pop %v3054
  %v3056 = vadd.f32 %v3055, 1.0
  %v3057 = vrcp.pop %v3056
  %v3058 = vmul.f32 1.0, %v3057
  %3060 = vrot.lane.b32.xlu0 %v3050, 32
  %v3061 = vpop.permute.xlu0 %3060
  %v3063 = vmul.f32 %v3058, %v3061
  %3065 = vrot.lane.b32.xlu0 %v3063, 64
  %v3066 = vpop.permute.xlu0 %3065
  %v3068 = vadd.f32 %v3050, %v3066
  %v3069 = vtanh.pop %v3068
  %v3070 = vsub.f32 1.0, %v3058
  %3072 = vrot.lane.b32.xlu0 %v3069, 96
  %v3073 = vpop.permute.xlu0 %3072
  %v3075 = vmul.f32 %v3070, %v3073
  %v3076 = vmul.f32 %v3058, %v2868
  %v3077 = vadd.f32 %v3075, %v3076
  %3079 = vrot.lane.b32.xlu0 %v3077, 96
  %v3080 = vpop.permute.xlu0 %3079
  %s3082 = scalar_lea.vmem [#allocation3], 40
  %3083 = vst.msk [vmem:[%s3082] sm:$0xf] %vm574, %v3080
  %v3084 = vsel %vm390, %v2977, 0
  %3086 = vmatprep.subr.mxu0 0.0
  %3087 = vmatpush1.msra.mxu0 0.0
  %3088 = vmatprep.subr.mxu0 0.0
  %3089 = vmatpush1.msra.mxu0 0.0
  %3090 = vmatprep.subr.mxu0 0.0
  %3091 = vmatpush1.msra.mxu0 0.0
  %3092 = vmatprep.subr.mxu0 0.0
  %3093 = vmatpush1.msra.mxu0 0.0
  %3094 = vmatprep.subr.mxu0 0.0
  %3095 = vmatpush1.msra.mxu0 0.0
  %3096 = vmatprep.subr.mxu0 0.0
  %3097 = vmatpush1.msra.mxu0 0.0
  %3098 = vmatprep.subr.mxu0 0.0
  %3099 = vmatpush1.msra.mxu0 0.0
  %3100 = vmatprep.subr.mxu0 0.0
  %3101 = vmatpush1.msra.mxu0 0.0
  %3102 = vmatprep.subr.mxu0 0.0
  %3103 = vmatpush1.msra.mxu0 0.0
  %3104 = vmatprep.subr.mxu0 0.0
  %3105 = vmatpush1.msra.mxu0 0.0
  %3106 = vmatprep.subr.mxu0 0.0
  %3107 = vmatpush1.msra.mxu0 0.0
  %3108 = vmatprep.subr.mxu0 0.0
  %3109 = vmatpush1.msra.mxu0 0.0
  %3110 = vmatprep.subr.mxu0 0.0
  %3111 = vmatpush1.msra.mxu0 %v25
  %3112 = vmatprep.subr.mxu0 0.0
  %3113 = vmatpush1.msra.mxu0 %v24
  %3114 = vmatprep.subr.mxu0 0.0
  %3115 = vmatpush1.msra.mxu0 %v23
  %3116 = vmatprep.subr.mxu0 0.0
  %3117 = vmatpush1.msra.mxu0 %v22
  %3118 = vmatprep.subr.mxu0 0.0
  %3119 = vmatpush2.msra.mxu0 0.0
  %3120 = vmatprep.subr.mxu0 0.0
  %3121 = vmatpush2.msra.mxu0 0.0
  %3122 = vmatprep.subr.mxu0 0.0
  %3123 = vmatpush2.msra.mxu0 0.0
  %3124 = vmatprep.subr.mxu0 0.0
  %3125 = vmatpush2.msra.mxu0 0.0
  %3126 = vmatprep.subr.mxu0 0.0
  %3127 = vmatpush2.msra.mxu0 0.0
  %3128 = vmatprep.subr.mxu0 0.0
  %3129 = vmatpush2.msra.mxu0 0.0
  %3130 = vmatprep.subr.mxu0 0.0
  %3131 = vmatpush2.msra.mxu0 0.0
  %3132 = vmatprep.subr.mxu0 0.0
  %3133 = vmatpush2.msra.mxu0 0.0
  %3134 = vmatprep.subr.mxu0 0.0
  %3135 = vmatpush2.msra.mxu0 0.0
  %3136 = vmatprep.subr.mxu0 0.0
  %3137 = vmatpush2.msra.mxu0 0.0
  %3138 = vmatprep.subr.mxu0 0.0
  %3139 = vmatpush2.msra.mxu0 0.0
  %3140 = vmatprep.subr.mxu0 0.0
  %3141 = vmatpush2.msra.mxu0 0.0
  %3142 = vmatprep.subr.mxu0 0.0
  %3143 = vmatpush2.msra.mxu0 0.0
  %3144 = vmatprep.subr.mxu0 0.0
  %3145 = vmatpush2.msra.mxu0 0.0
  %3146 = vmatprep.subr.mxu0 0.0
  %3147 = vmatpush2.msra.mxu0 0.0
  %3148 = vmatprep.subr.mxu0 0.0
  %3149 = vmatpush2.msra.mxu0 0.0
  %3150 = vmatprep.mubr.f32.mxu0 0.0
  %3151 = vmatmul.mubr.f32.gmra.mxu0 %v3084
  %v3152 = vpop.f32.mrf.mxu0
  %v3153 = vadd.f32 %v781, %v3152
  %v3154 = vpop.f32.mrf.mxu0
  %3155 = vdwg.mxu0
  %s3156 = scalar_lea.vmem [#allocation2], 44
  %v3157 = vld [vmem:[%s3156] sm:$0xf]
  %v3158 = vadd.f32 %v3157, %v3153
  %v3159 = vxor.u32 %v3158, 2147483648
  %v3160 = vmul.f32 %v3159, 1.442695
  %v3161 = vpow.pop %v3160
  %v3162 = vadd.f32 %v3161, 1.0
  %v3163 = vrcp.pop %v3162
  %v3164 = vmul.f32 1.0, %v3163
  %3166 = vrot.lane.b32.xlu0 %v3153, 64
  %v3167 = vpop.permute.xlu0 %3166
  %v3169 = vmul.f32 %v3164, %v3167
  %3171 = vrot.lane.b32.xlu0 %v3169, 64
  %v3172 = vpop.permute.xlu0 %3171
  %v3174 = vadd.f32 %v3157, %v3172
  %v3175 = vtanh.pop %v3174
  %v3176 = vsub.f32 1.0, %v3164
  %3178 = vrot.lane.b32.xlu0 %v3175, 96
  %v3179 = vpop.permute.xlu0 %3178
  %v3181 = vmul.f32 %v3176, %v3179
  %v3182 = vmul.f32 %v3164, %v2974
  %v3183 = vadd.f32 %v3181, %v3182
  %3185 = vrot.lane.b32.xlu0 %v3183, 96
  %v3186 = vpop.permute.xlu0 %3185
  %v3188 = vsel %vm390, %v3186, %v3077
  %v3190 = vsel %vm399, %v3188, 0
  %3192 = vmatprep.subr.mxu0 0.0
  %3193 = vmatpush1.msra.mxu0 0.0
  %3194 = vmatprep.subr.mxu0 0.0
  %3195 = vmatpush1.msra.mxu0 0.0
  %3196 = vmatprep.subr.mxu0 0.0
  %3197 = vmatpush1.msra.mxu0 0.0
  %3198 = vmatprep.subr.mxu0 0.0
  %3199 = vmatpush1.msra.mxu0 0.0
  %3200 = vmatprep.subr.mxu0 0.0
  %3201 = vmatpush1.msra.mxu0 0.0
  %3202 = vmatprep.subr.mxu0 0.0
  %3203 = vmatpush1.msra.mxu0 0.0
  %3204 = vmatprep.subr.mxu0 0.0
  %3205 = vmatpush1.msra.mxu0 0.0
  %3206 = vmatprep.subr.mxu0 0.0
  %3207 = vmatpush1.msra.mxu0 0.0
  %3208 = vmatprep.subr.mxu0 0.0
  %3209 = vmatpush1.msra.mxu0 %v21
  %3210 = vmatprep.subr.mxu0 0.0
  %3211 = vmatpush1.msra.mxu0 %v20
  %3212 = vmatprep.subr.mxu0 0.0
  %3213 = vmatpush1.msra.mxu0 %v19
  %3214 = vmatprep.subr.mxu0 0.0
  %3215 = vmatpush1.msra.mxu0 %v18
  %3216 = vmatprep.subr.mxu0 0.0
  %3217 = vmatpush1.msra.mxu0 %v17
  %3218 = vmatprep.subr.mxu0 0.0
  %3219 = vmatpush1.msra.mxu0 %v16
  %3220 = vmatprep.subr.mxu0 0.0
  %3221 = vmatpush1.msra.mxu0 %v15
  %3222 = vmatprep.subr.mxu0 0.0
  %3223 = vmatpush1.msra.mxu0 %v14
  %3224 = vmatprep.subr.mxu0 0.0
  %3225 = vmatpush2.msra.mxu0 0.0
  %3226 = vmatprep.subr.mxu0 0.0
  %3227 = vmatpush2.msra.mxu0 0.0
  %3228 = vmatprep.subr.mxu0 0.0
  %3229 = vmatpush2.msra.mxu0 0.0
  %3230 = vmatprep.subr.mxu0 0.0
  %3231 = vmatpush2.msra.mxu0 0.0
  %3232 = vmatprep.subr.mxu0 0.0
  %3233 = vmatpush2.msra.mxu0 0.0
  %3234 = vmatprep.subr.mxu0 0.0
  %3235 = vmatpush2.msra.mxu0 0.0
  %3236 = vmatprep.subr.mxu0 0.0
  %3237 = vmatpush2.msra.mxu0 0.0
  %3238 = vmatprep.subr.mxu0 0.0
  %3239 = vmatpush2.msra.mxu0 0.0
  %3240 = vmatprep.subr.mxu0 0.0
  %3241 = vmatpush2.msra.mxu0 0.0
  %3242 = vmatprep.subr.mxu0 0.0
  %3243 = vmatpush2.msra.mxu0 0.0
  %3244 = vmatprep.subr.mxu0 0.0
  %3245 = vmatpush2.msra.mxu0 0.0
  %3246 = vmatprep.subr.mxu0 0.0
  %3247 = vmatpush2.msra.mxu0 0.0
  %3248 = vmatprep.subr.mxu0 0.0
  %3249 = vmatpush2.msra.mxu0 0.0
  %3250 = vmatprep.subr.mxu0 0.0
  %3251 = vmatpush2.msra.mxu0 0.0
  %3252 = vmatprep.subr.mxu0 0.0
  %3253 = vmatpush2.msra.mxu0 0.0
  %3254 = vmatprep.subr.mxu0 0.0
  %3255 = vmatpush2.msra.mxu0 0.0
  %3256 = vmatprep.mubr.f32.mxu0 0.0
  %3257 = vmatmul.mubr.f32.gmra.mxu0 %v3190
  %v3258 = vpop.f32.mrf.mxu0
  %v3259 = vadd.f32 %v890, %v3258
  %v3260 = vpop.f32.mrf.mxu0
  %3261 = vdwg.mxu0
  %v3262 = vxor.u32 %v3259, 2147483648
  %v3263 = vmul.f32 %v3262, 1.442695
  %v3264 = vpow.pop %v3263
  %v3265 = vadd.f32 %v3264, 1.0
  %v3266 = vrcp.pop %v3265
  %v3267 = vmul.f32 1.0, %v3266
  %3269 = vrot.lane.b32.xlu0 %v3259, 32
  %v3270 = vpop.permute.xlu0 %3269
  %v3272 = vmul.f32 %v3267, %v3270
  %3274 = vrot.lane.b32.xlu0 %v3272, 64
  %v3275 = vpop.permute.xlu0 %3274
  %v3277 = vadd.f32 %v3259, %v3275
  %v3278 = vtanh.pop %v3277
  %v3279 = vsub.f32 1.0, %v3267
  %3281 = vrot.lane.b32.xlu0 %v3278, 96
  %v3282 = vpop.permute.xlu0 %3281
  %v3284 = vmul.f32 %v3279, %v3282
  %v3285 = vmul.f32 %v3267, %v3077
  %v3286 = vadd.f32 %v3284, %v3285
  %3288 = vrot.lane.b32.xlu0 %v3286, 96
  %v3289 = vpop.permute.xlu0 %3288
  %s3291 = scalar_lea.vmem [#allocation3], 44
  %3292 = vst.msk [vmem:[%s3291] sm:$0xf] %vm574, %v3289
  %v3293 = vsel %vm390, %v3186, 0
  %3295 = vmatprep.subr.mxu0 0.0
  %3296 = vmatpush1.msra.mxu0 0.0
  %3297 = vmatprep.subr.mxu0 0.0
  %3298 = vmatpush1.msra.mxu0 0.0
  %3299 = vmatprep.subr.mxu0 0.0
  %3300 = vmatpush1.msra.mxu0 0.0
  %3301 = vmatprep.subr.mxu0 0.0
  %3302 = vmatpush1.msra.mxu0 0.0
  %3303 = vmatprep.subr.mxu0 0.0
  %3304 = vmatpush1.msra.mxu0 0.0
  %3305 = vmatprep.subr.mxu0 0.0
  %3306 = vmatpush1.msra.mxu0 0.0
  %3307 = vmatprep.subr.mxu0 0.0
  %3308 = vmatpush1.msra.mxu0 0.0
  %3309 = vmatprep.subr.mxu0 0.0
  %3310 = vmatpush1.msra.mxu0 0.0
  %3311 = vmatprep.subr.mxu0 0.0
  %3312 = vmatpush1.msra.mxu0 0.0
  %3313 = vmatprep.subr.mxu0 0.0
  %3314 = vmatpush1.msra.mxu0 0.0
  %3315 = vmatprep.subr.mxu0 0.0
  %3316 = vmatpush1.msra.mxu0 0.0
  %3317 = vmatprep.subr.mxu0 0.0
  %3318 = vmatpush1.msra.mxu0 0.0
  %3319 = vmatprep.subr.mxu0 0.0
  %3320 = vmatpush1.msra.mxu0 %v25
  %3321 = vmatprep.subr.mxu0 0.0
  %3322 = vmatpush1.msra.mxu0 %v24
  %3323 = vmatprep.subr.mxu0 0.0
  %3324 = vmatpush1.msra.mxu0 %v23
  %3325 = vmatprep.subr.mxu0 0.0
  %3326 = vmatpush1.msra.mxu0 %v22
  %3327 = vmatprep.subr.mxu0 0.0
  %3328 = vmatpush2.msra.mxu0 0.0
  %3329 = vmatprep.subr.mxu0 0.0
  %3330 = vmatpush2.msra.mxu0 0.0
  %3331 = vmatprep.subr.mxu0 0.0
  %3332 = vmatpush2.msra.mxu0 0.0
  %3333 = vmatprep.subr.mxu0 0.0
  %3334 = vmatpush2.msra.mxu0 0.0
  %3335 = vmatprep.subr.mxu0 0.0
  %3336 = vmatpush2.msra.mxu0 0.0
  %3337 = vmatprep.subr.mxu0 0.0
  %3338 = vmatpush2.msra.mxu0 0.0
  %3339 = vmatprep.subr.mxu0 0.0
  %3340 = vmatpush2.msra.mxu0 0.0
  %3341 = vmatprep.subr.mxu0 0.0
  %3342 = vmatpush2.msra.mxu0 0.0
  %3343 = vmatprep.subr.mxu0 0.0
  %3344 = vmatpush2.msra.mxu0 0.0
  %3345 = vmatprep.subr.mxu0 0.0
  %3346 = vmatpush2.msra.mxu0 0.0
  %3347 = vmatprep.subr.mxu0 0.0
  %3348 = vmatpush2.msra.mxu0 0.0
  %3349 = vmatprep.subr.mxu0 0.0
  %3350 = vmatpush2.msra.mxu0 0.0
  %3351 = vmatprep.subr.mxu0 0.0
  %3352 = vmatpush2.msra.mxu0 0.0
  %3353 = vmatprep.subr.mxu0 0.0
  %3354 = vmatpush2.msra.mxu0 0.0
  %3355 = vmatprep.subr.mxu0 0.0
  %3356 = vmatpush2.msra.mxu0 0.0
  %3357 = vmatprep.subr.mxu0 0.0
  %3358 = vmatpush2.msra.mxu0 0.0
  %3359 = vmatprep.mubr.f32.mxu0 0.0
  %3360 = vmatmul.mubr.f32.gmra.mxu0 %v3293
  %v3361 = vpop.f32.mrf.mxu0
  %v3362 = vadd.f32 %v781, %v3361
  %v3363 = vpop.f32.mrf.mxu0
  %3364 = vdwg.mxu0
  %s3365 = scalar_lea.vmem [#allocation2], 48
  %v3366 = vld [vmem:[%s3365] sm:$0xf]
  %v3367 = vadd.f32 %v3366, %v3362
  %v3368 = vxor.u32 %v3367, 2147483648
  %v3369 = vmul.f32 %v3368, 1.442695
  %v3370 = vpow.pop %v3369
  %v3371 = vadd.f32 %v3370, 1.0
  %v3372 = vrcp.pop %v3371
  %v3373 = vmul.f32 1.0, %v3372
  %3375 = vrot.lane.b32.xlu0 %v3362, 64
  %v3376 = vpop.permute.xlu0 %3375
  %v3378 = vmul.f32 %v3373, %v3376
  %3380 = vrot.lane.b32.xlu0 %v3378, 64
  %v3381 = vpop.permute.xlu0 %3380
  %v3383 = vadd.f32 %v3366, %v3381
  %v3384 = vtanh.pop %v3383
  %v3385 = vsub.f32 1.0, %v3373
  %3387 = vrot.lane.b32.xlu0 %v3384, 96
  %v3388 = vpop.permute.xlu0 %3387
  %v3390 = vmul.f32 %v3385, %v3388
  %v3391 = vmul.f32 %v3373, %v3183
  %v3392 = vadd.f32 %v3390, %v3391
  %3394 = vrot.lane.b32.xlu0 %v3392, 96
  %v3395 = vpop.permute.xlu0 %3394
  %v3397 = vsel %vm390, %v3395, %v3286
  %v3399 = vsel %vm399, %v3397, 0
  %3401 = vmatprep.subr.mxu0 0.0
  %3402 = vmatpush1.msra.mxu0 0.0
  %3403 = vmatprep.subr.mxu0 0.0
  %3404 = vmatpush1.msra.mxu0 0.0
  %3405 = vmatprep.subr.mxu0 0.0
  %3406 = vmatpush1.msra.mxu0 0.0
  %3407 = vmatprep.subr.mxu0 0.0
  %3408 = vmatpush1.msra.mxu0 0.0
  %3409 = vmatprep.subr.mxu0 0.0
  %3410 = vmatpush1.msra.mxu0 0.0
  %3411 = vmatprep.subr.mxu0 0.0
  %3412 = vmatpush1.msra.mxu0 0.0
  %3413 = vmatprep.subr.mxu0 0.0
  %3414 = vmatpush1.msra.mxu0 0.0
  %3415 = vmatprep.subr.mxu0 0.0
  %3416 = vmatpush1.msra.mxu0 0.0
  %3417 = vmatprep.subr.mxu0 0.0
  %3418 = vmatpush1.msra.mxu0 %v21
  %3419 = vmatprep.subr.mxu0 0.0
  %3420 = vmatpush1.msra.mxu0 %v20
  %3421 = vmatprep.subr.mxu0 0.0
  %3422 = vmatpush1.msra.mxu0 %v19
  %3423 = vmatprep.subr.mxu0 0.0
  %3424 = vmatpush1.msra.mxu0 %v18
  %3425 = vmatprep.subr.mxu0 0.0
  %3426 = vmatpush1.msra.mxu0 %v17
  %3427 = vmatprep.subr.mxu0 0.0
  %3428 = vmatpush1.msra.mxu0 %v16
  %3429 = vmatprep.subr.mxu0 0.0
  %3430 = vmatpush1.msra.mxu0 %v15
  %3431 = vmatprep.subr.mxu0 0.0
  %3432 = vmatpush1.msra.mxu0 %v14
  %3433 = vmatprep.subr.mxu0 0.0
  %3434 = vmatpush2.msra.mxu0 0.0
  %3435 = vmatprep.subr.mxu0 0.0
  %3436 = vmatpush2.msra.mxu0 0.0
  %3437 = vmatprep.subr.mxu0 0.0
  %3438 = vmatpush2.msra.mxu0 0.0
  %3439 = vmatprep.subr.mxu0 0.0
  %3440 = vmatpush2.msra.mxu0 0.0
  %3441 = vmatprep.subr.mxu0 0.0
  %3442 = vmatpush2.msra.mxu0 0.0
  %3443 = vmatprep.subr.mxu0 0.0
  %3444 = vmatpush2.msra.mxu0 0.0
  %3445 = vmatprep.subr.mxu0 0.0
  %3446 = vmatpush2.msra.mxu0 0.0
  %3447 = vmatprep.subr.mxu0 0.0
  %3448 = vmatpush2.msra.mxu0 0.0
  %3449 = vmatprep.subr.mxu0 0.0
  %3450 = vmatpush2.msra.mxu0 0.0
  %3451 = vmatprep.subr.mxu0 0.0
  %3452 = vmatpush2.msra.mxu0 0.0
  %3453 = vmatprep.subr.mxu0 0.0
  %3454 = vmatpush2.msra.mxu0 0.0
  %3455 = vmatprep.subr.mxu0 0.0
  %3456 = vmatpush2.msra.mxu0 0.0
  %3457 = vmatprep.subr.mxu0 0.0
  %3458 = vmatpush2.msra.mxu0 0.0
  %3459 = vmatprep.subr.mxu0 0.0
  %3460 = vmatpush2.msra.mxu0 0.0
  %3461 = vmatprep.subr.mxu0 0.0
  %3462 = vmatpush2.msra.mxu0 0.0
  %3463 = vmatprep.subr.mxu0 0.0
  %3464 = vmatpush2.msra.mxu0 0.0
  %3465 = vmatprep.mubr.f32.mxu0 0.0
  %3466 = vmatmul.mubr.f32.gmra.mxu0 %v3399
  %v3467 = vpop.f32.mrf.mxu0
  %v3468 = vadd.f32 %v890, %v3467
  %v3469 = vpop.f32.mrf.mxu0
  %3470 = vdwg.mxu0
  %v3471 = vxor.u32 %v3468, 2147483648
  %v3472 = vmul.f32 %v3471, 1.442695
  %v3473 = vpow.pop %v3472
  %v3474 = vadd.f32 %v3473, 1.0
  %v3475 = vrcp.pop %v3474
  %v3476 = vmul.f32 1.0, %v3475
  %3478 = vrot.lane.b32.xlu0 %v3468, 32
  %v3479 = vpop.permute.xlu0 %3478
  %v3481 = vmul.f32 %v3476, %v3479
  %3483 = vrot.lane.b32.xlu0 %v3481, 64
  %v3484 = vpop.permute.xlu0 %3483
  %v3486 = vadd.f32 %v3468, %v3484
  %v3487 = vtanh.pop %v3486
  %v3488 = vsub.f32 1.0, %v3476
  %3490 = vrot.lane.b32.xlu0 %v3487, 96
  %v3491 = vpop.permute.xlu0 %3490
  %v3493 = vmul.f32 %v3488, %v3491
  %v3494 = vmul.f32 %v3476, %v3286
  %v3495 = vadd.f32 %v3493, %v3494
  %3497 = vrot.lane.b32.xlu0 %v3495, 96
  %v3498 = vpop.permute.xlu0 %3497
  %s3500 = scalar_lea.vmem [#allocation3], 48
  %3501 = vst.msk [vmem:[%s3500] sm:$0xf] %vm574, %v3498
  %v3502 = vsel %vm390, %v3395, 0
  %3504 = vmatprep.subr.mxu0 0.0
  %3505 = vmatpush1.msra.mxu0 0.0
  %3506 = vmatprep.subr.mxu0 0.0
  %3507 = vmatpush1.msra.mxu0 0.0
  %3508 = vmatprep.subr.mxu0 0.0
  %3509 = vmatpush1.msra.mxu0 0.0
  %3510 = vmatprep.subr.mxu0 0.0
  %3511 = vmatpush1.msra.mxu0 0.0
  %3512 = vmatprep.subr.mxu0 0.0
  %3513 = vmatpush1.msra.mxu0 0.0
  %3514 = vmatprep.subr.mxu0 0.0
  %3515 = vmatpush1.msra.mxu0 0.0
  %3516 = vmatprep.subr.mxu0 0.0
  %3517 = vmatpush1.msra.mxu0 0.0
  %3518 = vmatprep.subr.mxu0 0.0
  %3519 = vmatpush1.msra.mxu0 0.0
  %3520 = vmatprep.subr.mxu0 0.0
  %3521 = vmatpush1.msra.mxu0 0.0
  %3522 = vmatprep.subr.mxu0 0.0
  %3523 = vmatpush1.msra.mxu0 0.0
  %3524 = vmatprep.subr.mxu0 0.0
  %3525 = vmatpush1.msra.mxu0 0.0
  %3526 = vmatprep.subr.mxu0 0.0
  %3527 = vmatpush1.msra.mxu0 0.0
  %3528 = vmatprep.subr.mxu0 0.0
  %3529 = vmatpush1.msra.mxu0 %v25
  %3530 = vmatprep.subr.mxu0 0.0
  %3531 = vmatpush1.msra.mxu0 %v24
  %3532 = vmatprep.subr.mxu0 0.0
  %3533 = vmatpush1.msra.mxu0 %v23
  %3534 = vmatprep.subr.mxu0 0.0
  %3535 = vmatpush1.msra.mxu0 %v22
  %3536 = vmatprep.subr.mxu0 0.0
  %3537 = vmatpush2.msra.mxu0 0.0
  %3538 = vmatprep.subr.mxu0 0.0
  %3539 = vmatpush2.msra.mxu0 0.0
  %3540 = vmatprep.subr.mxu0 0.0
  %3541 = vmatpush2.msra.mxu0 0.0
  %3542 = vmatprep.subr.mxu0 0.0
  %3543 = vmatpush2.msra.mxu0 0.0
  %3544 = vmatprep.subr.mxu0 0.0
  %3545 = vmatpush2.msra.mxu0 0.0
  %3546 = vmatprep.subr.mxu0 0.0
  %3547 = vmatpush2.msra.mxu0 0.0
  %3548 = vmatprep.subr.mxu0 0.0
  %3549 = vmatpush2.msra.mxu0 0.0
  %3550 = vmatprep.subr.mxu0 0.0
  %3551 = vmatpush2.msra.mxu0 0.0
  %3552 = vmatprep.subr.mxu0 0.0
  %3553 = vmatpush2.msra.mxu0 0.0
  %3554 = vmatprep.subr.mxu0 0.0
  %3555 = vmatpush2.msra.mxu0 0.0
  %3556 = vmatprep.subr.mxu0 0.0
  %3557 = vmatpush2.msra.mxu0 0.0
  %3558 = vmatprep.subr.mxu0 0.0
  %3559 = vmatpush2.msra.mxu0 0.0
  %3560 = vmatprep.subr.mxu0 0.0
  %3561 = vmatpush2.msra.mxu0 0.0
  %3562 = vmatprep.subr.mxu0 0.0
  %3563 = vmatpush2.msra.mxu0 0.0
  %3564 = vmatprep.subr.mxu0 0.0
  %3565 = vmatpush2.msra.mxu0 0.0
  %3566 = vmatprep.subr.mxu0 0.0
  %3567 = vmatpush2.msra.mxu0 0.0
  %3568 = vmatprep.mubr.f32.mxu0 0.0
  %3569 = vmatmul.mubr.f32.gmra.mxu0 %v3502
  %v3570 = vpop.f32.mrf.mxu0
  %v3571 = vadd.f32 %v781, %v3570
  %v3572 = vpop.f32.mrf.mxu0
  %3573 = vdwg.mxu0
  %s3574 = scalar_lea.vmem [#allocation2], 52
  %v3575 = vld [vmem:[%s3574] sm:$0xf]
  %v3576 = vadd.f32 %v3575, %v3571
  %v3577 = vxor.u32 %v3576, 2147483648
  %v3578 = vmul.f32 %v3577, 1.442695
  %v3579 = vpow.pop %v3578
  %v3580 = vadd.f32 %v3579, 1.0
  %v3581 = vrcp.pop %v3580
  %v3582 = vmul.f32 1.0, %v3581
  %3584 = vrot.lane.b32.xlu0 %v3571, 64
  %v3585 = vpop.permute.xlu0 %3584
  %v3587 = vmul.f32 %v3582, %v3585
  %3589 = vrot.lane.b32.xlu0 %v3587, 64
  %v3590 = vpop.permute.xlu0 %3589
  %v3592 = vadd.f32 %v3575, %v3590
  %v3593 = vtanh.pop %v3592
  %v3594 = vsub.f32 1.0, %v3582
  %3596 = vrot.lane.b32.xlu0 %v3593, 96
  %v3597 = vpop.permute.xlu0 %3596
  %v3599 = vmul.f32 %v3594, %v3597
  %v3600 = vmul.f32 %v3582, %v3392
  %v3601 = vadd.f32 %v3599, %v3600
  %3603 = vrot.lane.b32.xlu0 %v3601, 96
  %v3604 = vpop.permute.xlu0 %3603
  %v3606 = vsel %vm390, %v3604, %v3495
  %v3608 = vsel %vm399, %v3606, 0
  %3610 = vmatprep.subr.mxu0 0.0
  %3611 = vmatpush1.msra.mxu0 0.0
  %3612 = vmatprep.subr.mxu0 0.0
  %3613 = vmatpush1.msra.mxu0 0.0
  %3614 = vmatprep.subr.mxu0 0.0
  %3615 = vmatpush1.msra.mxu0 0.0
  %3616 = vmatprep.subr.mxu0 0.0
  %3617 = vmatpush1.msra.mxu0 0.0
  %3618 = vmatprep.subr.mxu0 0.0
  %3619 = vmatpush1.msra.mxu0 0.0
  %3620 = vmatprep.subr.mxu0 0.0
  %3621 = vmatpush1.msra.mxu0 0.0
  %3622 = vmatprep.subr.mxu0 0.0
  %3623 = vmatpush1.msra.mxu0 0.0
  %3624 = vmatprep.subr.mxu0 0.0
  %3625 = vmatpush1.msra.mxu0 0.0
  %3626 = vmatprep.subr.mxu0 0.0
  %3627 = vmatpush1.msra.mxu0 %v21
  %3628 = vmatprep.subr.mxu0 0.0
  %3629 = vmatpush1.msra.mxu0 %v20
  %3630 = vmatprep.subr.mxu0 0.0
  %3631 = vmatpush1.msra.mxu0 %v19
  %3632 = vmatprep.subr.mxu0 0.0
  %3633 = vmatpush1.msra.mxu0 %v18
  %3634 = vmatprep.subr.mxu0 0.0
  %3635 = vmatpush1.msra.mxu0 %v17
  %3636 = vmatprep.subr.mxu0 0.0
  %3637 = vmatpush1.msra.mxu0 %v16
  %3638 = vmatprep.subr.mxu0 0.0
  %3639 = vmatpush1.msra.mxu0 %v15
  %3640 = vmatprep.subr.mxu0 0.0
  %3641 = vmatpush1.msra.mxu0 %v14
  %3642 = vmatprep.subr.mxu0 0.0
  %3643 = vmatpush2.msra.mxu0 0.0
  %3644 = vmatprep.subr.mxu0 0.0
  %3645 = vmatpush2.msra.mxu0 0.0
  %3646 = vmatprep.subr.mxu0 0.0
  %3647 = vmatpush2.msra.mxu0 0.0
  %3648 = vmatprep.subr.mxu0 0.0
  %3649 = vmatpush2.msra.mxu0 0.0
  %3650 = vmatprep.subr.mxu0 0.0
  %3651 = vmatpush2.msra.mxu0 0.0
  %3652 = vmatprep.subr.mxu0 0.0
  %3653 = vmatpush2.msra.mxu0 0.0
  %3654 = vmatprep.subr.mxu0 0.0
  %3655 = vmatpush2.msra.mxu0 0.0
  %3656 = vmatprep.subr.mxu0 0.0
  %3657 = vmatpush2.msra.mxu0 0.0
  %3658 = vmatprep.subr.mxu0 0.0
  %3659 = vmatpush2.msra.mxu0 0.0
  %3660 = vmatprep.subr.mxu0 0.0
  %3661 = vmatpush2.msra.mxu0 0.0
  %3662 = vmatprep.subr.mxu0 0.0
  %3663 = vmatpush2.msra.mxu0 0.0
  %3664 = vmatprep.subr.mxu0 0.0
  %3665 = vmatpush2.msra.mxu0 0.0
  %3666 = vmatprep.subr.mxu0 0.0
  %3667 = vmatpush2.msra.mxu0 0.0
  %3668 = vmatprep.subr.mxu0 0.0
  %3669 = vmatpush2.msra.mxu0 0.0
  %3670 = vmatprep.subr.mxu0 0.0
  %3671 = vmatpush2.msra.mxu0 0.0
  %3672 = vmatprep.subr.mxu0 0.0
  %3673 = vmatpush2.msra.mxu0 0.0
  %3674 = vmatprep.mubr.f32.mxu0 0.0
  %3675 = vmatmul.mubr.f32.gmra.mxu0 %v3608
  %v3676 = vpop.f32.mrf.mxu0
  %v3677 = vadd.f32 %v890, %v3676
  %v3678 = vpop.f32.mrf.mxu0
  %3679 = vdwg.mxu0
  %v3680 = vxor.u32 %v3677, 2147483648
  %v3681 = vmul.f32 %v3680, 1.442695
  %v3682 = vpow.pop %v3681
  %v3683 = vadd.f32 %v3682, 1.0
  %v3684 = vrcp.pop %v3683
  %v3685 = vmul.f32 1.0, %v3684
  %3687 = vrot.lane.b32.xlu0 %v3677, 32
  %v3688 = vpop.permute.xlu0 %3687
  %v3690 = vmul.f32 %v3685, %v3688
  %3692 = vrot.lane.b32.xlu0 %v3690, 64
  %v3693 = vpop.permute.xlu0 %3692
  %v3695 = vadd.f32 %v3677, %v3693
  %v3696 = vtanh.pop %v3695
  %v3697 = vsub.f32 1.0, %v3685
  %3699 = vrot.lane.b32.xlu0 %v3696, 96
  %v3700 = vpop.permute.xlu0 %3699
  %v3702 = vmul.f32 %v3697, %v3700
  %v3703 = vmul.f32 %v3685, %v3495
  %v3704 = vadd.f32 %v3702, %v3703
  %3706 = vrot.lane.b32.xlu0 %v3704, 96
  %v3707 = vpop.permute.xlu0 %3706
  %s3709 = scalar_lea.vmem [#allocation3], 52
  %3710 = vst.msk [vmem:[%s3709] sm:$0xf] %vm574, %v3707
  %v3711 = vsel %vm390, %v3604, 0
  %3713 = vmatprep.subr.mxu0 0.0
  %3714 = vmatpush1.msra.mxu0 0.0
  %3715 = vmatprep.subr.mxu0 0.0
  %3716 = vmatpush1.msra.mxu0 0.0
  %3717 = vmatprep.subr.mxu0 0.0
  %3718 = vmatpush1.msra.mxu0 0.0
  %3719 = vmatprep.subr.mxu0 0.0
  %3720 = vmatpush1.msra.mxu0 0.0
  %3721 = vmatprep.subr.mxu0 0.0
  %3722 = vmatpush1.msra.mxu0 0.0
  %3723 = vmatprep.subr.mxu0 0.0
  %3724 = vmatpush1.msra.mxu0 0.0
  %3725 = vmatprep.subr.mxu0 0.0
  %3726 = vmatpush1.msra.mxu0 0.0
  %3727 = vmatprep.subr.mxu0 0.0
  %3728 = vmatpush1.msra.mxu0 0.0
  %3729 = vmatprep.subr.mxu0 0.0
  %3730 = vmatpush1.msra.mxu0 0.0
  %3731 = vmatprep.subr.mxu0 0.0
  %3732 = vmatpush1.msra.mxu0 0.0
  %3733 = vmatprep.subr.mxu0 0.0
  %3734 = vmatpush1.msra.mxu0 0.0
  %3735 = vmatprep.subr.mxu0 0.0
  %3736 = vmatpush1.msra.mxu0 0.0
  %3737 = vmatprep.subr.mxu0 0.0
  %3738 = vmatpush1.msra.mxu0 %v25
  %3739 = vmatprep.subr.mxu0 0.0
  %3740 = vmatpush1.msra.mxu0 %v24
  %3741 = vmatprep.subr.mxu0 0.0
  %3742 = vmatpush1.msra.mxu0 %v23
  %3743 = vmatprep.subr.mxu0 0.0
  %3744 = vmatpush1.msra.mxu0 %v22
  %3745 = vmatprep.subr.mxu0 0.0
  %3746 = vmatpush2.msra.mxu0 0.0
  %3747 = vmatprep.subr.mxu0 0.0
  %3748 = vmatpush2.msra.mxu0 0.0
  %3749 = vmatprep.subr.mxu0 0.0
  %3750 = vmatpush2.msra.mxu0 0.0
  %3751 = vmatprep.subr.mxu0 0.0
  %3752 = vmatpush2.msra.mxu0 0.0
  %3753 = vmatprep.subr.mxu0 0.0
  %3754 = vmatpush2.msra.mxu0 0.0
  %3755 = vmatprep.subr.mxu0 0.0
  %3756 = vmatpush2.msra.mxu0 0.0
  %3757 = vmatprep.subr.mxu0 0.0
  %3758 = vmatpush2.msra.mxu0 0.0
  %3759 = vmatprep.subr.mxu0 0.0
  %3760 = vmatpush2.msra.mxu0 0.0
  %3761 = vmatprep.subr.mxu0 0.0
  %3762 = vmatpush2.msra.mxu0 0.0
  %3763 = vmatprep.subr.mxu0 0.0
  %3764 = vmatpush2.msra.mxu0 0.0
  %3765 = vmatprep.subr.mxu0 0.0
  %3766 = vmatpush2.msra.mxu0 0.0
  %3767 = vmatprep.subr.mxu0 0.0
  %3768 = vmatpush2.msra.mxu0 0.0
  %3769 = vmatprep.subr.mxu0 0.0
  %3770 = vmatpush2.msra.mxu0 0.0
  %3771 = vmatprep.subr.mxu0 0.0
  %3772 = vmatpush2.msra.mxu0 0.0
  %3773 = vmatprep.subr.mxu0 0.0
  %3774 = vmatpush2.msra.mxu0 0.0
  %3775 = vmatprep.subr.mxu0 0.0
  %3776 = vmatpush2.msra.mxu0 0.0
  %3777 = vmatprep.mubr.f32.mxu0 0.0
  %3778 = vmatmul.mubr.f32.gmra.mxu0 %v3711
  %v3779 = vpop.f32.mrf.mxu0
  %v3780 = vadd.f32 %v781, %v3779
  %v3781 = vpop.f32.mrf.mxu0
  %3782 = vdwg.mxu0
  %s3783 = scalar_lea.vmem [#allocation2], 56
  %v3784 = vld [vmem:[%s3783] sm:$0xf]
  %v3785 = vadd.f32 %v3784, %v3780
  %v3786 = vxor.u32 %v3785, 2147483648
  %v3787 = vmul.f32 %v3786, 1.442695
  %v3788 = vpow.pop %v3787
  %v3789 = vadd.f32 %v3788, 1.0
  %v3790 = vrcp.pop %v3789
  %v3791 = vmul.f32 1.0, %v3790
  %3793 = vrot.lane.b32.xlu0 %v3780, 64
  %v3794 = vpop.permute.xlu0 %3793
  %v3796 = vmul.f32 %v3791, %v3794
  %3798 = vrot.lane.b32.xlu0 %v3796, 64
  %v3799 = vpop.permute.xlu0 %3798
  %v3801 = vadd.f32 %v3784, %v3799
  %v3802 = vtanh.pop %v3801
  %v3803 = vsub.f32 1.0, %v3791
  %3805 = vrot.lane.b32.xlu0 %v3802, 96
  %v3806 = vpop.permute.xlu0 %3805
  %v3808 = vmul.f32 %v3803, %v3806
  %v3809 = vmul.f32 %v3791, %v3601
  %v3810 = vadd.f32 %v3808, %v3809
  %3812 = vrot.lane.b32.xlu0 %v3810, 96
  %v3813 = vpop.permute.xlu0 %3812
  %v3815 = vsel %vm390, %v3813, %v3704
  %v3817 = vsel %vm399, %v3815, 0
  %3819 = vmatprep.subr.mxu0 0.0
  %3820 = vmatpush1.msra.mxu0 0.0
  %3821 = vmatprep.subr.mxu0 0.0
  %3822 = vmatpush1.msra.mxu0 0.0
  %3823 = vmatprep.subr.mxu0 0.0
  %3824 = vmatpush1.msra.mxu0 0.0
  %3825 = vmatprep.subr.mxu0 0.0
  %3826 = vmatpush1.msra.mxu0 0.0
  %3827 = vmatprep.subr.mxu0 0.0
  %3828 = vmatpush1.msra.mxu0 0.0
  %3829 = vmatprep.subr.mxu0 0.0
  %3830 = vmatpush1.msra.mxu0 0.0
  %3831 = vmatprep.subr.mxu0 0.0
  %3832 = vmatpush1.msra.mxu0 0.0
  %3833 = vmatprep.subr.mxu0 0.0
  %3834 = vmatpush1.msra.mxu0 0.0
  %3835 = vmatprep.subr.mxu0 0.0
  %3836 = vmatpush1.msra.mxu0 %v21
  %3837 = vmatprep.subr.mxu0 0.0
  %3838 = vmatpush1.msra.mxu0 %v20
  %3839 = vmatprep.subr.mxu0 0.0
  %3840 = vmatpush1.msra.mxu0 %v19
  %3841 = vmatprep.subr.mxu0 0.0
  %3842 = vmatpush1.msra.mxu0 %v18
  %3843 = vmatprep.subr.mxu0 0.0
  %3844 = vmatpush1.msra.mxu0 %v17
  %3845 = vmatprep.subr.mxu0 0.0
  %3846 = vmatpush1.msra.mxu0 %v16
  %3847 = vmatprep.subr.mxu0 0.0
  %3848 = vmatpush1.msra.mxu0 %v15
  %3849 = vmatprep.subr.mxu0 0.0
  %3850 = vmatpush1.msra.mxu0 %v14
  %3851 = vmatprep.subr.mxu0 0.0
  %3852 = vmatpush2.msra.mxu0 0.0
  %3853 = vmatprep.subr.mxu0 0.0
  %3854 = vmatpush2.msra.mxu0 0.0
  %3855 = vmatprep.subr.mxu0 0.0
  %3856 = vmatpush2.msra.mxu0 0.0
  %3857 = vmatprep.subr.mxu0 0.0
  %3858 = vmatpush2.msra.mxu0 0.0
  %3859 = vmatprep.subr.mxu0 0.0
  %3860 = vmatpush2.msra.mxu0 0.0
  %3861 = vmatprep.subr.mxu0 0.0
  %3862 = vmatpush2.msra.mxu0 0.0
  %3863 = vmatprep.subr.mxu0 0.0
  %3864 = vmatpush2.msra.mxu0 0.0
  %3865 = vmatprep.subr.mxu0 0.0
  %3866 = vmatpush2.msra.mxu0 0.0
  %3867 = vmatprep.subr.mxu0 0.0
  %3868 = vmatpush2.msra.mxu0 0.0
  %3869 = vmatprep.subr.mxu0 0.0
  %3870 = vmatpush2.msra.mxu0 0.0
  %3871 = vmatprep.subr.mxu0 0.0
  %3872 = vmatpush2.msra.mxu0 0.0
  %3873 = vmatprep.subr.mxu0 0.0
  %3874 = vmatpush2.msra.mxu0 0.0
  %3875 = vmatprep.subr.mxu0 0.0
  %3876 = vmatpush2.msra.mxu0 0.0
  %3877 = vmatprep.subr.mxu0 0.0
  %3878 = vmatpush2.msra.mxu0 0.0
  %3879 = vmatprep.subr.mxu0 0.0
  %3880 = vmatpush2.msra.mxu0 0.0
  %3881 = vmatprep.subr.mxu0 0.0
  %3882 = vmatpush2.msra.mxu0 0.0
  %3883 = vmatprep.mubr.f32.mxu0 0.0
  %3884 = vmatmul.mubr.f32.gmra.mxu0 %v3817
  %v3885 = vpop.f32.mrf.mxu0
  %v3886 = vadd.f32 %v890, %v3885
  %v3887 = vpop.f32.mrf.mxu0
  %3888 = vdwg.mxu0
  %v3889 = vxor.u32 %v3886, 2147483648
  %v3890 = vmul.f32 %v3889, 1.442695
  %v3891 = vpow.pop %v3890
  %v3892 = vadd.f32 %v3891, 1.0
  %v3893 = vrcp.pop %v3892
  %v3894 = vmul.f32 1.0, %v3893
  %3896 = vrot.lane.b32.xlu0 %v3886, 32
  %v3897 = vpop.permute.xlu0 %3896
  %v3899 = vmul.f32 %v3894, %v3897
  %3901 = vrot.lane.b32.xlu0 %v3899, 64
  %v3902 = vpop.permute.xlu0 %3901
  %v3904 = vadd.f32 %v3886, %v3902
  %v3905 = vtanh.pop %v3904
  %v3906 = vsub.f32 1.0, %v3894
  %3908 = vrot.lane.b32.xlu0 %v3905, 96
  %v3909 = vpop.permute.xlu0 %3908
  %v3911 = vmul.f32 %v3906, %v3909
  %v3912 = vmul.f32 %v3894, %v3704
  %v3913 = vadd.f32 %v3911, %v3912
  %3915 = vrot.lane.b32.xlu0 %v3913, 96
  %v3916 = vpop.permute.xlu0 %3915
  %s3918 = scalar_lea.vmem [#allocation3], 56
  %3919 = vst.msk [vmem:[%s3918] sm:$0xf] %vm574, %v3916
  %v3920 = vsel %vm390, %v3813, 0
  %3922 = vmatprep.subr.mxu0 0.0
  %3923 = vmatpush1.msra.mxu0 0.0
  %3924 = vmatprep.subr.mxu0 0.0
  %3925 = vmatpush1.msra.mxu0 0.0
  %3926 = vmatprep.subr.mxu0 0.0
  %3927 = vmatpush1.msra.mxu0 0.0
  %3928 = vmatprep.subr.mxu0 0.0
  %3929 = vmatpush1.msra.mxu0 0.0
  %3930 = vmatprep.subr.mxu0 0.0
  %3931 = vmatpush1.msra.mxu0 0.0
  %3932 = vmatprep.subr.mxu0 0.0
  %3933 = vmatpush1.msra.mxu0 0.0
  %3934 = vmatprep.subr.mxu0 0.0
  %3935 = vmatpush1.msra.mxu0 0.0
  %3936 = vmatprep.subr.mxu0 0.0
  %3937 = vmatpush1.msra.mxu0 0.0
  %3938 = vmatprep.subr.mxu0 0.0
  %3939 = vmatpush1.msra.mxu0 0.0
  %3940 = vmatprep.subr.mxu0 0.0
  %3941 = vmatpush1.msra.mxu0 0.0
  %3942 = vmatprep.subr.mxu0 0.0
  %3943 = vmatpush1.msra.mxu0 0.0
  %3944 = vmatprep.subr.mxu0 0.0
  %3945 = vmatpush1.msra.mxu0 0.0
  %3946 = vmatprep.subr.mxu0 0.0
  %3947 = vmatpush1.msra.mxu0 %v25
  %3948 = vmatprep.subr.mxu0 0.0
  %3949 = vmatpush1.msra.mxu0 %v24
  %3950 = vmatprep.subr.mxu0 0.0
  %3951 = vmatpush1.msra.mxu0 %v23
  %3952 = vmatprep.subr.mxu0 0.0
  %3953 = vmatpush1.msra.mxu0 %v22
  %3954 = vmatprep.subr.mxu0 0.0
  %3955 = vmatpush2.msra.mxu0 0.0
  %3956 = vmatprep.subr.mxu0 0.0
  %3957 = vmatpush2.msra.mxu0 0.0
  %3958 = vmatprep.subr.mxu0 0.0
  %3959 = vmatpush2.msra.mxu0 0.0
  %3960 = vmatprep.subr.mxu0 0.0
  %3961 = vmatpush2.msra.mxu0 0.0
  %3962 = vmatprep.subr.mxu0 0.0
  %3963 = vmatpush2.msra.mxu0 0.0
  %3964 = vmatprep.subr.mxu0 0.0
  %3965 = vmatpush2.msra.mxu0 0.0
  %3966 = vmatprep.subr.mxu0 0.0
  %3967 = vmatpush2.msra.mxu0 0.0
  %3968 = vmatprep.subr.mxu0 0.0
  %3969 = vmatpush2.msra.mxu0 0.0
  %3970 = vmatprep.subr.mxu0 0.0
  %3971 = vmatpush2.msra.mxu0 0.0
  %3972 = vmatprep.subr.mxu0 0.0
  %3973 = vmatpush2.msra.mxu0 0.0
  %3974 = vmatprep.subr.mxu0 0.0
  %3975 = vmatpush2.msra.mxu0 0.0
  %3976 = vmatprep.subr.mxu0 0.0
  %3977 = vmatpush2.msra.mxu0 0.0
  %3978 = vmatprep.subr.mxu0 0.0
  %3979 = vmatpush2.msra.mxu0 0.0
  %3980 = vmatprep.subr.mxu0 0.0
  %3981 = vmatpush2.msra.mxu0 0.0
  %3982 = vmatprep.subr.mxu0 0.0
  %3983 = vmatpush2.msra.mxu0 0.0
  %3984 = vmatprep.subr.mxu0 0.0
  %3985 = vmatpush2.msra.mxu0 0.0
  %3986 = vmatprep.mubr.f32.mxu0 0.0
  %3987 = vmatmul.mubr.f32.gmra.mxu0 %v3920
  %v3988 = vpop.f32.mrf.mxu0
  %v3989 = vadd.f32 %v781, %v3988
  %v3990 = vpop.f32.mrf.mxu0
  %3991 = vdwg.mxu0
  %s3992 = scalar_lea.vmem [#allocation2], 60
  %v3993 = vld [vmem:[%s3992] sm:$0xf]
  %v3994 = vadd.f32 %v3993, %v3989
  %v3995 = vxor.u32 %v3994, 2147483648
  %v3996 = vmul.f32 %v3995, 1.442695
  %v3997 = vpow.pop %v3996
  %v3998 = vadd.f32 %v3997, 1.0
  %v3999 = vrcp.pop %v3998
  %v4000 = vmul.f32 1.0, %v3999
  %4002 = vrot.lane.b32.xlu0 %v3989, 64
  %v4003 = vpop.permute.xlu0 %4002
  %v4005 = vmul.f32 %v4000, %v4003
  %4007 = vrot.lane.b32.xlu0 %v4005, 64
  %v4008 = vpop.permute.xlu0 %4007
  %v4010 = vadd.f32 %v3993, %v4008
  %v4011 = vtanh.pop %v4010
  %v4012 = vsub.f32 1.0, %v4000
  %4014 = vrot.lane.b32.xlu0 %v4011, 96
  %v4015 = vpop.permute.xlu0 %4014
  %v4017 = vmul.f32 %v4012, %v4015
  %v4018 = vmul.f32 %v4000, %v3810
  %v4019 = vadd.f32 %v4017, %v4018
  %4021 = vrot.lane.b32.xlu0 %v4019, 96
  %v4022 = vpop.permute.xlu0 %4021
  %v4024 = vsel %vm390, %v4022, %v3913
  %v4026 = vsel %vm399, %v4024, 0
  %4028 = vmatprep.subr.mxu0 0.0
  %4029 = vmatpush1.msra.mxu0 0.0
  %4030 = vmatprep.subr.mxu0 0.0
  %4031 = vmatpush1.msra.mxu0 0.0
  %4032 = vmatprep.subr.mxu0 0.0
  %4033 = vmatpush1.msra.mxu0 0.0
  %4034 = vmatprep.subr.mxu0 0.0
  %4035 = vmatpush1.msra.mxu0 0.0
  %4036 = vmatprep.subr.mxu0 0.0
  %4037 = vmatpush1.msra.mxu0 0.0
  %4038 = vmatprep.subr.mxu0 0.0
  %4039 = vmatpush1.msra.mxu0 0.0
  %4040 = vmatprep.subr.mxu0 0.0
  %4041 = vmatpush1.msra.mxu0 0.0
  %4042 = vmatprep.subr.mxu0 0.0
  %4043 = vmatpush1.msra.mxu0 0.0
  %4044 = vmatprep.subr.mxu0 0.0
  %4045 = vmatpush1.msra.mxu0 %v21
  %4046 = vmatprep.subr.mxu0 0.0
  %4047 = vmatpush1.msra.mxu0 %v20
  %4048 = vmatprep.subr.mxu0 0.0
  %4049 = vmatpush1.msra.mxu0 %v19
  %4050 = vmatprep.subr.mxu0 0.0
  %4051 = vmatpush1.msra.mxu0 %v18
  %4052 = vmatprep.subr.mxu0 0.0
  %4053 = vmatpush1.msra.mxu0 %v17
  %4054 = vmatprep.subr.mxu0 0.0
  %4055 = vmatpush1.msra.mxu0 %v16
  %4056 = vmatprep.subr.mxu0 0.0
  %4057 = vmatpush1.msra.mxu0 %v15
  %4058 = vmatprep.subr.mxu0 0.0
  %4059 = vmatpush1.msra.mxu0 %v14
  %4060 = vmatprep.subr.mxu0 0.0
  %4061 = vmatpush2.msra.mxu0 0.0
  %4062 = vmatprep.subr.mxu0 0.0
  %4063 = vmatpush2.msra.mxu0 0.0
  %4064 = vmatprep.subr.mxu0 0.0
  %4065 = vmatpush2.msra.mxu0 0.0
  %4066 = vmatprep.subr.mxu0 0.0
  %4067 = vmatpush2.msra.mxu0 0.0
  %4068 = vmatprep.subr.mxu0 0.0
  %4069 = vmatpush2.msra.mxu0 0.0
  %4070 = vmatprep.subr.mxu0 0.0
  %4071 = vmatpush2.msra.mxu0 0.0
  %4072 = vmatprep.subr.mxu0 0.0
  %4073 = vmatpush2.msra.mxu0 0.0
  %4074 = vmatprep.subr.mxu0 0.0
  %4075 = vmatpush2.msra.mxu0 0.0
  %4076 = vmatprep.subr.mxu0 0.0
  %4077 = vmatpush2.msra.mxu0 0.0
  %4078 = vmatprep.subr.mxu0 0.0
  %4079 = vmatpush2.msra.mxu0 0.0
  %4080 = vmatprep.subr.mxu0 0.0
  %4081 = vmatpush2.msra.mxu0 0.0
  %4082 = vmatprep.subr.mxu0 0.0
  %4083 = vmatpush2.msra.mxu0 0.0
  %4084 = vmatprep.subr.mxu0 0.0
  %4085 = vmatpush2.msra.mxu0 0.0
  %4086 = vmatprep.subr.mxu0 0.0
  %4087 = vmatpush2.msra.mxu0 0.0
  %4088 = vmatprep.subr.mxu0 0.0
  %4089 = vmatpush2.msra.mxu0 0.0
  %4090 = vmatprep.subr.mxu0 0.0
  %4091 = vmatpush2.msra.mxu0 0.0
  %4092 = vmatprep.mubr.f32.mxu0 0.0
  %4093 = vmatmul.mubr.f32.gmra.mxu0 %v4026
  %v4094 = vpop.f32.mrf.mxu0
  %v4095 = vadd.f32 %v890, %v4094
  %v4096 = vpop.f32.mrf.mxu0
  %4097 = vdwg.mxu0
  %v4098 = vxor.u32 %v4095, 2147483648
  %v4099 = vmul.f32 %v4098, 1.442695
  %v4100 = vpow.pop %v4099
  %v4101 = vadd.f32 %v4100, 1.0
  %v4102 = vrcp.pop %v4101
  %v4103 = vmul.f32 1.0, %v4102
  %4105 = vrot.lane.b32.xlu0 %v4095, 32
  %v4106 = vpop.permute.xlu0 %4105
  %v4108 = vmul.f32 %v4103, %v4106
  %4110 = vrot.lane.b32.xlu0 %v4108, 64
  %v4111 = vpop.permute.xlu0 %4110
  %v4113 = vadd.f32 %v4095, %v4111
  %v4114 = vtanh.pop %v4113
  %v4115 = vsub.f32 1.0, %v4103
  %4117 = vrot.lane.b32.xlu0 %v4114, 96
  %v4118 = vpop.permute.xlu0 %4117
  %v4120 = vmul.f32 %v4115, %v4118
  %v4121 = vmul.f32 %v4103, %v3913
  %v4122 = vadd.f32 %v4120, %v4121
  %4124 = vrot.lane.b32.xlu0 %v4122, 96
  %v4125 = vpop.permute.xlu0 %4124
  %s4127 = scalar_lea.vmem [#allocation3], 60
  %4128 = vst.msk [vmem:[%s4127] sm:$0xf] %vm574, %v4125
  %v4129 = vld [vmem:[#allocation3] sm:$0xf]
  %v4130 = vld [vmem:[#allocation3 + $0x4] sm:$0xf]
  %v4131 = vld [vmem:[#allocation3 + $0x8] sm:$0xf]
  %v4132 = vld [vmem:[#allocation3 + $0xc] sm:$0xf]
  %v4133 = vld [vmem:[#allocation3 + $0x10] sm:$0xf]
  %v4134 = vld [vmem:[#allocation3 + $0x14] sm:$0xf]
  %v4135 = vld [vmem:[#allocation3 + $0x18] sm:$0xf]
  %v4136 = vld [vmem:[#allocation3 + $0x1c] sm:$0xf]
  %v4137 = vld [vmem:[#allocation3 + $0x20] sm:$0xf]
  %v4138 = vld [vmem:[#allocation3 + $0x24] sm:$0xf]
  %v4139 = vld [vmem:[#allocation3 + $0x28] sm:$0xf]
  %v4140 = vld [vmem:[#allocation3 + $0x2c] sm:$0xf]
  %v4141 = vld [vmem:[#allocation3 + $0x30] sm:$0xf]
  %v4142 = vld [vmem:[#allocation3 + $0x34] sm:$0xf]
  %v4143 = vld [vmem:[#allocation3 + $0x38] sm:$0xf]
  %v4144 = vld [vmem:[#allocation3 + $0x3c] sm:$0xf]
  %v4161 = vcombine.low %v4129, %v4130
  %v4162 = vcombine.low %v4131, %v4132
  %v4163 = vcombine.low %v4133, %v4134
  %v4164 = vcombine.low %v4135, %v4136
  %v4165 = vcombine.low %v4137, %v4138
  %v4166 = vcombine.low %v4139, %v4140
  %v4167 = vcombine.low %v4141, %v4142
  %v4168 = vcombine.low %v4143, %v4144
  %v4169 = vsel %vm390, %v4161, 0
  %v4171 = vsel %vm390, %v4162, 0
  %v4173 = vsel %vm390, %v4163, 0
  %v4175 = vsel %vm390, %v4164, 0
  %v4177 = vsel %vm390, %v4165, 0
  %v4179 = vsel %vm390, %v4166, 0
  %v4181 = vsel %vm390, %v4167, 0
  %v4183 = vsel %vm390, %v4168, 0
  %4185 = vmatprep.subr.mxu0 0.0
  %4186 = vmatpush1.msra.mxu0 0.0
  %4187 = vmatprep.subr.mxu0 0.0
  %4188 = vmatpush1.msra.mxu0 0.0
  %4189 = vmatprep.subr.mxu0 0.0
  %4190 = vmatpush1.msra.mxu0 0.0
  %4191 = vmatprep.subr.mxu0 0.0
  %4192 = vmatpush1.msra.mxu0 0.0
  %4193 = vmatprep.subr.mxu0 0.0
  %4194 = vmatpush1.msra.mxu0 0.0
  %4195 = vmatprep.subr.mxu0 0.0
  %4196 = vmatpush1.msra.mxu0 0.0
  %4197 = vmatprep.subr.mxu0 0.0
  %4198 = vmatpush1.msra.mxu0 0.0
  %4199 = vmatprep.subr.mxu0 0.0
  %4200 = vmatpush1.msra.mxu0 0.0
  %4201 = vmatprep.subr.mxu0 0.0
  %4202 = vmatpush1.msra.mxu0 0.0
  %4203 = vmatprep.subr.mxu0 0.0
  %4204 = vmatpush1.msra.mxu0 0.0
  %4205 = vmatprep.subr.mxu0 0.0
  %4206 = vmatpush1.msra.mxu0 0.0
  %4207 = vmatprep.subr.mxu0 0.0
  %4208 = vmatpush1.msra.mxu0 0.0
  %4209 = vmatprep.subr.mxu0 0.0
  %4210 = vmatpush1.msra.mxu0 %v30
  %4211 = vmatprep.subr.mxu0 0.0
  %4212 = vmatpush1.msra.mxu0 %v29
  %4213 = vmatprep.subr.mxu0 0.0
  %4214 = vmatpush1.msra.mxu0 %v28
  %4215 = vmatprep.subr.mxu0 0.0
  %4216 = vmatpush1.msra.mxu0 %v27
  %4217 = vmatprep.subr.mxu0 0.0
  %4218 = vmatpush2.msra.mxu0 0.0
  %4219 = vmatprep.subr.mxu0 0.0
  %4220 = vmatpush2.msra.mxu0 0.0
  %4221 = vmatprep.subr.mxu0 0.0
  %4222 = vmatpush2.msra.mxu0 0.0
  %4223 = vmatprep.subr.mxu0 0.0
  %4224 = vmatpush2.msra.mxu0 0.0
  %4225 = vmatprep.subr.mxu0 0.0
  %4226 = vmatpush2.msra.mxu0 0.0
  %4227 = vmatprep.subr.mxu0 0.0
  %4228 = vmatpush2.msra.mxu0 0.0
  %4229 = vmatprep.subr.mxu0 0.0
  %4230 = vmatpush2.msra.mxu0 0.0
  %4231 = vmatprep.subr.mxu0 0.0
  %4232 = vmatpush2.msra.mxu0 0.0
  %4233 = vmatprep.subr.mxu0 0.0
  %4234 = vmatpush2.msra.mxu0 0.0
  %4235 = vmatprep.subr.mxu0 0.0
  %4236 = vmatpush2.msra.mxu0 0.0
  %4237 = vmatprep.subr.mxu0 0.0
  %4238 = vmatpush2.msra.mxu0 0.0
  %4239 = vmatprep.subr.mxu0 0.0
  %4240 = vmatpush2.msra.mxu0 0.0
  %4241 = vmatprep.subr.mxu0 0.0
  %4242 = vmatpush2.msra.mxu0 0.0
  %4243 = vmatprep.subr.mxu0 0.0
  %4244 = vmatpush2.msra.mxu0 0.0
  %4245 = vmatprep.subr.mxu0 0.0
  %4246 = vmatpush2.msra.mxu0 0.0
  %4247 = vmatprep.subr.mxu0 0.0
  %4248 = vmatpush2.msra.mxu0 0.0
  %4249 = vmatprep.mubr.f32.mxu0 0.0
  %4250 = vmatmul.mubr.f32.gmra.mxu0 %v4169
  %v4251 = vpop.f32.mrf.mxu0
  %v4252 = vadd.f32 0.0, %v4251
  %v4253 = vpop.f32.mrf.mxu0
  %4254 = vmatprep.mubr.f32.mxu0 0.0
  %4255 = vmatmul.mubr.f32.gmra.mxu0 %v4171
  %v4256 = vpop.f32.mrf.mxu0
  %v4257 = vadd.f32 0.0, %v4256
  %v4258 = vpop.f32.mrf.mxu0
  %4259 = vmatprep.mubr.f32.mxu0 0.0
  %4260 = vmatmul.mubr.f32.gmra.mxu0 %v4173
  %v4261 = vpop.f32.mrf.mxu0
  %v4262 = vadd.f32 0.0, %v4261
  %v4263 = vpop.f32.mrf.mxu0
  %4264 = vmatprep.mubr.f32.mxu0 0.0
  %4265 = vmatmul.mubr.f32.gmra.mxu0 %v4175
  %v4266 = vpop.f32.mrf.mxu0
  %v4267 = vadd.f32 0.0, %v4266
  %v4268 = vpop.f32.mrf.mxu0
  %4269 = vmatprep.mubr.f32.mxu0 0.0
  %4270 = vmatmul.mubr.f32.gmra.mxu0 %v4177
  %v4271 = vpop.f32.mrf.mxu0
  %v4272 = vadd.f32 0.0, %v4271
  %v4273 = vpop.f32.mrf.mxu0
  %4274 = vmatprep.mubr.f32.mxu0 0.0
  %4275 = vmatmul.mubr.f32.gmra.mxu0 %v4179
  %v4276 = vpop.f32.mrf.mxu0
  %v4277 = vadd.f32 0.0, %v4276
  %v4278 = vpop.f32.mrf.mxu0
  %4279 = vmatprep.mubr.f32.mxu0 0.0
  %4280 = vmatmul.mubr.f32.gmra.mxu0 %v4181
  %v4281 = vpop.f32.mrf.mxu0
  %v4282 = vadd.f32 0.0, %v4281
  %v4283 = vpop.f32.mrf.mxu0
  %4284 = vmatprep.mubr.f32.mxu0 0.0
  %4285 = vmatmul.mubr.f32.gmra.mxu0 %v4183
  %v4286 = vpop.f32.mrf.mxu0
  %v4287 = vadd.f32 0.0, %v4286
  %v4288 = vpop.f32.mrf.mxu0
  %4289 = vdwg.mxu0
  %v4298 = vcombine.high %v4252, %v4252
  %v4299 = vcombine.high %v4257, %v4257
  %v4300 = vcombine.high %v4262, %v4262
  %v4301 = vcombine.high %v4267, %v4267
  %v4302 = vcombine.high %v4272, %v4272
  %v4303 = vcombine.high %v4277, %v4277
  %v4304 = vcombine.high %v4282, %v4282
  %v4305 = vcombine.high %v4287, %v4287
  %4314 = vrot.lane.b32.xlu0 %v4305, 96
  %v4315 = vpop.permute.xlu0 %4314
  %v4317 = vadd.f32 %v4252, %v4315
  %v4318 = vadd.f32 %v4298, %v4315
  %v4319 = vadd.f32 %v4257, %v4315
  %v4320 = vadd.f32 %v4299, %v4315
  %v4321 = vadd.f32 %v4262, %v4315
  %v4322 = vadd.f32 %v4300, %v4315
  %v4323 = vadd.f32 %v4267, %v4315
  %v4324 = vadd.f32 %v4301, %v4315
  %v4325 = vadd.f32 %v4272, %v4315
  %v4326 = vadd.f32 %v4302, %v4315
  %v4327 = vadd.f32 %v4277, %v4315
  %v4328 = vadd.f32 %v4303, %v4315
  %v4329 = vadd.f32 %v4282, %v4315
  %v4330 = vadd.f32 %v4304, %v4315
  %v4331 = vadd.f32 %v4287, %v4315
  %v4332 = vadd.f32 %v4305, %v4315
  %v4333 = vtanh.pop %v4317
  %v4334 = vtanh.pop %v4318
  %v4335 = vtanh.pop %v4319
  %v4336 = vtanh.pop %v4320
  %v4337 = vtanh.pop %v4321
  %v4338 = vtanh.pop %v4322
  %v4339 = vtanh.pop %v4323
  %v4340 = vtanh.pop %v4324
  %v4341 = vtanh.pop %v4325
  %v4342 = vtanh.pop %v4326
  %v4343 = vtanh.pop %v4327
  %v4344 = vtanh.pop %v4328
  %v4345 = vtanh.pop %v4329
  %v4346 = vtanh.pop %v4330
  %v4347 = vtanh.pop %v4331
  %v4348 = vtanh.pop %v4332
  %4349 = vrot.lane.b32.xlu0 %v164, 64
  %v4350 = vpop.permute.xlu0 %4349
  %v4352 = vmul.f32 %v4333, %v4350
  %v4353 = vmul.f32 %v4334, %v4350
  %v4354 = vmul.f32 %v4335, %v4350
  %v4355 = vmul.f32 %v4336, %v4350
  %v4356 = vmul.f32 %v4337, %v4350
  %v4357 = vmul.f32 %v4338, %v4350
  %v4358 = vmul.f32 %v4339, %v4350
  %v4359 = vmul.f32 %v4340, %v4350
  %v4360 = vmul.f32 %v4341, %v4350
  %v4361 = vmul.f32 %v4342, %v4350
  %v4362 = vmul.f32 %v4343, %v4350
  %v4363 = vmul.f32 %v4344, %v4350
  %v4364 = vmul.f32 %v4345, %v4350
  %v4365 = vmul.f32 %v4346, %v4350
  %v4366 = vmul.f32 %v4347, %v4350
  %v4367 = vmul.f32 %v4348, %v4350
  %v4368 = vsel %vm574, %v4352, 0.0
  %4369 = vadd.xlane.f32.xlu0 %v4368
  %v4370 = vpop.xlane.xlu0 %4369
  %v4371 = vsel %vm574, %v4353, 0.0
  %4372 = vadd.xlane.f32.xlu0 %v4371
  %v4373 = vpop.xlane.xlu0 %4372
  %v4374 = vsel %vm574, %v4354, 0.0
  %4375 = vadd.xlane.f32.xlu0 %v4374
  %v4376 = vpop.xlane.xlu0 %4375
  %v4377 = vsel %vm574, %v4355, 0.0
  %4378 = vadd.xlane.f32.xlu0 %v4377
  %v4379 = vpop.xlane.xlu0 %4378
  %v4380 = vsel %vm574, %v4356, 0.0
  %4381 = vadd.xlane.f32.xlu0 %v4380
  %v4382 = vpop.xlane.xlu0 %4381
  %v4383 = vsel %vm574, %v4357, 0.0
  %4384 = vadd.xlane.f32.xlu0 %v4383
  %v4385 = vpop.xlane.xlu0 %4384
  %v4386 = vsel %vm574, %v4358, 0.0
  %4387 = vadd.xlane.f32.xlu0 %v4386
  %v4388 = vpop.xlane.xlu0 %4387
  %v4389 = vsel %vm574, %v4359, 0.0
  %4390 = vadd.xlane.f32.xlu0 %v4389
  %v4391 = vpop.xlane.xlu0 %4390
  %v4392 = vsel %vm574, %v4360, 0.0
  %4393 = vadd.xlane.f32.xlu0 %v4392
  %v4394 = vpop.xlane.xlu0 %4393
  %v4395 = vsel %vm574, %v4361, 0.0
  %4396 = vadd.xlane.f32.xlu0 %v4395
  %v4397 = vpop.xlane.xlu0 %4396
  %v4398 = vsel %vm574, %v4362, 0.0
  %4399 = vadd.xlane.f32.xlu0 %v4398
  %v4400 = vpop.xlane.xlu0 %4399
  %v4401 = vsel %vm574, %v4363, 0.0
  %4402 = vadd.xlane.f32.xlu0 %v4401
  %v4403 = vpop.xlane.xlu0 %4402
  %v4404 = vsel %vm574, %v4364, 0.0
  %4405 = vadd.xlane.f32.xlu0 %v4404
  %v4406 = vpop.xlane.xlu0 %4405
  %v4407 = vsel %vm574, %v4365, 0.0
  %4408 = vadd.xlane.f32.xlu0 %v4407
  %v4409 = vpop.xlane.xlu0 %4408
  %v4410 = vsel %vm574, %v4366, 0.0
  %4411 = vadd.xlane.f32.xlu0 %v4410
  %v4412 = vpop.xlane.xlu0 %4411
  %v4413 = vsel %vm574, %v4367, 0.0
  %4414 = vadd.xlane.f32.xlu0 %v4413
  %v4415 = vpop.xlane.xlu0 %4414
  %v4416 = vsel %vm67, %v4370, -inf
  %v4417 = vsel %vm67, %v4373, -inf
  %v4418 = vsel %vm67, %v4376, -inf
  %v4419 = vsel %vm67, %v4379, -inf
  %v4420 = vsel %vm67, %v4382, -inf
  %v4421 = vmax.f32 %v4416, %v4420
  %v4422 = vsel %vm67, %v4385, -inf
  %v4423 = vmax.f32 %v4417, %v4422
  %v4424 = vsel %vm67, %v4388, -inf
  %v4425 = vmax.f32 %v4418, %v4424
  %v4426 = vsel %vm67, %v4391, -inf
  %v4427 = vmax.f32 %v4419, %v4426
  %v4428 = vsel %vm67, %v4394, -inf
  %v4429 = vmax.f32 %v4421, %v4428
  %v4430 = vsel %vm67, %v4397, -inf
  %v4431 = vmax.f32 %v4423, %v4430
  %v4432 = vsel %vm67, %v4400, -inf
  %v4433 = vmax.f32 %v4425, %v4432
  %v4434 = vsel %vm67, %v4403, -inf
  %v4435 = vmax.f32 %v4427, %v4434
  %v4436 = vsel %vm67, %v4406, -inf
  %v4437 = vmax.f32 %v4429, %v4436
  %v4438 = vsel %vm67, %v4409, -inf
  %v4439 = vmax.f32 %v4431, %v4438
  %v4440 = vsel %vm67, %v4412, -inf
  %v4441 = vmax.f32 %v4433, %v4440
  %v4442 = vsel %vm67, %v4415, -inf
  %v4443 = vmax.f32 %v4435, %v4442
  %v4444 = vmax.f32 %v4437, %v4439
  %v4445 = vmax.f32 %v4441, %v4443
  %v4446 = vmax.f32 %v4444, %v4445
  %v4447 = vsub.f32 %v4370, %v4446
  %v4448 = vsub.f32 %v4373, %v4446
  %v4449 = vsub.f32 %v4376, %v4446
  %v4450 = vsub.f32 %v4379, %v4446
  %v4451 = vsub.f32 %v4382, %v4446
  %v4452 = vsub.f32 %v4385, %v4446
  %v4453 = vsub.f32 %v4388, %v4446
  %v4454 = vsub.f32 %v4391, %v4446
  %v4455 = vsub.f32 %v4394, %v4446
  %v4456 = vsub.f32 %v4397, %v4446
  %v4457 = vsub.f32 %v4400, %v4446
  %v4458 = vsub.f32 %v4403, %v4446
  %v4459 = vsub.f32 %v4406, %v4446
  %v4460 = vsub.f32 %v4409, %v4446
  %v4461 = vsub.f32 %v4412, %v4446
  %v4462 = vsub.f32 %v4415, %v4446
  %v4463 = vmul.f32 %v4447, 1.442695
  %v4464 = vpow.pop %v4463
  %v4465 = vmul.f32 %v4448, 1.442695
  %v4466 = vpow.pop %v4465
  %v4467 = vmul.f32 %v4449, 1.442695
  %v4468 = vpow.pop %v4467
  %v4469 = vmul.f32 %v4450, 1.442695
  %v4470 = vpow.pop %v4469
  %v4471 = vmul.f32 %v4451, 1.442695
  %v4472 = vpow.pop %v4471
  %v4473 = vmul.f32 %v4452, 1.442695
  %v4474 = vpow.pop %v4473
  %v4475 = vmul.f32 %v4453, 1.442695
  %v4476 = vpow.pop %v4475
  %v4477 = vmul.f32 %v4454, 1.442695
  %v4478 = vpow.pop %v4477
  %v4479 = vmul.f32 %v4455, 1.442695
  %v4480 = vpow.pop %v4479
  %v4481 = vmul.f32 %v4456, 1.442695
  %v4482 = vpow.pop %v4481
  %v4483 = vmul.f32 %v4457, 1.442695
  %v4484 = vpow.pop %v4483
  %v4485 = vmul.f32 %v4458, 1.442695
  %v4486 = vpow.pop %v4485
  %v4487 = vmul.f32 %v4459, 1.442695
  %v4488 = vpow.pop %v4487
  %v4489 = vmul.f32 %v4460, 1.442695
  %v4490 = vpow.pop %v4489
  %v4491 = vmul.f32 %v4461, 1.442695
  %v4492 = vpow.pop %v4491
  %v4493 = vmul.f32 %v4462, 1.442695
  %v4494 = vpow.pop %v4493
  %v4495 = vsel %vm67, %v4464, 0.0
  %v4496 = vsel %vm67, %v4466, 0.0
  %v4497 = vadd.f32 %v4495, %v4496
  %v4498 = vsel %vm67, %v4468, 0.0
  %v4499 = vadd.f32 %v4497, %v4498
  %v4500 = vsel %vm67, %v4470, 0.0
  %v4501 = vadd.f32 %v4499, %v4500
  %v4502 = vsel %vm67, %v4472, 0.0
  %v4503 = vadd.f32 %v4501, %v4502
  %v4504 = vsel %vm67, %v4474, 0.0
  %v4505 = vadd.f32 %v4503, %v4504
  %v4506 = vsel %vm67, %v4476, 0.0
  %v4507 = vadd.f32 %v4505, %v4506
  %v4508 = vsel %vm67, %v4478, 0.0
  %v4509 = vadd.f32 %v4507, %v4508
  %v4510 = vsel %vm67, %v4480, 0.0
  %v4511 = vadd.f32 %v4509, %v4510
  %v4512 = vsel %vm67, %v4482, 0.0
  %v4513 = vadd.f32 %v4511, %v4512
  %v4514 = vsel %vm67, %v4484, 0.0
  %v4515 = vadd.f32 %v4513, %v4514
  %v4516 = vsel %vm67, %v4486, 0.0
  %v4517 = vadd.f32 %v4515, %v4516
  %v4518 = vsel %vm67, %v4488, 0.0
  %v4519 = vadd.f32 %v4517, %v4518
  %v4520 = vsel %vm67, %v4490, 0.0
  %v4521 = vadd.f32 %v4519, %v4520
  %v4522 = vsel %vm67, %v4492, 0.0
  %v4523 = vadd.f32 %v4521, %v4522
  %v4524 = vsel %vm67, %v4494, 0.0
  %v4525 = vadd.f32 %v4523, %v4524
  %v4526 = vrcp.pop %v4525
  %v4527 = vmul.f32 %v4464, %v4526
  %v4528 = vmul.f32 %v4466, %v4526
  %v4529 = vmul.f32 %v4468, %v4526
  %v4530 = vmul.f32 %v4470, %v4526
  %v4531 = vmul.f32 %v4472, %v4526
  %v4532 = vmul.f32 %v4474, %v4526
  %v4533 = vmul.f32 %v4476, %v4526
  %v4534 = vmul.f32 %v4478, %v4526
  %v4535 = vmul.f32 %v4480, %v4526
  %v4536 = vmul.f32 %v4482, %v4526
  %v4537 = vmul.f32 %v4484, %v4526
  %v4538 = vmul.f32 %v4486, %v4526
  %v4539 = vmul.f32 %v4488, %v4526
  %v4540 = vmul.f32 %v4490, %v4526
  %v4541 = vmul.f32 %v4492, %v4526
  %v4542 = vmul.f32 %v4494, %v4526
  %v4543 = vmul.f32 %v4129, %v4527
  %v4544 = vmul.f32 %v4130, %v4528
  %v4545 = vmul.f32 %v4131, %v4529
  %v4546 = vmul.f32 %v4132, %v4530
  %v4547 = vmul.f32 %v4133, %v4531
  %v4548 = vmul.f32 %v4134, %v4532
  %v4549 = vmul.f32 %v4135, %v4533
  %v4550 = vmul.f32 %v4136, %v4534
  %v4551 = vmul.f32 %v4137, %v4535
  %v4552 = vmul.f32 %v4138, %v4536
  %v4553 = vmul.f32 %v4139, %v4537
  %v4554 = vmul.f32 %v4140, %v4538
  %v4555 = vmul.f32 %v4141, %v4539
  %v4556 = vmul.f32 %v4142, %v4540
  %v4557 = vmul.f32 %v4143, %v4541
  %v4558 = vmul.f32 %v4144, %v4542
  %v4559 = vsel %vm574, %v4543, 0.0
  %v4560 = vsel %vm574, %v4544, 0.0
  %v4561 = vadd.f32 %v4559, %v4560
  %v4562 = vsel %vm574, %v4545, 0.0
  %v4563 = vadd.f32 %v4561, %v4562
  %v4564 = vsel %vm574, %v4546, 0.0
  %v4565 = vadd.f32 %v4563, %v4564
  %v4566 = vsel %vm574, %v4547, 0.0
  %v4567 = vadd.f32 %v4565, %v4566
  %v4568 = vsel %vm574, %v4548, 0.0
  %v4569 = vadd.f32 %v4567, %v4568
  %v4570 = vsel %vm574, %v4549, 0.0
  %v4571 = vadd.f32 %v4569, %v4570
  %v4572 = vsel %vm574, %v4550, 0.0
  %v4573 = vadd.f32 %v4571, %v4572
  %v4574 = vsel %vm574, %v4551, 0.0
  %v4575 = vadd.f32 %v4573, %v4574
  %v4576 = vsel %vm574, %v4552, 0.0
  %v4577 = vadd.f32 %v4575, %v4576
  %v4578 = vsel %vm574, %v4553, 0.0
  %v4579 = vadd.f32 %v4577, %v4578
  %v4580 = vsel %vm574, %v4554, 0.0
  %v4581 = vadd.f32 %v4579, %v4580
  %v4582 = vsel %vm574, %v4555, 0.0
  %v4583 = vadd.f32 %v4581, %v4582
  %v4584 = vsel %vm574, %v4556, 0.0
  %v4585 = vadd.f32 %v4583, %v4584
  %v4586 = vsel %vm574, %v4557, 0.0
  %v4587 = vadd.f32 %v4585, %v4586
  %v4588 = vsel %vm574, %v4558, 0.0
  %v4589 = vadd.f32 %v4587, %v4588
  %4590 = vrot.lane.b32.xlu0 %v164, 32
  %v4591 = vpop.permute.xlu0 %4590
  %v4593 = vmul.f32 %v607, %v4591
  %v4594 = vsel %vm574, %v4593, 0.0
  %4595 = vadd.xlane.f32.xlu0 %v4594
  %v4596 = vpop.xlane.xlu0 %4595
  %v4597 = vlaneseq
  %v4598 = vshrl.u32 %v4597, 7
  %v4599 = vsub.s32 0, %v4598
  %v4600 = vrot.slane %v47, %v4599
  %v4601 = vmul.f32 %v4589, %v4600
  %v4602 = vsel %vm574, %v4601, 0.0
  %4603 = vadd.xlane.f32.xlu0 %v4602
  %v4604 = vpop.xlane.xlu0 %4603
  %v4605 = vadd.f32 %v4596, %v4604
  %v4606 = vadd.f32 %v4605, %v4600
  %4608 = vrot.lane.b32.xlu0 %v4606, 96
  %v4609 = vpop.permute.xlu0 %4608
  %vm4611 = vcmask 3072
  %4612 = vst.msk [vmem:[%s3] sm:$0xf] %vm4611, %v4609
  // Predicated region
  $region14: #{alstm2_forward.1} parent=0 // pred_check
    _
  $region15: #{alstm2_forward.1} parent=0 // pred_check_branch
    %4614 = sbr.rel (0) target = $region17
  $region16: #{alstm2_forward.1} parent=0 // pred_region
    _
  $region17: #{alstm2_forward.1} parent=0 // pred_fallthru
    _
  // Predicated region
  $region18: #{alstm2_forward.1} parent=0 // pred_check
    _
  $region19: #{alstm2_forward.1} parent=0 // pred_check_branch
    %4616 = sbr.rel (0) target = $region21
  $region20: #{alstm2_forward.1} parent=0 // pred_region
    _
  $region21: #{alstm2_forward.1} parent=0 // pred_fallthru
    _

</llo_original>
